<compile_context>
chip_gen: v6e
topology: v6e:2x2x1
jax: 0.10.0
libtpu: 0.0.40
codegen_flags: <defaults>
</compile_context>

<pallas_src>
import functools

import jax
import jax.numpy as jnp
from jax.experimental import pallas as pl
from jax.experimental.pallas import tpu as pltpu


# ----------------------------------------------------------------------------
# Fused kernel: per-point MLP 3->64->128->256 (+ReLU, layer-3 bias/ReLU hoisted),
# running max-pool over points, and the FC head 256->256->128->D*D.
# Channel-major layout: every matmul is (Cout, Cin) @ (Cin, tn) so the big
# point axis sits on the lane dimension.
# ----------------------------------------------------------------------------
def _tnet_kernel(x_ref, w1t_ref, b1_ref, w2t_ref, b2_ref, w3t_ref, b3_ref,
                 w4t_ref, b4_ref, w5t_ref, b5_ref, w6t_ref, b6_ref,
                 out_ref, pooled_ref, *, cin, lane_groups, layer1_mxu):
    nt = pl.program_id(1)
    n_tiles = pl.num_programs(1)

    x_raw = x_ref[0]                                          # (cin_blk, tn) bf16

    # ---- Layer 1 (K = input_dim = 3).
    if layer1_mxu:
        # v6e/v7x: MXU has slack (VALU is the binding slot) -> K padded to 8.
        acc = jnp.dot(w1t_ref[...], x_raw, preferred_element_type=jnp.float32)
    else:
        # v5e: MXU-bound -> keep layer 1 on the VPU as broadcast FMAs (f32).
        xc = x_raw.astype(jnp.float32)
        w1t = w1t_ref[...]
        acc = w1t[:, 0:1] * xc[0:1, :]
        for c in range(1, cin):
            acc = acc + w1t[:, c:c + 1] * xc[c:c + 1, :]
    h1 = jnp.maximum(acc + b1_ref[...], 0.0).astype(jnp.bfloat16)        # (64, tn)

    # ---- Layer 2: bf16 MXU matmul, f32 accumulation + elementwise.
    h2 = jnp.maximum(
        jnp.dot(w2t_ref[...], h1, preferred_element_type=jnp.float32)
        + b2_ref[...], 0.0).astype(jnp.bfloat16)                         # (128, tn)

    # ---- Layer 3: RAW dot only. Bias + ReLU are hoisted past the max-pool
    # (max_n(z_n + b) = max_n(z_n) + b; relu(max) = max(relu)) -> exact.
    h3 = jnp.dot(w3t_ref[...], h2, preferred_element_type=jnp.float32)   # (256, tn) f32

    # ---- Running max-pool over points (lane-dense scratch, VPU-only per tile).
    @pl.when(nt == 0)
    def _():
        pooled_ref[...] = jnp.full(pooled_ref.shape, -jnp.inf, jnp.float32)

    if lane_groups >= 1:
        m = h3[:, 0:128]
        for g in range(1, lane_groups):                       # static, lane-aligned slices
            m = jnp.maximum(m, h3[:, g * 128:(g + 1) * 128])
        pooled_ref[...] = jnp.maximum(pooled_ref[...], m)     # (256,128) elementwise max
    else:
        # tn not a multiple of 128 (tiny clouds): direct cross-lane reduce.
        pooled_ref[...] = jnp.maximum(pooled_ref[...],
                                      jnp.max(h3, axis=1, keepdims=True))

    # ---- Fused FC head, runs once per batch on the finished pooled vector.
    @pl.when(nt == n_tiles - 1)
    def _():
        if lane_groups >= 1:
            pooled = jnp.max(pooled_ref[...], axis=1, keepdims=True)   # one XLU reduce
        else:
            pooled = pooled_ref[...]
        p = jnp.maximum(pooled + b3_ref[...], 0.0)            # hoisted bias + ReLU (once)
        h4 = jnp.maximum(
            jnp.dot(w4t_ref[...], p.astype(jnp.bfloat16),
                    preferred_element_type=jnp.float32) + b4_ref[...], 0.0)   # (256,1)
        h5 = jnp.maximum(
            jnp.dot(w5t_ref[...], h4.astype(jnp.bfloat16),
                    preferred_element_type=jnp.float32) + b5_ref[...], 0.0)   # (128,1)
        out_ref[0] = (jnp.dot(w6t_ref[...], h5.astype(jnp.bfloat16),
                              preferred_element_type=jnp.float32)
                      + b6_ref[...])                                          # (D*D,1)


# ----------------------------------------------------------------------------
# Per-device tuning knobs.
# ----------------------------------------------------------------------------
def _max_tn_for_device(default=4096):
    """Point-tile cap: 8192 on 128-MiB VMEM parts (v5e/v6e), 4096 on v7x (64 MiB)."""
    try:
        info = pltpu.get_tpu_info()
        vmem = getattr(info, "vmem_capacity_bytes", None)
        if vmem is not None and vmem < (96 << 20):
            return 4096
        return 8192
    except Exception:
        return default


def _layer1_on_mxu():
    """MXU layer-1 on v6e/v7x (VALU-bound kernel), VPU layer-1 on v5e (MXU-bound)."""
    try:
        kind = jax.devices()[0].device_kind.lower()
    except Exception:
        return True
    return not any(tag in kind for tag in ("v5 lite", "v5lite", "v5e"))


def _choose_tn(n_points, max_tn):
    """Largest point tile: N itself if small, else a 256/128-multiple divisor."""
    if n_points <= max_tn:
        return n_points
    for step in (256, 128):
        start = max_tn - max_tn % step
        for t in range(start, step - 1, -step):
            if n_points % t == 0:
                return t
    # TODO(synk): ragged-tail handling for awkward N (zero-pad point axis +
    # mask padded points to -inf before the max-pool); falls back to one tile.
    return n_points


# ----------------------------------------------------------------------------
# Wrapper: pallas_call plumbing.
# ----------------------------------------------------------------------------
@functools.partial(jax.jit, static_argnames=("output_dim", "tn", "layer1_mxu"))
def _transformation_net_impl(x, kp, *, output_dim, tn, layer1_mxu):
    B, N, cin = x.shape
    dd = output_dim * output_dim
    assert N % tn == 0, f"num_points={N} must be divisible by tn={tn}"
    assert tn == N or tn % 128 == 0, "tn must be a multiple of 128 (or equal N)"
    lane_groups = tn // 128 if tn % 128 == 0 else 0

    # bf16 cast BEFORE the transpose (halves the HBM traffic of the layout pass).
    x_cm = jnp.transpose(x.astype(jnp.bfloat16), (0, 2, 1))   # (B, cin, N)

    w1t, b1 = kp["w1t"], kp["b1"]
    if layer1_mxu:
        cin_blk = ((cin + 7) // 8) * 8            # pad contraction to the sublane tile
        if cin_blk > cin:
            x_cm = jnp.pad(x_cm, ((0, 0), (0, cin_blk - cin), (0, 0)))
            w1t = jnp.pad(w1t, ((0, 0), (0, cin_blk - cin)))
        w1t = w1t.astype(jnp.bfloat16)            # pre-cast outside the kernel
    else:
        cin_blk = cin                             # VPU path: no padding, f32 weights

    c_pool = kp["w3t"].shape[0]                   # 256
    pool_lanes = 128 if lane_groups >= 1 else 1

    full = lambda a: pl.BlockSpec(a.shape, lambda b, n: (0,) * a.ndim)
    # NOTE: the constant-index weight specs could be single-buffered
    # (pipeline_mode=pl.Buffered(1)) to reclaim ~0.5 MB VMEM on v7x; left
    # double-buffered here for maximum lowering compatibility.

    kernel = functools.partial(_tnet_kernel, cin=cin, lane_groups=lane_groups,
                               layer1_mxu=layer1_mxu)

    out = pl.pallas_call(
        kernel,
        out_shape=jax.ShapeDtypeStruct((B, dd, 1), jnp.float32),
        grid_spec=pltpu.PrefetchScalarGridSpec(
            num_scalar_prefetch=0,
            grid=(B, N // tn),
            in_specs=[
                pl.BlockSpec((1, cin_blk, tn), lambda b, n: (b, 0, n)),
                full(w1t), full(kp["b1"]),
                full(kp["w2t"]), full(kp["b2"]),
                full(kp["w3t"]), full(kp["b3"]),
                full(kp["w4t"]), full(kp["b4"]),
                full(kp["w5t"]), full(kp["b5"]),
                full(kp["w6t"]), full(kp["b6"]),
            ],
            out_specs=pl.BlockSpec((1, dd, 1), lambda b, n: (b, 0, 0)),
            scratch_shapes=[pltpu.VMEM((c_pool, pool_lanes), jnp.float32)],
        ),
        # TODO(synk): for B == 1 on v7x, split the point axis into two "parallel"
        # halves with partial maxes to use both TensorCores.
        compiler_params=pltpu.CompilerParams(
            dimension_semantics=("parallel", "arbitrary"),
            vmem_limit_bytes=(64 << 20) if tn > 4096 else None),
    )(x_cm, w1t, kp["b1"], kp["w2t"], kp["b2"], kp["w3t"], kp["b3"],
      kp["w4t"], kp["b4"], kp["w5t"], kp["b5"], kp["w6t"], kp["b6"])

    out = out[:, :, 0].reshape(B, output_dim, output_dim)
    return out + jnp.eye(output_dim, dtype=out.dtype)


def transformation_net(x, kp, *, output_dim, tn=None, layer1_mxu=None):
    """x: (B, num_points, input_dim) float32. Returns (B, D, D)."""
    _, N, _ = x.shape
    if tn is None:
        tn = _choose_tn(N, _max_tn_for_device())
    if layer1_mxu is None:
        layer1_mxu = _layer1_on_mxu()
    return _transformation_net_impl(x, kp, output_dim=output_dim,
                                    tn=int(tn), layer1_mxu=bool(layer1_mxu))


# ----------------------------------------------------------------------------
# Parameter construction (deterministic, synthetic) + BN folding + kernel layout
# ----------------------------------------------------------------------------
def _fold_bn(w, b, gamma, beta, mean, var, eps=1e-5):
    """Fold inference-mode BatchNorm1d into a preceding (in, out) matmul."""
    scale = gamma / jnp.sqrt(var + eps)
    return (w * scale[None, :]).astype(jnp.float32), ((b - mean) * scale + beta).astype(jnp.float32)


def make_params(key, input_dim, output_dim):
    """Returns [(w, b)] x 6 with w:(in,out) f32, b:(out,) f32; BN folded into 1..5."""
    dims = [(input_dim, 64), (64, 128), (128, 256),                  # conv_1..3 (k=1)
            (256, 256), (256, 128), (128, output_dim * output_dim)]  # fc_1..3
    params = []
    for li, (cin, cout) in enumerate(dims):
        k = jax.random.fold_in(key, li)
        kw, kb, kg, kbe, km, kv = jax.random.split(k, 6)
        w = 0.1 * jax.random.normal(kw, (cin, cout), jnp.float32)
        b = 0.05 * jax.random.normal(kb, (cout,), jnp.float32)
        if li < 5:  # bn_1..bn_5 follow the first five layers
            gamma = 1.0 + 0.1 * jax.random.normal(kg, (cout,), jnp.float32)
            beta = 0.05 * jax.random.normal(kbe, (cout,), jnp.float32)
            mean = 0.05 * jax.random.normal(km, (cout,), jnp.float32)
            var = 1.0 + 0.1 * jax.random.uniform(kv, (cout,), jnp.float32)
            w, b = _fold_bn(w, b, gamma, beta, mean, var)
        params.append((w, b))
    return params


def prepare_kernel_params(params):
    """Transpose to (out, in), biases as columns; bf16 weights everywhere except
    layer 1 (kept f32 for the v5e VPU path; the wrapper casts/pads it for MXU)."""
    (w1, b1), (w2, b2), (w3, b3), (w4, b4), (w5, b5), (w6, b6) = params
    col = lambda b: b.reshape(-1, 1).astype(jnp.float32)
    return dict(
        w1t=w1.T.astype(jnp.float32), b1=col(b1),
        w2t=w2.T.astype(jnp.bfloat16), b2=col(b2),
        w3t=w3.T.astype(jnp.bfloat16), b3=col(b3),
        w4t=w4.T.astype(jnp.bfloat16), b4=col(b4),
        w5t=w5.T.astype(jnp.bfloat16), b5=col(b5),
        w6t=w6.T.astype(jnp.bfloat16), b6=col(b6),
    )


def reference_forward(x, params, output_dim):
    """Pure-JAX f32 reference of the (BN-folded) module forward."""
    (w1, b1), (w2, b2), (w3, b3), (w4, b4), (w5, b5), (w6, b6) = params
    h = jax.nn.relu(x @ w1 + b1)
    h = jax.nn.relu(h @ w2 + b2)
    h = jax.nn.relu(h @ w3 + b3)
    p = jnp.max(h, axis=1)                       # max-pool over points -> (B, 256)
    h = jax.nn.relu(p @ w4 + b4)
    h = jax.nn.relu(h @ w5 + b5)
    o = h @ w6 + b6
    o = o.reshape(-1, output_dim, output_dim)
    return o + jnp.eye(output_dim, dtype=o.dtype)


if __name__ == "__main__":
    B, N, INPUT_DIM, OUTPUT_DIM = 2, 1024, 3, 3   # typical (small) point cloud
    key = jax.random.PRNGKey(0)
    kx, kparam = jax.random.split(key)

    x = jax.random.normal(kx, (B, N, INPUT_DIM), jnp.float32)
    params = make_params(kparam, INPUT_DIM, OUTPUT_DIM)
    kp = prepare_kernel_params(params)

    out = transformation_net(x, kp, output_dim=OUTPUT_DIM)
    jax.block_until_ready(out)
    assert out.shape == (B, OUTPUT_DIM, OUTPUT_DIM)

    ref = reference_forward(x, params, OUTPUT_DIM)
    assert jnp.allclose(out, ref, atol=5e-2, rtol=5e-2), (
        f"mismatch: max abs err {jnp.max(jnp.abs(out - ref)):.4f}")

    print("KERNEL_OK")
</pallas_src>

<mosaic_0001>
module attributes {stable_mosaic.version = 11 : i64} {
  func.func @_tnet_kernel(%arg0: i32, %arg1: i32, %arg2: memref<1x8x1024xbf16, #tpu.memory_space<vmem>>, %arg3: memref<64x8xbf16, #tpu.memory_space<vmem>>, %arg4: memref<64x1xf32, #tpu.memory_space<vmem>>, %arg5: memref<128x64xbf16, #tpu.memory_space<vmem>>, %arg6: memref<128x1xf32, #tpu.memory_space<vmem>>, %arg7: memref<256x128xbf16, #tpu.memory_space<vmem>>, %arg8: memref<256x1xf32, #tpu.memory_space<vmem>>, %arg9: memref<256x256xbf16, #tpu.memory_space<vmem>>, %arg10: memref<256x1xf32, #tpu.memory_space<vmem>>, %arg11: memref<128x256xbf16, #tpu.memory_space<vmem>>, %arg12: memref<128x1xf32, #tpu.memory_space<vmem>>, %arg13: memref<9x128xbf16, #tpu.memory_space<vmem>>, %arg14: memref<9x1xf32, #tpu.memory_space<vmem>>, %arg15: memref<1x9x1xf32, #tpu.memory_space<vmem>>, %arg16: memref<256x128xf32, #tpu.memory_space<vmem>>) attributes {dimension_semantics = [#tpu.dimension_semantics<parallel>, #tpu.dimension_semantics<arbitrary>], iteration_bounds = array<i64: 2, 1>, scalar_prefetch = 0 : i64, scratch_operands = 1 : i64, tpu.core_type = #tpu.core_type<tc>, window_params = [{transform_indices = @transform_0, window_bounds = array<i64: 1, 8, 1024>}, {pipeline_mode = #tpu.pipeline_mode<synchronous>, transform_indices = @transform_1, window_bounds = array<i64: 64, 8>}, {pipeline_mode = #tpu.pipeline_mode<synchronous>, transform_indices = @transform_2, window_bounds = array<i64: 64, 1>}, {pipeline_mode = #tpu.pipeline_mode<synchronous>, transform_indices = @transform_3, window_bounds = array<i64: 128, 64>}, {pipeline_mode = #tpu.pipeline_mode<synchronous>, transform_indices = @transform_4, window_bounds = array<i64: 128, 1>}, {pipeline_mode = #tpu.pipeline_mode<synchronous>, transform_indices = @transform_5, window_bounds = array<i64: 256, 128>}, {pipeline_mode = #tpu.pipeline_mode<synchronous>, transform_indices = @transform_6, window_bounds = array<i64: 256, 1>}, {pipeline_mode = #tpu.pipeline_mode<synchronous>, transform_indices = @transform_7, window_bounds = array<i64: 256, 256>}, {pipeline_mode = #tpu.pipeline_mode<synchronous>, transform_indices = @transform_8, window_bounds = array<i64: 256, 1>}, {pipeline_mode = #tpu.pipeline_mode<synchronous>, transform_indices = @transform_9, window_bounds = array<i64: 128, 256>}, {pipeline_mode = #tpu.pipeline_mode<synchronous>, transform_indices = @transform_10, window_bounds = array<i64: 128, 1>}, {pipeline_mode = #tpu.pipeline_mode<synchronous>, transform_indices = @transform_11, window_bounds = array<i64: 9, 128>}, {pipeline_mode = #tpu.pipeline_mode<synchronous>, transform_indices = @transform_12, window_bounds = array<i64: 9, 1>}, {transform_indices = @transform_13, window_bounds = array<i64: 1, 9, 1>}]} {
    %c0 = arith.constant 0 : index
    %c0_0 = arith.constant 0 : index
    %c0_1 = arith.constant 0 : index
    %0 = vector.load %arg2[%c0, %c0_0, %c0_1] : memref<1x8x1024xbf16, #tpu.memory_space<vmem>>, vector<1x8x1024xbf16>
    %1 = vector.shape_cast %0 : vector<1x8x1024xbf16> to vector<8x1024xbf16>
    %c0_2 = arith.constant 0 : index
    %c0_3 = arith.constant 0 : index
    %2 = vector.load %arg3[%c0_2, %c0_3] : memref<64x8xbf16, #tpu.memory_space<vmem>>, vector<64x8xbf16>
    %cst = arith.constant dense<0.000000e+00> : vector<64x1024xf32>
    %3 = tpu.matmul %2, %1, %cst {dimension_numbers = #tpu.dot_dimension_numbers<[1], [0], [0], [1], [0, 0, 1, 1], [], []>} : vector<64x8xbf16>, vector<8x1024xbf16>, vector<64x1024xf32> -> vector<64x1024xf32>
    %c0_4 = arith.constant 0 : index
    %c0_5 = arith.constant 0 : index
    %4 = vector.load %arg4[%c0_4, %c0_5] : memref<64x1xf32, #tpu.memory_space<vmem>>, vector<64x1xf32>
    %5 = vector.broadcast %4 : vector<64x1xf32> to vector<64x1024xf32>
    %6 = arith.addf %3, %5 : vector<64x1024xf32>
    %cst_6 = arith.constant 0.000000e+00 : f32
    %7 = vector.broadcast %cst_6 : f32 to vector<64x1024xf32>
    %8 = arith.maximumf %6, %7 : vector<64x1024xf32>
    %9 = arith.truncf %8 : vector<64x1024xf32> to vector<64x1024xbf16>
    %c0_7 = arith.constant 0 : index
    %c0_8 = arith.constant 0 : index
    %10 = vector.load %arg5[%c0_7, %c0_8] : memref<128x64xbf16, #tpu.memory_space<vmem>>, vector<128x64xbf16>
    %cst_9 = arith.constant dense<0.000000e+00> : vector<128x1024xf32>
    %11 = tpu.matmul %10, %9, %cst_9 {dimension_numbers = #tpu.dot_dimension_numbers<[1], [0], [0], [1], [0, 0, 1, 1], [], []>} : vector<128x64xbf16>, vector<64x1024xbf16>, vector<128x1024xf32> -> vector<128x1024xf32>
    %c0_10 = arith.constant 0 : index
    %c0_11 = arith.constant 0 : index
    %12 = vector.load %arg6[%c0_10, %c0_11] : memref<128x1xf32, #tpu.memory_space<vmem>>, vector<128x1xf32>
    %13 = vector.broadcast %12 : vector<128x1xf32> to vector<128x1024xf32>
    %14 = arith.addf %11, %13 : vector<128x1024xf32>
    %cst_12 = arith.constant 0.000000e+00 : f32
    %15 = vector.broadcast %cst_12 : f32 to vector<128x1024xf32>
    %16 = arith.maximumf %14, %15 : vector<128x1024xf32>
    %17 = arith.truncf %16 : vector<128x1024xf32> to vector<128x1024xbf16>
    %c0_13 = arith.constant 0 : index
    %c0_14 = arith.constant 0 : index
    %18 = vector.load %arg7[%c0_13, %c0_14] : memref<256x128xbf16, #tpu.memory_space<vmem>>, vector<256x128xbf16>
    %cst_15 = arith.constant dense<0.000000e+00> : vector<256x1024xf32>
    %19 = tpu.matmul %18, %17, %cst_15 {dimension_numbers = #tpu.dot_dimension_numbers<[1], [0], [0], [1], [0, 0, 1, 1], [], []>} : vector<256x128xbf16>, vector<128x1024xbf16>, vector<256x1024xf32> -> vector<256x1024xf32>
    %c0_i32 = arith.constant 0 : i32
    %20 = arith.cmpi eq, %arg1, %c0_i32 : i32
    %21 = arith.extui %20 : i1 to i32
    %c0_i32_16 = arith.constant 0 : i32
    %22 = arith.cmpi ne, %21, %c0_i32_16 : i32
    scf.if %22 {
      %cst_23 = arith.constant 0xFF800000 : f32
      %44 = vector.broadcast %cst_23 : f32 to vector<256x128xf32>
      %c0_24 = arith.constant 0 : index
      %c0_25 = arith.constant 0 : index
      %45 = vector.load %arg16[%c0_24, %c0_25] : memref<256x128xf32, #tpu.memory_space<vmem>>, vector<256x128xf32>
      tpu.vector_store %arg16[%c0_24, %c0_25], %44 {strides = array<i32>} : memref<256x128xf32, #tpu.memory_space<vmem>>, vector<256x128xf32>,
    } else {
    }
    %23 = vector.extract_strided_slice %19 {offsets = [0, 0], sizes = [256, 128], strides = [1, 1]} : vector<256x1024xf32> to vector<256x128xf32>
    %24 = vector.extract_strided_slice %19 {offsets = [0, 128], sizes = [256, 128], strides = [1, 1]} : vector<256x1024xf32> to vector<256x128xf32>
    %25 = arith.maximumf %23, %24 : vector<256x128xf32>
    %26 = vector.extract_strided_slice %19 {offsets = [0, 256], sizes = [256, 128], strides = [1, 1]} : vector<256x1024xf32> to vector<256x128xf32>
    %27 = arith.maximumf %25, %26 : vector<256x128xf32>
    %28 = vector.extract_strided_slice %19 {offsets = [0, 384], sizes = [256, 128], strides = [1, 1]} : vector<256x1024xf32> to vector<256x128xf32>
    %29 = arith.maximumf %27, %28 : vector<256x128xf32>
    %30 = vector.extract_strided_slice %19 {offsets = [0, 512], sizes = [256, 128], strides = [1, 1]} : vector<256x1024xf32> to vector<256x128xf32>
    %31 = arith.maximumf %29, %30 : vector<256x128xf32>
    %32 = vector.extract_strided_slice %19 {offsets = [0, 640], sizes = [256, 128], strides = [1, 1]} : vector<256x1024xf32> to vector<256x128xf32>
    %33 = arith.maximumf %31, %32 : vector<256x128xf32>
    %34 = vector.extract_strided_slice %19 {offsets = [0, 768], sizes = [256, 128], strides = [1, 1]} : vector<256x1024xf32> to vector<256x128xf32>
    %35 = arith.maximumf %33, %34 : vector<256x128xf32>
    %36 = vector.extract_strided_slice %19 {offsets = [0, 896], sizes = [256, 128], strides = [1, 1]} : vector<256x1024xf32> to vector<256x128xf32>
    %37 = arith.maximumf %35, %36 : vector<256x128xf32>
    %c0_17 = arith.constant 0 : index
    %c0_18 = arith.constant 0 : index
    %38 = vector.load %arg16[%c0_17, %c0_18] : memref<256x128xf32, #tpu.memory_space<vmem>>, vector<256x128xf32>
    %39 = arith.maximumf %38, %37 : vector<256x128xf32>
    %c0_19 = arith.constant 0 : index
    %c0_20 = arith.constant 0 : index
    %40 = vector.load %arg16[%c0_19, %c0_20] : memref<256x128xf32, #tpu.memory_space<vmem>>, vector<256x128xf32>
    tpu.vector_store %arg16[%c0_19, %c0_20], %39 {strides = array<i32>} : memref<256x128xf32, #tpu.memory_space<vmem>>, vector<256x128xf32>,
    %c0_i32_21 = arith.constant 0 : i32
    %41 = arith.cmpi eq, %arg1, %c0_i32_21 : i32
    %42 = arith.extui %41 : i1 to i32
    %c0_i32_22 = arith.constant 0 : i32
    %43 = arith.cmpi ne, %42, %c0_i32_22 : i32
    scf.if %43 {
      %c0_23 = arith.constant 0 : index
      %c0_24 = arith.constant 0 : index
      %44 = vector.load %arg16[%c0_23, %c0_24] : memref<256x128xf32, #tpu.memory_space<vmem>>, vector<256x128xf32>
      %cst_25 = arith.constant dense<0xFF800000> : vector<256xf32>
      %45 = vector.multi_reduction <maximumf>, %44, %cst_25 [1] : vector<256x128xf32> to vector<256xf32>
      %46 = vector.shape_cast %45 : vector<256xf32> to vector<256x1xf32>
      %c0_26 = arith.constant 0 : index
      %c0_27 = arith.constant 0 : index
      %47 = vector.load %arg8[%c0_26, %c0_27] : memref<256x1xf32, #tpu.memory_space<vmem>>, vector<256x1xf32>
      %48 = arith.addf %46, %47 : vector<256x1xf32>
      %cst_28 = arith.constant 0.000000e+00 : f32
      %49 = vector.broadcast %cst_28 : f32 to vector<256x1xf32>
      %50 = arith.maximumf %48, %49 : vector<256x1xf32>
      %c0_29 = arith.constant 0 : index
      %c0_30 = arith.constant 0 : index
      %51 = vector.load %arg9[%c0_29, %c0_30] : memref<256x256xbf16, #tpu.memory_space<vmem>>, vector<256x256xbf16>
      %52 = arith.truncf %50 : vector<256x1xf32> to vector<256x1xbf16>
      %cst_31 = arith.constant dense<0.000000e+00> : vector<256x1xf32>
      %53 = tpu.matmul %51, %52, %cst_31 {dimension_numbers = #tpu.dot_dimension_numbers<[1], [0], [0], [1], [0, 0, 1, 1], [], []>} : vector<256x256xbf16>, vector<256x1xbf16>, vector<256x1xf32> -> vector<256x1xf32>
      %c0_32 = arith.constant 0 : index
      %c0_33 = arith.constant 0 : index
      %54 = vector.load %arg10[%c0_32, %c0_33] : memref<256x1xf32, #tpu.memory_space<vmem>>, vector<256x1xf32>
      %55 = arith.addf %53, %54 : vector<256x1xf32>
      %cst_34 = arith.constant 0.000000e+00 : f32
      %56 = vector.broadcast %cst_34 : f32 to vector<256x1xf32>
      %57 = arith.maximumf %55, %56 : vector<256x1xf32>
      %c0_35 = arith.constant 0 : index
      %c0_36 = arith.constant 0 : index
      %58 = vector.load %arg11[%c0_35, %c0_36] : memref<128x256xbf16, #tpu.memory_space<vmem>>, vector<128x256xbf16>
      %59 = arith.truncf %57 : vector<256x1xf32> to vector<256x1xbf16>
      %cst_37 = arith.constant dense<0.000000e+00> : vector<128x1xf32>
      %60 = tpu.matmul %58, %59, %cst_37 {dimension_numbers = #tpu.dot_dimension_numbers<[1], [0], [0], [1], [0, 0, 1, 1], [], []>} : vector<128x256xbf16>, vector<256x1xbf16>, vector<128x1xf32> -> vector<128x1xf32>
      %c0_38 = arith.constant 0 : index
      %c0_39 = arith.constant 0 : index
      %61 = vector.load %arg12[%c0_38, %c0_39] : memref<128x1xf32, #tpu.memory_space<vmem>>, vector<128x1xf32>
      %62 = arith.addf %60, %61 : vector<128x1xf32>
      %cst_40 = arith.constant 0.000000e+00 : f32
      %63 = vector.broadcast %cst_40 : f32 to vector<128x1xf32>
      %64 = arith.maximumf %62, %63 : vector<128x1xf32>
      %c0_41 = arith.constant 0 : index
      %c0_42 = arith.constant 0 : index
      %65 = vector.load %arg13[%c0_41, %c0_42] : memref<9x128xbf16, #tpu.memory_space<vmem>>, vector<9x128xbf16>
      %66 = arith.truncf %64 : vector<128x1xf32> to vector<128x1xbf16>
      %cst_43 = arith.constant dense<0.000000e+00> : vector<9x1xf32>
      %67 = tpu.matmul %65, %66, %cst_43 {dimension_numbers = #tpu.dot_dimension_numbers<[1], [0], [0], [1], [0, 0, 1, 1], [], []>} : vector<9x128xbf16>, vector<128x1xbf16>, vector<9x1xf32> -> vector<9x1xf32>
      %c0_44 = arith.constant 0 : index
      %c0_45 = arith.constant 0 : index
      %68 = vector.load %arg14[%c0_44, %c0_45] : memref<9x1xf32, #tpu.memory_space<vmem>>, vector<9x1xf32>
      %69 = arith.addf %67, %68 : vector<9x1xf32>
      %c0_46 = arith.constant 0 : index
      %c0_47 = arith.constant 0 : index
      %c0_48 = arith.constant 0 : index
      %70 = vector.load %arg15[%c0_46, %c0_47, %c0_48] : memref<1x9x1xf32, #tpu.memory_space<vmem>>, vector<1x9x1xf32>
      %71 = vector.shape_cast %70 : vector<1x9x1xf32> to vector<9x1xf32>
      %72 = vector.shape_cast %69 : vector<9x1xf32> to vector<1x9x1xf32>
      tpu.vector_store %arg15[%c0_46, %c0_47, %c0_48], %72 {strides = array<i32>} : memref<1x9x1xf32, #tpu.memory_space<vmem>>, vector<1x9x1xf32>,
    } else {
    }
    return
  }
  func.func @transform_0(%arg0: i32, %arg1: i32) -> (i32, i32, i32) {
    %c0_i32 = arith.constant 0 : i32
    %c0_i32_0 = arith.constant 0 : i32
    return %arg0, %c0_i32, %arg1 : i32, i32, i32
  }
  func.func @transform_1(%arg0: i32, %arg1: i32) -> (i32, i32) {
    %c0_i32 = arith.constant 0 : i32
    %c0_i32_0 = arith.constant 0 : i32
    %c0_i32_1 = arith.constant 0 : i32
    return %c0_i32, %c0_i32_0 : i32, i32
  }
  func.func @transform_2(%arg0: i32, %arg1: i32) -> (i32, i32) {
    %c0_i32 = arith.constant 0 : i32
    %c0_i32_0 = arith.constant 0 : i32
    %c0_i32_1 = arith.constant 0 : i32
    return %c0_i32, %c0_i32_0 : i32, i32
  }
  func.func @transform_3(%arg0: i32, %arg1: i32) -> (i32, i32) {
    %c0_i32 = arith.constant 0 : i32
    %c0_i32_0 = arith.constant 0 : i32
    %c0_i32_1 = arith.constant 0 : i32
    return %c0_i32, %c0_i32_0 : i32, i32
  }
  func.func @transform_4(%arg0: i32, %arg1: i32) -> (i32, i32) {
    %c0_i32 = arith.constant 0 : i32
    %c0_i32_0 = arith.constant 0 : i32
    %c0_i32_1 = arith.constant 0 : i32
    return %c0_i32, %c0_i32_0 : i32, i32
  }
  func.func @transform_5(%arg0: i32, %arg1: i32) -> (i32, i32) {
    %c0_i32 = arith.constant 0 : i32
    %c0_i32_0 = arith.constant 0 : i32
    %c0_i32_1 = arith.constant 0 : i32
    return %c0_i32, %c0_i32_0 : i32, i32
  }
  func.func @transform_6(%arg0: i32, %arg1: i32) -> (i32, i32) {
    %c0_i32 = arith.constant 0 : i32
    %c0_i32_0 = arith.constant 0 : i32
    %c0_i32_1 = arith.constant 0 : i32
    return %c0_i32, %c0_i32_0 : i32, i32
  }
  func.func @transform_7(%arg0: i32, %arg1: i32) -> (i32, i32) {
    %c0_i32 = arith.constant 0 : i32
    %c0_i32_0 = arith.constant 0 : i32
    %c0_i32_1 = arith.constant 0 : i32
    return %c0_i32, %c0_i32_0 : i32, i32
  }
  func.func @transform_8(%arg0: i32, %arg1: i32) -> (i32, i32) {
    %c0_i32 = arith.constant 0 : i32
    %c0_i32_0 = arith.constant 0 : i32
    %c0_i32_1 = arith.constant 0 : i32
    return %c0_i32, %c0_i32_0 : i32, i32
  }
  func.func @transform_9(%arg0: i32, %arg1: i32) -> (i32, i32) {
    %c0_i32 = arith.constant 0 : i32
    %c0_i32_0 = arith.constant 0 : i32
    %c0_i32_1 = arith.constant 0 : i32
    return %c0_i32, %c0_i32_0 : i32, i32
  }
  func.func @transform_10(%arg0: i32, %arg1: i32) -> (i32, i32) {
    %c0_i32 = arith.constant 0 : i32
    %c0_i32_0 = arith.constant 0 : i32
    %c0_i32_1 = arith.constant 0 : i32
    return %c0_i32, %c0_i32_0 : i32, i32
  }
  func.func @transform_11(%arg0: i32, %arg1: i32) -> (i32, i32) {
    %c0_i32 = arith.constant 0 : i32
    %c0_i32_0 = arith.constant 0 : i32
    %c0_i32_1 = arith.constant 0 : i32
    return %c0_i32, %c0_i32_0 : i32, i32
  }
  func.func @transform_12(%arg0: i32, %arg1: i32) -> (i32, i32) {
    %c0_i32 = arith.constant 0 : i32
    %c0_i32_0 = arith.constant 0 : i32
    %c0_i32_1 = arith.constant 0 : i32
    return %c0_i32, %c0_i32_0 : i32, i32
  }
  func.func @transform_13(%arg0: i32, %arg1: i32) -> (i32, i32, i32) {
    %c0_i32 = arith.constant 0 : i32
    %c0_i32_0 = arith.constant 0 : i32
    %c0_i32_1 = arith.constant 0 : i32
    return %arg0, %c0_i32, %c0_i32_0 : i32, i32, i32
  }
}

</mosaic_0001>

<llo_original>
// kernel: squeeze.1
$region0: #{squeeze.1}
  %s0 = inlined_call_operand.vmem [shape: f32[2,9], index: 0, kind: input, shape index: {}]
  %s1 = inlined_call_operand.vmem [shape: f32[2,3,3], index: 1, kind: output, shape index: {}]
  $region1: #{squeeze.1} parent=0
    #allocation0 [shape = 'u8[8192]{0}', space=vmem, size = 0x2000, scoped, tag = 'scoped mem for output reshape']
    #allocation1 [shape = 'u8[4096]{0}', space=vmem, size = 0x1000, scoped, tag = 'scoped mem for input reshape']
    %s3 = sshll.u32 1, 2
    %s4 = ssub.s32 %s3, 1
    %v5 = vld [vmem:[%s0] sm:%s4]
    %6 = vst [vmem:[#allocation1] sm:%s4] %v5
    %v7 = vld [vmem:[#allocation1] sm:$0x3]
    %vm8 = vcmask 23552
    %9 = vst.msk [vmem:[#allocation0] ss:$8 sm:$0x3] %vm8, %v7
    %v10 = vld [vmem:[#allocation1] sm:$0x3]
    %11 = vrot.lane.b32.xlu0 %v10, 125
    %v12 = vpop.permute.xlu0 %11
    %vm13 = vcmask 23552
    %s14 = scalar_lea.vmem [#allocation0], 1
    %15 = vst.msk [vmem:[%s14] ss:$8 sm:$0x3] %vm13, %v12
    %v16 = vld [vmem:[#allocation1] sm:$0x3]
    %17 = vrot.lane.b32.xlu0 %v16, 122
    %v18 = vpop.permute.xlu0 %17
    %vm19 = vcmask 23552
    %s20 = scalar_lea.vmem [#allocation0], 2
    %21 = vst.msk [vmem:[%s20] ss:$8 sm:$0x3] %vm19, %v18
    %s23 = sshll.u32 1, 4
    %s24 = ssub.s32 %s23, 1
    %v26 = vld [vmem:[#allocation0] sm:%s24]
    %s27 = sshll.u32 1, 4
    %s28 = ssub.s32 %s27, 1
    %29 = vst [vmem:[%s1] sm:%s28] %v26
    %s30 = scalar_lea.vmem [#allocation0], 8
    %v31 = vld [vmem:[%s30] sm:%s24]
    %s32 = sshll.u32 1, 4
    %s33 = ssub.s32 %s32, 1
    %s34 = scalar_lea.vmem %s1, 4
    %35 = vst [vmem:[%s34] sm:%s33] %v31

// kernel: _transformation_net_impl.1
$region0: #{_transformation_net_impl.1}
  #allocation0 [shape = 'u32[]', space=smem, size = 0x4, offset = 0x4, fixed_abs, tag = 'smem constant byte address 0x4 - core index']
  #allocation1 [shape = 'u32[144,128]{1,0:T(1,128)}', space=vmem, size = 0x12000, scoped, tag = 'internal scratch']
  #allocation2 [shape = 'f32[256,128]{1,0:T(8,128)}', space=vmem, size = 0x20000, scoped, tag = 'scratch operand']
  %s0 = inlined_call_operand.vmem [shape: bf16[2,8,1024], index: 0, kind: input, shape index: {}]
  %s1 = inlined_call_operand.vmem [shape: bf16[64,8], index: 1, kind: input, shape index: {}]
  %s2 = inlined_call_operand.vmem [shape: f32[64,1], index: 2, kind: input, shape index: {}]
  %s3 = inlined_call_operand.vmem [shape: bf16[128,64], index: 3, kind: input, shape index: {}]
  %s4 = inlined_call_operand.vmem [shape: f32[128,1], index: 4, kind: input, shape index: {}]
  %s5 = inlined_call_operand.vmem [shape: bf16[256,128], index: 5, kind: input, shape index: {}]
  %s6 = inlined_call_operand.vmem [shape: f32[256,1], index: 6, kind: input, shape index: {}]
  %s7 = inlined_call_operand.vmem [shape: bf16[256,256], index: 7, kind: input, shape index: {}]
  %s8 = inlined_call_operand.vmem [shape: f32[256,1], index: 8, kind: input, shape index: {}]
  %s9 = inlined_call_operand.vmem [shape: bf16[128,256], index: 9, kind: input, shape index: {}]
  %s10 = inlined_call_operand.vmem [shape: f32[128,1], index: 10, kind: input, shape index: {}]
  %s11 = inlined_call_operand.vmem [shape: bf16[9,128], index: 11, kind: input, shape index: {}]
  %s12 = inlined_call_operand.vmem [shape: f32[9,1], index: 12, kind: input, shape index: {}]
  %s13 = inlined_call_operand.vmem [shape: f32[2,9,1], index: 13, kind: output, shape index: {}]
  %s14 = sld [smem:[#allocation0]]
  $region93: #{_transformation_net_impl.1} parent=0
    _
  %s16 = ssub.s32 1, %s14
  %s17 = scalar_select 0, %s16, %s14
  loop: start=0, step=1, limit=4
  $region2: #{_transformation_net_impl.1} parent=0 // loop_pre_header
    _
  $region3: #{_transformation_net_impl.1} parent=0 // loop_header
    %s19 = sphi 0, %s23
    %p20 = scmp.ge.s32.totalorder %s19, 4
    %s26 = sphi 0, %s38
    %s27 = sphi 0, %s34
    %s28 = sphi 0, %s26
    %s29 = sphi 0, %s27
    %s30 = sphi 0, %s28
    %s31 = sphi 0, %s29
    %s43 = sphi 0, %s45
    %s46 = sphi 0, %s43
    %s47 = sphi 0, %s46
    %s63 = sphi 0, %s47
    %s67 = sphi 0, %s67
    %s69 = sphi 0, %s67
    %s70 = sphi 0, %s69
    %s84 = sphi 0, %s70
    %s88 = sphi 0, %s88
    %s90 = sphi 0, %s88
    %s91 = sphi 0, %s90
    %s105 = sphi 0, %s91
    %s109 = sphi 0, %s109
    %s111 = sphi 0, %s109
    %s112 = sphi 0, %s111
    %s126 = sphi 0, %s112
    %s130 = sphi 0, %s130
    %s132 = sphi 0, %s130
    %s133 = sphi 0, %s132
    %s147 = sphi 0, %s133
    %s151 = sphi 0, %s151
    %s153 = sphi 0, %s151
    %s154 = sphi 0, %s153
    %s168 = sphi 0, %s154
    %s172 = sphi 0, %s172
    %s174 = sphi 0, %s172
    %s175 = sphi 0, %s174
    %s189 = sphi 0, %s175
    %s193 = sphi 0, %s193
    %s195 = sphi 0, %s193
    %s196 = sphi 0, %s195
    %s210 = sphi 0, %s196
    %s214 = sphi 0, %s214
    %s216 = sphi 0, %s214
    %s217 = sphi 0, %s216
    %s231 = sphi 0, %s217
    %s235 = sphi 0, %s235
    %s237 = sphi 0, %s235
    %s238 = sphi 0, %s237
    %s252 = sphi 0, %s238
    %s256 = sphi 0, %s256
    %s258 = sphi 0, %s256
    %s259 = sphi 0, %s258
    %s273 = sphi 0, %s259
    %s277 = sphi 0, %s277
    %s279 = sphi 0, %s277
    %s280 = sphi 0, %s279
    %s294 = sphi 0, %s280
    %s298 = sphi 0, %s298
    %s300 = sphi 0, %s298
    %s301 = sphi 0, %s300
    %s315 = sphi 0, %s301
    %s321 = sphi 0, %s323
    %s324 = sphi 0, %s321
    %s325 = sphi 0, %s324
    %s341 = sphi 0, %s325
  $region4: #{_transformation_net_impl.1} parent=0 // loop_header_branch
    %22 = sbr.rel (%p20) target = $region8
  $region5: #{_transformation_net_impl.1} parent=0 // loop_body
    %s24 = ssub.s32 %s19, 1
    %s25 = ssub.s32 %s19, 2
    %s32 = sadd.s32 1, %s27
    %p33 = scmp.ge.s32.totalorder %s32, 1
    %s34 = scalar_select %p33, 0, %s32
    %s35 = sadd.s32 1, %s26
    %s36 = scalar_select %p33, %s35, %s26
    %p37 = scmp.ge.s32.totalorder %s36, 2
    %s38 = scalar_select %p37, 0, %s36
    %s39 = ssub.s32 %s26, %s38
    %s40 = ssub.s32 %s27, %s34
    %s41 = sor.u32 %s39, %s40
    %p42 = scmp.eq.s32.totalorder %s41, 0
    %s44 = sadd.s32 %s43, 1
    %s45 = scalar_select %p42, %s43, %s44
    %p48 = pneg %p42
    %p49 = scmp.eq.s32.totalorder %s19, 1
    %p50 = por %p48, %p49
    %p51 = scmp.ne.s32.totalorder %s43, %s46
    %p52 = scmp.eq.s32.totalorder %s19, 0
    %p53 = por %p51, %p52
    %p54 = scmp.ne.s32.totalorder %s43, %s46
    %p55 = scmp.eq.s32.totalorder %s24, 1
    %p56 = por %p54, %p55
    %p57 = scmp.ne.s32.totalorder %s46, %s47
    %p58 = scmp.eq.s32.totalorder %s24, 0
    %p59 = por %p57, %p58
    %p60 = scmp.ne.s32.totalorder %s46, %s47
    %p61 = scmp.eq.s32.totalorder %s25, 1
    %p62 = por %p60, %p61
    %p64 = scmp.ne.s32.totalorder %s47, %s63
    %p65 = scmp.eq.s32.totalorder %s25, 0
    %p66 = por %p64, %p65
    %s68 = sadd.s32 %s67, 1
    %p71 = scmp.eq.s32.totalorder %s19, 1
    %p72 = scmp.ne.s32.totalorder %s67, %s69
    %p73 = scmp.eq.s32.totalorder %s19, 0
    %p74 = por %p72, %p73
    %p75 = scmp.ne.s32.totalorder %s67, %s69
    %p76 = scmp.eq.s32.totalorder %s24, 1
    %p77 = por %p75, %p76
    %p78 = scmp.ne.s32.totalorder %s69, %s70
    %p79 = scmp.eq.s32.totalorder %s24, 0
    %p80 = por %p78, %p79
    %p81 = scmp.ne.s32.totalorder %s69, %s70
    %p82 = scmp.eq.s32.totalorder %s25, 1
    %p83 = por %p81, %p82
    %p85 = scmp.ne.s32.totalorder %s70, %s84
    %p86 = scmp.eq.s32.totalorder %s25, 0
    %p87 = por %p85, %p86
    %s89 = sadd.s32 %s88, 1
    %p92 = scmp.eq.s32.totalorder %s19, 1
    %p93 = scmp.ne.s32.totalorder %s88, %s90
    %p94 = scmp.eq.s32.totalorder %s19, 0
    %p95 = por %p93, %p94
    %p96 = scmp.ne.s32.totalorder %s88, %s90
    %p97 = scmp.eq.s32.totalorder %s24, 1
    %p98 = por %p96, %p97
    %p99 = scmp.ne.s32.totalorder %s90, %s91
    %p100 = scmp.eq.s32.totalorder %s24, 0
    %p101 = por %p99, %p100
    %p102 = scmp.ne.s32.totalorder %s90, %s91
    %p103 = scmp.eq.s32.totalorder %s25, 1
    %p104 = por %p102, %p103
    %p106 = scmp.ne.s32.totalorder %s91, %s105
    %p107 = scmp.eq.s32.totalorder %s25, 0
    %p108 = por %p106, %p107
    %s110 = sadd.s32 %s109, 1
    %p113 = scmp.eq.s32.totalorder %s19, 1
    %p114 = scmp.ne.s32.totalorder %s109, %s111
    %p115 = scmp.eq.s32.totalorder %s19, 0
    %p116 = por %p114, %p115
    %p117 = scmp.ne.s32.totalorder %s109, %s111
    %p118 = scmp.eq.s32.totalorder %s24, 1
    %p119 = por %p117, %p118
    %p120 = scmp.ne.s32.totalorder %s111, %s112
    %p121 = scmp.eq.s32.totalorder %s24, 0
    %p122 = por %p120, %p121
    %p123 = scmp.ne.s32.totalorder %s111, %s112
    %p124 = scmp.eq.s32.totalorder %s25, 1
    %p125 = por %p123, %p124
    %p127 = scmp.ne.s32.totalorder %s112, %s126
    %p128 = scmp.eq.s32.totalorder %s25, 0
    %p129 = por %p127, %p128
    %s131 = sadd.s32 %s130, 1
    %p134 = scmp.eq.s32.totalorder %s19, 1
    %p135 = scmp.ne.s32.totalorder %s130, %s132
    %p136 = scmp.eq.s32.totalorder %s19, 0
    %p137 = por %p135, %p136
    %p138 = scmp.ne.s32.totalorder %s130, %s132
    %p139 = scmp.eq.s32.totalorder %s24, 1
    %p140 = por %p138, %p139
    %p141 = scmp.ne.s32.totalorder %s132, %s133
    %p142 = scmp.eq.s32.totalorder %s24, 0
    %p143 = por %p141, %p142
    %p144 = scmp.ne.s32.totalorder %s132, %s133
    %p145 = scmp.eq.s32.totalorder %s25, 1
    %p146 = por %p144, %p145
    %p148 = scmp.ne.s32.totalorder %s133, %s147
    %p149 = scmp.eq.s32.totalorder %s25, 0
    %p150 = por %p148, %p149
    %s152 = sadd.s32 %s151, 1
    %p155 = scmp.eq.s32.totalorder %s19, 1
    %p156 = scmp.ne.s32.totalorder %s151, %s153
    %p157 = scmp.eq.s32.totalorder %s19, 0
    %p158 = por %p156, %p157
    %p159 = scmp.ne.s32.totalorder %s151, %s153
    %p160 = scmp.eq.s32.totalorder %s24, 1
    %p161 = por %p159, %p160
    %p162 = scmp.ne.s32.totalorder %s153, %s154
    %p163 = scmp.eq.s32.totalorder %s24, 0
    %p164 = por %p162, %p163
    %p165 = scmp.ne.s32.totalorder %s153, %s154
    %p166 = scmp.eq.s32.totalorder %s25, 1
    %p167 = por %p165, %p166
    %p169 = scmp.ne.s32.totalorder %s154, %s168
    %p170 = scmp.eq.s32.totalorder %s25, 0
    %p171 = por %p169, %p170
    %s173 = sadd.s32 %s172, 1
    %p176 = scmp.eq.s32.totalorder %s19, 1
    %p177 = scmp.ne.s32.totalorder %s172, %s174
    %p178 = scmp.eq.s32.totalorder %s19, 0
    %p179 = por %p177, %p178
    %p180 = scmp.ne.s32.totalorder %s172, %s174
    %p181 = scmp.eq.s32.totalorder %s24, 1
    %p182 = por %p180, %p181
    %p183 = scmp.ne.s32.totalorder %s174, %s175
    %p184 = scmp.eq.s32.totalorder %s24, 0
    %p185 = por %p183, %p184
    %p186 = scmp.ne.s32.totalorder %s174, %s175
    %p187 = scmp.eq.s32.totalorder %s25, 1
    %p188 = por %p186, %p187
    %p190 = scmp.ne.s32.totalorder %s175, %s189
    %p191 = scmp.eq.s32.totalorder %s25, 0
    %p192 = por %p190, %p191
    %s194 = sadd.s32 %s193, 1
    %p197 = scmp.eq.s32.totalorder %s19, 1
    %p198 = scmp.ne.s32.totalorder %s193, %s195
    %p199 = scmp.eq.s32.totalorder %s19, 0
    %p200 = por %p198, %p199
    %p201 = scmp.ne.s32.totalorder %s193, %s195
    %p202 = scmp.eq.s32.totalorder %s24, 1
    %p203 = por %p201, %p202
    %p204 = scmp.ne.s32.totalorder %s195, %s196
    %p205 = scmp.eq.s32.totalorder %s24, 0
    %p206 = por %p204, %p205
    %p207 = scmp.ne.s32.totalorder %s195, %s196
    %p208 = scmp.eq.s32.totalorder %s25, 1
    %p209 = por %p207, %p208
    %p211 = scmp.ne.s32.totalorder %s196, %s210
    %p212 = scmp.eq.s32.totalorder %s25, 0
    %p213 = por %p211, %p212
    %s215 = sadd.s32 %s214, 1
    %p218 = scmp.eq.s32.totalorder %s19, 1
    %p219 = scmp.ne.s32.totalorder %s214, %s216
    %p220 = scmp.eq.s32.totalorder %s19, 0
    %p221 = por %p219, %p220
    %p222 = scmp.ne.s32.totalorder %s214, %s216
    %p223 = scmp.eq.s32.totalorder %s24, 1
    %p224 = por %p222, %p223
    %p225 = scmp.ne.s32.totalorder %s216, %s217
    %p226 = scmp.eq.s32.totalorder %s24, 0
    %p227 = por %p225, %p226
    %p228 = scmp.ne.s32.totalorder %s216, %s217
    %p229 = scmp.eq.s32.totalorder %s25, 1
    %p230 = por %p228, %p229
    %p232 = scmp.ne.s32.totalorder %s217, %s231
    %p233 = scmp.eq.s32.totalorder %s25, 0
    %p234 = por %p232, %p233
    %s236 = sadd.s32 %s235, 1
    %p239 = scmp.eq.s32.totalorder %s19, 1
    %p240 = scmp.ne.s32.totalorder %s235, %s237
    %p241 = scmp.eq.s32.totalorder %s19, 0
    %p242 = por %p240, %p241
    %p243 = scmp.ne.s32.totalorder %s235, %s237
    %p244 = scmp.eq.s32.totalorder %s24, 1
    %p245 = por %p243, %p244
    %p246 = scmp.ne.s32.totalorder %s237, %s238
    %p247 = scmp.eq.s32.totalorder %s24, 0
    %p248 = por %p246, %p247
    %p249 = scmp.ne.s32.totalorder %s237, %s238
    %p250 = scmp.eq.s32.totalorder %s25, 1
    %p251 = por %p249, %p250
    %p253 = scmp.ne.s32.totalorder %s238, %s252
    %p254 = scmp.eq.s32.totalorder %s25, 0
    %p255 = por %p253, %p254
    %s257 = sadd.s32 %s256, 1
    %p260 = scmp.eq.s32.totalorder %s19, 1
    %p261 = scmp.ne.s32.totalorder %s256, %s258
    %p262 = scmp.eq.s32.totalorder %s19, 0
    %p263 = por %p261, %p262
    %p264 = scmp.ne.s32.totalorder %s256, %s258
    %p265 = scmp.eq.s32.totalorder %s24, 1
    %p266 = por %p264, %p265
    %p267 = scmp.ne.s32.totalorder %s258, %s259
    %p268 = scmp.eq.s32.totalorder %s24, 0
    %p269 = por %p267, %p268
    %p270 = scmp.ne.s32.totalorder %s258, %s259
    %p271 = scmp.eq.s32.totalorder %s25, 1
    %p272 = por %p270, %p271
    %p274 = scmp.ne.s32.totalorder %s259, %s273
    %p275 = scmp.eq.s32.totalorder %s25, 0
    %p276 = por %p274, %p275
    %s278 = sadd.s32 %s277, 1
    %p281 = scmp.eq.s32.totalorder %s19, 1
    %p282 = scmp.ne.s32.totalorder %s277, %s279
    %p283 = scmp.eq.s32.totalorder %s19, 0
    %p284 = por %p282, %p283
    %p285 = scmp.ne.s32.totalorder %s277, %s279
    %p286 = scmp.eq.s32.totalorder %s24, 1
    %p287 = por %p285, %p286
    %p288 = scmp.ne.s32.totalorder %s279, %s280
    %p289 = scmp.eq.s32.totalorder %s24, 0
    %p290 = por %p288, %p289
    %p291 = scmp.ne.s32.totalorder %s279, %s280
    %p292 = scmp.eq.s32.totalorder %s25, 1
    %p293 = por %p291, %p292
    %p295 = scmp.ne.s32.totalorder %s280, %s294
    %p296 = scmp.eq.s32.totalorder %s25, 0
    %p297 = por %p295, %p296
    %s299 = sadd.s32 %s298, 1
    %p302 = scmp.eq.s32.totalorder %s19, 1
    %p303 = scmp.ne.s32.totalorder %s298, %s300
    %p304 = scmp.eq.s32.totalorder %s19, 0
    %p305 = por %p303, %p304
    %p306 = scmp.ne.s32.totalorder %s298, %s300
    %p307 = scmp.eq.s32.totalorder %s24, 1
    %p308 = por %p306, %p307
    %p309 = scmp.ne.s32.totalorder %s300, %s301
    %p310 = scmp.eq.s32.totalorder %s24, 0
    %p311 = por %p309, %p310
    %p312 = scmp.ne.s32.totalorder %s300, %s301
    %p313 = scmp.eq.s32.totalorder %s25, 1
    %p314 = por %p312, %p313
    %p316 = scmp.ne.s32.totalorder %s301, %s315
    %p317 = scmp.eq.s32.totalorder %s25, 0
    %p318 = por %p316, %p317
    %s319 = ssub.s32 %s26, %s38
    %p320 = scmp.eq.s32.totalorder %s319, 0
    %s322 = sadd.s32 %s321, 1
    %s323 = scalar_select %p320, %s321, %s322
    %p326 = pneg %p320
    %p327 = scmp.eq.s32.totalorder %s19, 1
    %p328 = por %p326, %p327
    %p329 = scmp.ne.s32.totalorder %s321, %s324
    %p330 = scmp.eq.s32.totalorder %s19, 0
    %p331 = por %p329, %p330
    %p332 = scmp.ne.s32.totalorder %s321, %s324
    %p333 = scmp.eq.s32.totalorder %s24, 1
    %p334 = por %p332, %p333
    %p335 = scmp.ne.s32.totalorder %s324, %s325
    %p336 = scmp.eq.s32.totalorder %s24, 0
    %p337 = por %p335, %p336
    %p338 = scmp.ne.s32.totalorder %s324, %s325
    %p339 = scmp.eq.s32.totalorder %s25, 1
    %p340 = por %p338, %p339
    %p342 = scmp.ne.s32.totalorder %s325, %s341
    %p343 = scmp.eq.s32.totalorder %s25, 0
    %p344 = por %p342, %p343
    %p345 = scmp.le.s32.totalorder 1, %s19
    %p346 = scmp.lt.s32.totalorder %s19, 3
    %p347 = pnand %p345, %p346
    %p348 = pneg %p347
    // Predicated region
    $region9: #{_transformation_net_impl.1} parent=5 // pred_check
      _
    $region10: #{_transformation_net_impl.1} parent=5 // pred_check_branch
      %350 = sbr.rel (%p347) target = $region12
    $region11: #{_transformation_net_impl.1} parent=5 // pred_region
      %s351 = ssub.s32 %s19, 1
      // Predicated region
      $region13: #{_transformation_net_impl.1} parent=11 // pred_check
        %p352 = pneg %p80
      $region14: #{_transformation_net_impl.1} parent=11 // pred_check_branch
        %354 = sbr.rel (%p352) target = $region16
      $region15: #{_transformation_net_impl.1} parent=11 // pred_region
        _
      $region16: #{_transformation_net_impl.1} parent=11 // pred_fallthru
        _
      // Predicated region
      $region17: #{_transformation_net_impl.1} parent=11 // pred_check
        %p355 = pneg %p101
      $region18: #{_transformation_net_impl.1} parent=11 // pred_check_branch
        %357 = sbr.rel (%p355) target = $region20
      $region19: #{_transformation_net_impl.1} parent=11 // pred_region
        _
      $region20: #{_transformation_net_impl.1} parent=11 // pred_fallthru
        _
      // Predicated region
      $region21: #{_transformation_net_impl.1} parent=11 // pred_check
        %p358 = pneg %p122
      $region22: #{_transformation_net_impl.1} parent=11 // pred_check_branch
        %360 = sbr.rel (%p358) target = $region24
      $region23: #{_transformation_net_impl.1} parent=11 // pred_region
        _
      $region24: #{_transformation_net_impl.1} parent=11 // pred_fallthru
        _
      // Predicated region
      $region25: #{_transformation_net_impl.1} parent=11 // pred_check
        %p361 = pneg %p143
      $region26: #{_transformation_net_impl.1} parent=11 // pred_check_branch
        %363 = sbr.rel (%p361) target = $region28
      $region27: #{_transformation_net_impl.1} parent=11 // pred_region
        _
      $region28: #{_transformation_net_impl.1} parent=11 // pred_fallthru
        _
      // Predicated region
      $region29: #{_transformation_net_impl.1} parent=11 // pred_check
        %p364 = pneg %p164
      $region30: #{_transformation_net_impl.1} parent=11 // pred_check_branch
        %366 = sbr.rel (%p364) target = $region32
      $region31: #{_transformation_net_impl.1} parent=11 // pred_region
        _
      $region32: #{_transformation_net_impl.1} parent=11 // pred_fallthru
        _
      // Predicated region
      $region33: #{_transformation_net_impl.1} parent=11 // pred_check
        %p367 = pneg %p185
      $region34: #{_transformation_net_impl.1} parent=11 // pred_check_branch
        %369 = sbr.rel (%p367) target = $region36
      $region35: #{_transformation_net_impl.1} parent=11 // pred_region
        _
      $region36: #{_transformation_net_impl.1} parent=11 // pred_fallthru
        _
      // Predicated region
      $region37: #{_transformation_net_impl.1} parent=11 // pred_check
        %p370 = pneg %p206
      $region38: #{_transformation_net_impl.1} parent=11 // pred_check_branch
        %372 = sbr.rel (%p370) target = $region40
      $region39: #{_transformation_net_impl.1} parent=11 // pred_region
        _
      $region40: #{_transformation_net_impl.1} parent=11 // pred_fallthru
        _
      // Predicated region
      $region41: #{_transformation_net_impl.1} parent=11 // pred_check
        %p373 = pneg %p227
      $region42: #{_transformation_net_impl.1} parent=11 // pred_check_branch
        %375 = sbr.rel (%p373) target = $region44
      $region43: #{_transformation_net_impl.1} parent=11 // pred_region
        _
      $region44: #{_transformation_net_impl.1} parent=11 // pred_fallthru
        _
      // Predicated region
      $region45: #{_transformation_net_impl.1} parent=11 // pred_check
        %p376 = pneg %p248
      $region46: #{_transformation_net_impl.1} parent=11 // pred_check_branch
        %378 = sbr.rel (%p376) target = $region48
      $region47: #{_transformation_net_impl.1} parent=11 // pred_region
        _
      $region48: #{_transformation_net_impl.1} parent=11 // pred_fallthru
        _
      // Predicated region
      $region49: #{_transformation_net_impl.1} parent=11 // pred_check
        %p379 = pneg %p269
      $region50: #{_transformation_net_impl.1} parent=11 // pred_check_branch
        %381 = sbr.rel (%p379) target = $region52
      $region51: #{_transformation_net_impl.1} parent=11 // pred_region
        _
      $region52: #{_transformation_net_impl.1} parent=11 // pred_fallthru
        _
      // Predicated region
      $region53: #{_transformation_net_impl.1} parent=11 // pred_check
        %p382 = pneg %p290
      $region54: #{_transformation_net_impl.1} parent=11 // pred_check_branch
        %384 = sbr.rel (%p382) target = $region56
      $region55: #{_transformation_net_impl.1} parent=11 // pred_region
        _
      $region56: #{_transformation_net_impl.1} parent=11 // pred_fallthru
        _
      // Predicated region
      $region57: #{_transformation_net_impl.1} parent=11 // pred_check
        %p385 = pneg %p311
      $region58: #{_transformation_net_impl.1} parent=11 // pred_check_branch
        %387 = sbr.rel (%p385) target = $region60
      $region59: #{_transformation_net_impl.1} parent=11 // pred_region
        _
      $region60: #{_transformation_net_impl.1} parent=11 // pred_fallthru
        _
    $region12: #{_transformation_net_impl.1} parent=5 // pred_fallthru
      _
    %p388 = scmp.lt.s32.totalorder %s19, 2
    // Predicated region
    $region61: #{_transformation_net_impl.1} parent=5 // pred_check
      %p389 = pneg %p388
    $region62: #{_transformation_net_impl.1} parent=5 // pred_check_branch
      %391 = sbr.rel (%p389) target = $region64
    $region63: #{_transformation_net_impl.1} parent=5 // pred_region
      // Predicated region
      $region65: #{_transformation_net_impl.1} parent=63 // pred_check
        %p392 = pneg %p53
      $region66: #{_transformation_net_impl.1} parent=63 // pred_check_branch
        %394 = sbr.rel (%p392) target = $region68
      $region67: #{_transformation_net_impl.1} parent=63 // pred_region
        %s395 = smul.u32 8, %s27
        %p396 = scmp.lt.s32.totalorder %s26, 1
        %s397 = scalar_select %p396, %s26, 1
        %p398 = scmp.lt.s32.totalorder %s395, 7
        %s399 = scalar_select %p398, %s395, 7
        %s400 = smul.addr %s397, 8
        %s401 = sadd.s32 %s399, %s400
        %s402 = smul.addr %s401, 4
        %s403 = scalar_lea.vmem %s0, %s402
        %s404 = smul.u32 8, %s27
      $region68: #{_transformation_net_impl.1} parent=63 // pred_fallthru
        _
    $region64: #{_transformation_net_impl.1} parent=5 // pred_fallthru
      _
    %p405 = scmp.le.s32.totalorder 1, %s19
    %p406 = scmp.lt.s32.totalorder %s19, 3
    %p407 = pnand %p405, %p406
    %p408 = pneg %p407
    // Predicated region
    $region69: #{_transformation_net_impl.1} parent=5 // pred_check
      _
    $region70: #{_transformation_net_impl.1} parent=5 // pred_check_branch
      %410 = sbr.rel (%p407) target = $region72
    $region71: #{_transformation_net_impl.1} parent=5 // pred_region
      %s411 = ssub.s32 %s19, 1
      %s412 = smul.u32 8, %s29
      %p413 = scmp.lt.s32.totalorder %s28, 1
      %s414 = scalar_select %p413, %s28, 1
      %p415 = scmp.lt.s32.totalorder %s412, 7
      %s416 = scalar_select %p415, %s412, 7
      %s417 = smul.addr %s414, 8
      %s418 = sadd.s32 %s416, %s417
      %s419 = smul.addr %s418, 4
      %s420 = scalar_lea.vmem %s0, %s419
      %p421 = pneg %p59
      %p422 = pneg %p56
      %p423 = pneg %p80
      %p424 = pneg %p77
      %p425 = pneg %p101
      %p426 = pneg %p98
      %p427 = pneg %p122
      %p428 = pneg %p119
      %p429 = pneg %p143
      %p430 = pneg %p140
      %p431 = pneg %p164
      %p432 = pneg %p161
      %p433 = pneg %p185
      %p434 = pneg %p182
      %p435 = pneg %p206
      %p436 = pneg %p203
      %p437 = pneg %p227
      %p438 = pneg %p224
      %p439 = pneg %p248
      %p440 = pneg %p245
      %p441 = pneg %p269
      %p442 = pneg %p266
      %p443 = pneg %p290
      %p444 = pneg %p287
      %p445 = pneg %p311
      %p446 = pneg %p308
      %p447 = pneg %p337
      %p448 = pneg %p334
      %p449 = scmp.lt.s32.totalorder %s28, 1
      %s450 = scalar_select %p449, %s28, 1
      %s451 = smul.addr %s450, 2
      %s452 = smul.addr %s451, 8
      %s453 = scalar_lea.vmem %s13, %s452
      %s454 = smul.u32 8, %s29
      %p455 = scmp.lt.s32.totalorder %s28, 1
      %s456 = scalar_select %p455, %s28, 1
      %p457 = scmp.lt.s32.totalorder %s454, 7
      %s458 = scalar_select %p457, %s454, 7
      %s459 = smul.addr %s456, 8
      %s460 = sadd.s32 %s458, %s459
      %s461 = smul.addr %s460, 4
      %s462 = scalar_lea.vmem %s0, %s461
      %s463 = smul.u32 8, %s29
      %p464 = scmp.lt.s32.totalorder %s28, 1
      %s465 = scalar_select %p464, %s28, 1
      %s466 = smul.addr %s465, 2
      %s467 = smul.addr %s466, 8
      %s468 = scalar_lea.vmem %s13, %s467
      %v470 = vld [vmem:[%s462] sm:$0xff]
      %v471 = vld [vmem:[%s462 + $0x8] sm:$0xff]
      %v472 = vld [vmem:[%s462 + $0x10] sm:$0xff]
      %v473 = vld [vmem:[%s462 + $0x18] sm:$0xff]
      %v474 = vld [vmem:[%s1] sm:$0xf]
      %v475 = vld [vmem:[%s1 + $0x4] sm:$0xf]
      %v476 = vld [vmem:[%s1 + $0x8] sm:$0xf]
      %v477 = vld [vmem:[%s1 + $0xc] sm:$0xf]
      %v478 = vld [vmem:[%s1 + $0x10] sm:$0xf]
      %v479 = vld [vmem:[%s1 + $0x14] sm:$0xf]
      %v480 = vld [vmem:[%s1 + $0x18] sm:$0xf]
      %v481 = vld [vmem:[%s1 + $0x1c] sm:$0xf]
      %v482 = vld [vmem:[%s2] sm:$0xff]
      %v483 = vld [vmem:[%s2 + $0x8] sm:$0xff]
      %v484 = vld [vmem:[%s2 + $0x10] sm:$0xff]
      %v485 = vld [vmem:[%s2 + $0x18] sm:$0xff]
      %v486 = vld [vmem:[%s2 + $0x20] sm:$0xff]
      %v487 = vld [vmem:[%s2 + $0x28] sm:$0xff]
      %v488 = vld [vmem:[%s2 + $0x30] sm:$0xff]
      %v489 = vld [vmem:[%s2 + $0x38] sm:$0xff]
      %491 = vset.pattern.permute.xlu0 0
      %492 = vperm.xlu0 %491, %v482
      %v493 = vpop.permute.xlu0 %492
      %496 = vset.pattern.permute.xlu0 0
      %497 = vperm.xlu0 %496, %v483
      %v498 = vpop.permute.xlu0 %497
      %501 = vset.pattern.permute.xlu0 0
      %502 = vperm.xlu0 %501, %v484
      %v503 = vpop.permute.xlu0 %502
      %506 = vset.pattern.permute.xlu0 0
      %507 = vperm.xlu0 %506, %v485
      %v508 = vpop.permute.xlu0 %507
      %511 = vset.pattern.permute.xlu0 0
      %512 = vperm.xlu0 %511, %v486
      %v513 = vpop.permute.xlu0 %512
      %516 = vset.pattern.permute.xlu0 0
      %517 = vperm.xlu0 %516, %v487
      %v518 = vpop.permute.xlu0 %517
      %521 = vset.pattern.permute.xlu0 0
      %522 = vperm.xlu0 %521, %v488
      %v523 = vpop.permute.xlu0 %522
      %526 = vset.pattern.permute.xlu0 0
      %527 = vperm.xlu0 %526, %v489
      %v528 = vpop.permute.xlu0 %527
      %v538 = vunpack.c.l.b16 %v474
      %v539 = vunpack.c.l.b16 %v475
      %v540 = vunpack.c.l.b16 %v476
      %v541 = vunpack.c.l.b16 %v477
      %v542 = vunpack.c.l.b16 %v478
      %v543 = vunpack.c.l.b16 %v479
      %v544 = vunpack.c.l.b16 %v480
      %v545 = vunpack.c.l.b16 %v481
      %v546 = vpack.c.b16 %v539, %v538
      %v547 = vpack.c.b16 %v541, %v540
      %v548 = vpack.c.b16 %v543, %v542
      %v549 = vpack.c.b16 %v545, %v544
      %v554 = vunpack.c.l.b16 %v470
      %v555 = vunpack.c.h.b16 %v470
      %v556 = vunpack.c.l.b16 %v471
      %v557 = vunpack.c.h.b16 %v471
      %v558 = vunpack.c.l.b16 %v472
      %v559 = vunpack.c.h.b16 %v472
      %v560 = vunpack.c.l.b16 %v473
      %v561 = vunpack.c.h.b16 %v473
      %v562 = vpack.c.b16 %v554, %v554
      %v563 = vpack.c.b16 %v555, %v555
      %v564 = vpack.c.b16 %v556, %v556
      %v565 = vpack.c.b16 %v557, %v557
      %v566 = vpack.c.b16 %v558, %v558
      %v567 = vpack.c.b16 %v559, %v559
      %v568 = vpack.c.b16 %v560, %v560
      %v569 = vpack.c.b16 %v561, %v561
      %vm570 = vcmask 64512
      %v572 = vsel %vm570, %v546, 0
      %v575 = vsel %vm570, %v547, 0
      %v578 = vsel %vm570, %v548, 0
      %v581 = vsel %vm570, %v549, 0
      %vm583 = vcmask 1043456
      %v585 = vsel %vm583, %v562, 0
      %v588 = vsel %vm583, %v563, 0
      %v591 = vsel %vm583, %v564, 0
      %v594 = vsel %vm583, %v565, 0
      %v597 = vsel %vm583, %v566, 0
      %v600 = vsel %vm583, %v567, 0
      %v603 = vsel %vm583, %v568, 0
      %v606 = vsel %vm583, %v569, 0
      %608 = vmatprep.subr.bf16.mxu0 0
      %609 = vmatpush1.bf16.msra.mxu0 0
      %610 = vmatprep.subr.bf16.mxu0 0
      %611 = vmatpush1.bf16.msra.mxu0 0
      %612 = vmatprep.subr.bf16.mxu0 0
      %613 = vmatpush1.bf16.msra.mxu0 0
      %614 = vmatprep.subr.bf16.mxu0 0
      %615 = vmatpush1.bf16.msra.mxu0 0
      %616 = vmatprep.subr.bf16.mxu0 0
      %617 = vmatpush1.bf16.msra.mxu0 0
      %618 = vmatprep.subr.bf16.mxu0 0
      %619 = vmatpush1.bf16.msra.mxu0 0
      %620 = vmatprep.subr.bf16.mxu0 0
      %621 = vmatpush1.bf16.msra.mxu0 0
      %622 = vmatprep.subr.bf16.mxu0 %v588
      %623 = vmatpush1.bf16.msra.mxu0 %v585
      %624 = vmatprep.subr.bf16.mxu0 0
      %625 = vmatpush2.bf16.msra.mxu0 0
      %626 = vmatprep.subr.bf16.mxu0 0
      %627 = vmatpush2.bf16.msra.mxu0 0
      %628 = vmatprep.subr.bf16.mxu0 0
      %629 = vmatpush2.bf16.msra.mxu0 0
      %630 = vmatprep.subr.bf16.mxu0 0
      %631 = vmatpush2.bf16.msra.mxu0 0
      %632 = vmatprep.subr.bf16.mxu0 0
      %633 = vmatpush2.bf16.msra.mxu0 0
      %634 = vmatprep.subr.bf16.mxu0 0
      %635 = vmatpush2.bf16.msra.mxu0 0
      %636 = vmatprep.subr.bf16.mxu0 0
      %637 = vmatpush2.bf16.msra.mxu0 0
      %638 = vmatprep.subr.bf16.mxu0 0
      %639 = vmatpush2.bf16.msra.mxu0 0
      %640 = vmatprep.mubr.bf16.mxu0 0
      %641 = vmatmul.mubr.bf16.gmra.mxu0 %v572
      %v642 = vpop.f32.mrf.mxu0
      %v643 = vadd.f32 %v493, %v642
      %v644 = vpop.f32.mrf.mxu0
      %v645 = vadd.f32 %v493, %v644
      %v646 = vpop.f32.mrf.mxu0
      %v647 = vadd.f32 %v498, %v646
      %v648 = vpop.f32.mrf.mxu0
      %v649 = vadd.f32 %v498, %v648
      %650 = vmatprep.mubr.bf16.mxu0 0
      %651 = vmatmul.mubr.bf16.gmra.mxu0 %v575
      %v652 = vpop.f32.mrf.mxu0
      %v653 = vadd.f32 %v503, %v652
      %v654 = vpop.f32.mrf.mxu0
      %v655 = vadd.f32 %v503, %v654
      %v656 = vpop.f32.mrf.mxu0
      %v657 = vadd.f32 %v508, %v656
      %v658 = vpop.f32.mrf.mxu0
      %v659 = vadd.f32 %v508, %v658
      %660 = vmatprep.mubr.bf16.mxu0 0
      %661 = vmatmul.mubr.bf16.gmra.mxu0 %v578
      %v662 = vpop.f32.mrf.mxu0
      %v663 = vadd.f32 %v513, %v662
      %v664 = vpop.f32.mrf.mxu0
      %v665 = vadd.f32 %v513, %v664
      %v666 = vpop.f32.mrf.mxu0
      %v667 = vadd.f32 %v518, %v666
      %v668 = vpop.f32.mrf.mxu0
      %v669 = vadd.f32 %v518, %v668
      %670 = vmatprep.mubr.bf16.mxu0 0
      %671 = vmatmul.mubr.bf16.gmra.mxu0 %v581
      %v672 = vpop.f32.mrf.mxu0
      %v673 = vadd.f32 %v523, %v672
      %v674 = vpop.f32.mrf.mxu0
      %v675 = vadd.f32 %v523, %v674
      %v676 = vpop.f32.mrf.mxu0
      %v677 = vadd.f32 %v528, %v676
      %v678 = vpop.f32.mrf.mxu0
      %v679 = vadd.f32 %v528, %v678
      %680 = vdwg.mxu0
      %681 = vmatprep.subr.bf16.mxu0 0
      %682 = vmatpush1.bf16.msra.mxu0 0
      %683 = vmatprep.subr.bf16.mxu0 0
      %684 = vmatpush1.bf16.msra.mxu0 0
      %685 = vmatprep.subr.bf16.mxu0 0
      %686 = vmatpush1.bf16.msra.mxu0 0
      %687 = vmatprep.subr.bf16.mxu0 0
      %688 = vmatpush1.bf16.msra.mxu0 0
      %689 = vmatprep.subr.bf16.mxu0 0
      %690 = vmatpush1.bf16.msra.mxu0 0
      %691 = vmatprep.subr.bf16.mxu0 0
      %692 = vmatpush1.bf16.msra.mxu0 0
      %693 = vmatprep.subr.bf16.mxu0 0
      %694 = vmatpush1.bf16.msra.mxu0 0
      %695 = vmatprep.subr.bf16.mxu0 %v594
      %696 = vmatpush1.bf16.msra.mxu0 %v591
      %697 = vmatprep.subr.bf16.mxu0 0
      %698 = vmatpush2.bf16.msra.mxu0 0
      %699 = vmatprep.subr.bf16.mxu0 0
      %700 = vmatpush2.bf16.msra.mxu0 0
      %701 = vmatprep.subr.bf16.mxu0 0
      %702 = vmatpush2.bf16.msra.mxu0 0
      %703 = vmatprep.subr.bf16.mxu0 0
      %704 = vmatpush2.bf16.msra.mxu0 0
      %705 = vmatprep.subr.bf16.mxu0 0
      %706 = vmatpush2.bf16.msra.mxu0 0
      %707 = vmatprep.subr.bf16.mxu0 0
      %708 = vmatpush2.bf16.msra.mxu0 0
      %709 = vmatprep.subr.bf16.mxu0 0
      %710 = vmatpush2.bf16.msra.mxu0 0
      %711 = vmatprep.subr.bf16.mxu0 0
      %712 = vmatpush2.bf16.msra.mxu0 0
      %713 = vmatprep.mubr.bf16.mxu0 0
      %714 = vmatmul.mubr.bf16.gmra.mxu0 %v572
      %v715 = vpop.f32.mrf.mxu0
      %v716 = vadd.f32 %v493, %v715
      %v717 = vpop.f32.mrf.mxu0
      %v718 = vadd.f32 %v493, %v717
      %v719 = vpop.f32.mrf.mxu0
      %v720 = vadd.f32 %v498, %v719
      %v721 = vpop.f32.mrf.mxu0
      %v722 = vadd.f32 %v498, %v721
      %723 = vmatprep.mubr.bf16.mxu0 0
      %724 = vmatmul.mubr.bf16.gmra.mxu0 %v575
      %v725 = vpop.f32.mrf.mxu0
      %v726 = vadd.f32 %v503, %v725
      %v727 = vpop.f32.mrf.mxu0
      %v728 = vadd.f32 %v503, %v727
      %v729 = vpop.f32.mrf.mxu0
      %v730 = vadd.f32 %v508, %v729
      %v731 = vpop.f32.mrf.mxu0
      %v732 = vadd.f32 %v508, %v731
      %733 = vmatprep.mubr.bf16.mxu0 0
      %734 = vmatmul.mubr.bf16.gmra.mxu0 %v578
      %v735 = vpop.f32.mrf.mxu0
      %v736 = vadd.f32 %v513, %v735
      %v737 = vpop.f32.mrf.mxu0
      %v738 = vadd.f32 %v513, %v737
      %v739 = vpop.f32.mrf.mxu0
      %v740 = vadd.f32 %v518, %v739
      %v741 = vpop.f32.mrf.mxu0
      %v742 = vadd.f32 %v518, %v741
      %743 = vmatprep.mubr.bf16.mxu0 0
      %744 = vmatmul.mubr.bf16.gmra.mxu0 %v581
      %v745 = vpop.f32.mrf.mxu0
      %v746 = vadd.f32 %v523, %v745
      %v747 = vpop.f32.mrf.mxu0
      %v748 = vadd.f32 %v523, %v747
      %v749 = vpop.f32.mrf.mxu0
      %v750 = vadd.f32 %v528, %v749
      %v751 = vpop.f32.mrf.mxu0
      %v752 = vadd.f32 %v528, %v751
      %753 = vdwg.mxu0
      %754 = vmatprep.subr.bf16.mxu0 0
      %755 = vmatpush1.bf16.msra.mxu0 0
      %756 = vmatprep.subr.bf16.mxu0 0
      %757 = vmatpush1.bf16.msra.mxu0 0
      %758 = vmatprep.subr.bf16.mxu0 0
      %759 = vmatpush1.bf16.msra.mxu0 0
      %760 = vmatprep.subr.bf16.mxu0 0
      %761 = vmatpush1.bf16.msra.mxu0 0
      %762 = vmatprep.subr.bf16.mxu0 0
      %763 = vmatpush1.bf16.msra.mxu0 0
      %764 = vmatprep.subr.bf16.mxu0 0
      %765 = vmatpush1.bf16.msra.mxu0 0
      %766 = vmatprep.subr.bf16.mxu0 0
      %767 = vmatpush1.bf16.msra.mxu0 0
      %768 = vmatprep.subr.bf16.mxu0 %v600
      %769 = vmatpush1.bf16.msra.mxu0 %v597
      %770 = vmatprep.subr.bf16.mxu0 0
      %771 = vmatpush2.bf16.msra.mxu0 0
      %772 = vmatprep.subr.bf16.mxu0 0
      %773 = vmatpush2.bf16.msra.mxu0 0
      %774 = vmatprep.subr.bf16.mxu0 0
      %775 = vmatpush2.bf16.msra.mxu0 0
      %776 = vmatprep.subr.bf16.mxu0 0
      %777 = vmatpush2.bf16.msra.mxu0 0
      %778 = vmatprep.subr.bf16.mxu0 0
      %779 = vmatpush2.bf16.msra.mxu0 0
      %780 = vmatprep.subr.bf16.mxu0 0
      %781 = vmatpush2.bf16.msra.mxu0 0
      %782 = vmatprep.subr.bf16.mxu0 0
      %783 = vmatpush2.bf16.msra.mxu0 0
      %784 = vmatprep.subr.bf16.mxu0 0
      %785 = vmatpush2.bf16.msra.mxu0 0
      %786 = vmatprep.mubr.bf16.mxu0 0
      %787 = vmatmul.mubr.bf16.gmra.mxu0 %v572
      %v788 = vpop.f32.mrf.mxu0
      %v789 = vadd.f32 %v493, %v788
      %v790 = vpop.f32.mrf.mxu0
      %v791 = vadd.f32 %v493, %v790
      %v792 = vpop.f32.mrf.mxu0
      %v793 = vadd.f32 %v498, %v792
      %v794 = vpop.f32.mrf.mxu0
      %v795 = vadd.f32 %v498, %v794
      %796 = vmatprep.mubr.bf16.mxu0 0
      %797 = vmatmul.mubr.bf16.gmra.mxu0 %v575
      %v798 = vpop.f32.mrf.mxu0
      %v799 = vadd.f32 %v503, %v798
      %v800 = vpop.f32.mrf.mxu0
      %v801 = vadd.f32 %v503, %v800
      %v802 = vpop.f32.mrf.mxu0
      %v803 = vadd.f32 %v508, %v802
      %v804 = vpop.f32.mrf.mxu0
      %v805 = vadd.f32 %v508, %v804
      %806 = vmatprep.mubr.bf16.mxu0 0
      %807 = vmatmul.mubr.bf16.gmra.mxu0 %v578
      %v808 = vpop.f32.mrf.mxu0
      %v809 = vadd.f32 %v513, %v808
      %v810 = vpop.f32.mrf.mxu0
      %v811 = vadd.f32 %v513, %v810
      %v812 = vpop.f32.mrf.mxu0
      %v813 = vadd.f32 %v518, %v812
      %v814 = vpop.f32.mrf.mxu0
      %v815 = vadd.f32 %v518, %v814
      %816 = vmatprep.mubr.bf16.mxu0 0
      %817 = vmatmul.mubr.bf16.gmra.mxu0 %v581
      %v818 = vpop.f32.mrf.mxu0
      %v819 = vadd.f32 %v523, %v818
      %v820 = vpop.f32.mrf.mxu0
      %v821 = vadd.f32 %v523, %v820
      %v822 = vpop.f32.mrf.mxu0
      %v823 = vadd.f32 %v528, %v822
      %v824 = vpop.f32.mrf.mxu0
      %v825 = vadd.f32 %v528, %v824
      %826 = vdwg.mxu0
      %827 = vmatprep.subr.bf16.mxu0 0
      %828 = vmatpush1.bf16.msra.mxu0 0
      %829 = vmatprep.subr.bf16.mxu0 0
      %830 = vmatpush1.bf16.msra.mxu0 0
      %831 = vmatprep.subr.bf16.mxu0 0
      %832 = vmatpush1.bf16.msra.mxu0 0
      %833 = vmatprep.subr.bf16.mxu0 0
      %834 = vmatpush1.bf16.msra.mxu0 0
      %835 = vmatprep.subr.bf16.mxu0 0
      %836 = vmatpush1.bf16.msra.mxu0 0
      %837 = vmatprep.subr.bf16.mxu0 0
      %838 = vmatpush1.bf16.msra.mxu0 0
      %839 = vmatprep.subr.bf16.mxu0 0
      %840 = vmatpush1.bf16.msra.mxu0 0
      %841 = vmatprep.subr.bf16.mxu0 %v606
      %842 = vmatpush1.bf16.msra.mxu0 %v603
      %843 = vmatprep.subr.bf16.mxu0 0
      %844 = vmatpush2.bf16.msra.mxu0 0
      %845 = vmatprep.subr.bf16.mxu0 0
      %846 = vmatpush2.bf16.msra.mxu0 0
      %847 = vmatprep.subr.bf16.mxu0 0
      %848 = vmatpush2.bf16.msra.mxu0 0
      %849 = vmatprep.subr.bf16.mxu0 0
      %850 = vmatpush2.bf16.msra.mxu0 0
      %851 = vmatprep.subr.bf16.mxu0 0
      %852 = vmatpush2.bf16.msra.mxu0 0
      %853 = vmatprep.subr.bf16.mxu0 0
      %854 = vmatpush2.bf16.msra.mxu0 0
      %855 = vmatprep.subr.bf16.mxu0 0
      %856 = vmatpush2.bf16.msra.mxu0 0
      %857 = vmatprep.subr.bf16.mxu0 0
      %858 = vmatpush2.bf16.msra.mxu0 0
      %859 = vmatprep.mubr.bf16.mxu0 0
      %860 = vmatmul.mubr.bf16.gmra.mxu0 %v572
      %v861 = vpop.f32.mrf.mxu0
      %v862 = vadd.f32 %v493, %v861
      %v863 = vpop.f32.mrf.mxu0
      %v864 = vadd.f32 %v493, %v863
      %v865 = vpop.f32.mrf.mxu0
      %v866 = vadd.f32 %v498, %v865
      %v867 = vpop.f32.mrf.mxu0
      %v868 = vadd.f32 %v498, %v867
      %869 = vmatprep.mubr.bf16.mxu0 0
      %870 = vmatmul.mubr.bf16.gmra.mxu0 %v575
      %v871 = vpop.f32.mrf.mxu0
      %v872 = vadd.f32 %v503, %v871
      %v873 = vpop.f32.mrf.mxu0
      %v874 = vadd.f32 %v503, %v873
      %v875 = vpop.f32.mrf.mxu0
      %v876 = vadd.f32 %v508, %v875
      %v877 = vpop.f32.mrf.mxu0
      %v878 = vadd.f32 %v508, %v877
      %879 = vmatprep.mubr.bf16.mxu0 0
      %880 = vmatmul.mubr.bf16.gmra.mxu0 %v578
      %v881 = vpop.f32.mrf.mxu0
      %v882 = vadd.f32 %v513, %v881
      %v883 = vpop.f32.mrf.mxu0
      %v884 = vadd.f32 %v513, %v883
      %v885 = vpop.f32.mrf.mxu0
      %v886 = vadd.f32 %v518, %v885
      %v887 = vpop.f32.mrf.mxu0
      %v888 = vadd.f32 %v518, %v887
      %889 = vmatprep.mubr.bf16.mxu0 0
      %890 = vmatmul.mubr.bf16.gmra.mxu0 %v581
      %v891 = vpop.f32.mrf.mxu0
      %v892 = vadd.f32 %v523, %v891
      %v893 = vpop.f32.mrf.mxu0
      %v894 = vadd.f32 %v523, %v893
      %v895 = vpop.f32.mrf.mxu0
      %v896 = vadd.f32 %v528, %v895
      %v897 = vpop.f32.mrf.mxu0
      %v898 = vadd.f32 %v528, %v897
      %899 = vdwg.mxu0
      %v900 = vmax.f32 %v643, 0.0
      %v901 = vmax.f32 %v645, 0.0
      %v902 = vmax.f32 %v716, 0.0
      %v903 = vmax.f32 %v718, 0.0
      %v904 = vmax.f32 %v789, 0.0
      %v905 = vmax.f32 %v791, 0.0
      %v906 = vmax.f32 %v862, 0.0
      %v907 = vmax.f32 %v864, 0.0
      %v908 = vmax.f32 %v647, 0.0
      %v909 = vmax.f32 %v649, 0.0
      %v910 = vmax.f32 %v720, 0.0
      %v911 = vmax.f32 %v722, 0.0
      %v912 = vmax.f32 %v793, 0.0
      %v913 = vmax.f32 %v795, 0.0
      %v914 = vmax.f32 %v866, 0.0
      %v915 = vmax.f32 %v868, 0.0
      %v916 = vmax.f32 %v653, 0.0
      %v917 = vmax.f32 %v655, 0.0
      %v918 = vmax.f32 %v726, 0.0
      %v919 = vmax.f32 %v728, 0.0
      %v920 = vmax.f32 %v799, 0.0
      %v921 = vmax.f32 %v801, 0.0
      %v922 = vmax.f32 %v872, 0.0
      %v923 = vmax.f32 %v874, 0.0
      %v924 = vmax.f32 %v657, 0.0
      %v925 = vmax.f32 %v659, 0.0
      %v926 = vmax.f32 %v730, 0.0
      %v927 = vmax.f32 %v732, 0.0
      %v928 = vmax.f32 %v803, 0.0
      %v929 = vmax.f32 %v805, 0.0
      %v930 = vmax.f32 %v876, 0.0
      %v931 = vmax.f32 %v878, 0.0
      %v932 = vmax.f32 %v663, 0.0
      %v933 = vmax.f32 %v665, 0.0
      %v934 = vmax.f32 %v736, 0.0
      %v935 = vmax.f32 %v738, 0.0
      %v936 = vmax.f32 %v809, 0.0
      %v937 = vmax.f32 %v811, 0.0
      %v938 = vmax.f32 %v882, 0.0
      %v939 = vmax.f32 %v884, 0.0
      %v940 = vmax.f32 %v667, 0.0
      %v941 = vmax.f32 %v669, 0.0
      %v942 = vmax.f32 %v740, 0.0
      %v943 = vmax.f32 %v742, 0.0
      %v944 = vmax.f32 %v813, 0.0
      %v945 = vmax.f32 %v815, 0.0
      %v946 = vmax.f32 %v886, 0.0
      %v947 = vmax.f32 %v888, 0.0
      %v948 = vmax.f32 %v673, 0.0
      %v949 = vmax.f32 %v675, 0.0
      %v950 = vmax.f32 %v746, 0.0
      %v951 = vmax.f32 %v748, 0.0
      %v952 = vmax.f32 %v819, 0.0
      %v953 = vmax.f32 %v821, 0.0
      %v954 = vmax.f32 %v892, 0.0
      %v955 = vmax.f32 %v894, 0.0
      %v956 = vmax.f32 %v677, 0.0
      %v957 = vmax.f32 %v679, 0.0
      %v958 = vmax.f32 %v750, 0.0
      %v959 = vmax.f32 %v752, 0.0
      %v960 = vmax.f32 %v823, 0.0
      %v961 = vmax.f32 %v825, 0.0
      %v962 = vmax.f32 %v896, 0.0
      %v963 = vmax.f32 %v898, 0.0
      %v964 = vpack.c.bf16 %v908, %v900
      %v965 = vpack.c.bf16 %v909, %v901
      %v966 = vpack.c.bf16 %v910, %v902
      %v967 = vpack.c.bf16 %v911, %v903
      %v968 = vpack.c.bf16 %v912, %v904
      %v969 = vpack.c.bf16 %v913, %v905
      %v970 = vpack.c.bf16 %v914, %v906
      %v971 = vpack.c.bf16 %v915, %v907
      %v972 = vpack.c.bf16 %v924, %v916
      %v973 = vpack.c.bf16 %v925, %v917
      %v974 = vpack.c.bf16 %v926, %v918
      %v975 = vpack.c.bf16 %v927, %v919
      %v976 = vpack.c.bf16 %v928, %v920
      %v977 = vpack.c.bf16 %v929, %v921
      %v978 = vpack.c.bf16 %v930, %v922
      %v979 = vpack.c.bf16 %v931, %v923
      %v980 = vpack.c.bf16 %v940, %v932
      %v981 = vpack.c.bf16 %v941, %v933
      %v982 = vpack.c.bf16 %v942, %v934
      %v983 = vpack.c.bf16 %v943, %v935
      %v984 = vpack.c.bf16 %v944, %v936
      %v985 = vpack.c.bf16 %v945, %v937
      %v986 = vpack.c.bf16 %v946, %v938
      %v987 = vpack.c.bf16 %v947, %v939
      %v988 = vpack.c.bf16 %v956, %v948
      %v989 = vpack.c.bf16 %v957, %v949
      %v990 = vpack.c.bf16 %v958, %v950
      %v991 = vpack.c.bf16 %v959, %v951
      %v992 = vpack.c.bf16 %v960, %v952
      %v993 = vpack.c.bf16 %v961, %v953
      %v994 = vpack.c.bf16 %v962, %v954
      %v995 = vpack.c.bf16 %v963, %v955
      %v996 = vld [vmem:[%s3] sm:$0xf]
      %v997 = vld [vmem:[%s3 + $0x4] sm:$0xf]
      %v998 = vld [vmem:[%s3 + $0x8] sm:$0xf]
      %v999 = vld [vmem:[%s3 + $0xc] sm:$0xf]
      %v1000 = vld [vmem:[%s3 + $0x10] sm:$0xf]
      %v1001 = vld [vmem:[%s3 + $0x14] sm:$0xf]
      %v1002 = vld [vmem:[%s3 + $0x18] sm:$0xf]
      %v1003 = vld [vmem:[%s3 + $0x1c] sm:$0xf]
      %v1004 = vld [vmem:[%s3 + $0x20] sm:$0xf]
      %v1005 = vld [vmem:[%s3 + $0x24] sm:$0xf]
      %v1006 = vld [vmem:[%s3 + $0x28] sm:$0xf]
      %v1007 = vld [vmem:[%s3 + $0x2c] sm:$0xf]
      %v1008 = vld [vmem:[%s3 + $0x30] sm:$0xf]
      %v1009 = vld [vmem:[%s3 + $0x34] sm:$0xf]
      %v1010 = vld [vmem:[%s3 + $0x38] sm:$0xf]
      %v1011 = vld [vmem:[%s3 + $0x3c] sm:$0xf]
      %v1012 = vld [vmem:[%s4] sm:$0xff]
      %v1013 = vld [vmem:[%s4 + $0x8] sm:$0xff]
      %v1014 = vld [vmem:[%s4 + $0x10] sm:$0xff]
      %v1015 = vld [vmem:[%s4 + $0x18] sm:$0xff]
      %v1016 = vld [vmem:[%s4 + $0x20] sm:$0xff]
      %v1017 = vld [vmem:[%s4 + $0x28] sm:$0xff]
      %v1018 = vld [vmem:[%s4 + $0x30] sm:$0xff]
      %v1019 = vld [vmem:[%s4 + $0x38] sm:$0xff]
      %v1020 = vld [vmem:[%s4 + $0x40] sm:$0xff]
      %v1021 = vld [vmem:[%s4 + $0x48] sm:$0xff]
      %v1022 = vld [vmem:[%s4 + $0x50] sm:$0xff]
      %v1023 = vld [vmem:[%s4 + $0x58] sm:$0xff]
      %v1024 = vld [vmem:[%s4 + $0x60] sm:$0xff]
      %v1025 = vld [vmem:[%s4 + $0x68] sm:$0xff]
      %v1026 = vld [vmem:[%s4 + $0x70] sm:$0xff]
      %v1027 = vld [vmem:[%s4 + $0x78] sm:$0xff]
      %1029 = vset.pattern.permute.xlu0 0
      %1030 = vperm.xlu0 %1029, %v1012
      %v1031 = vpop.permute.xlu0 %1030
      %1034 = vset.pattern.permute.xlu0 0
      %1035 = vperm.xlu0 %1034, %v1013
      %v1036 = vpop.permute.xlu0 %1035
      %1039 = vset.pattern.permute.xlu0 0
      %1040 = vperm.xlu0 %1039, %v1014
      %v1041 = vpop.permute.xlu0 %1040
      %1044 = vset.pattern.permute.xlu0 0
      %1045 = vperm.xlu0 %1044, %v1015
      %v1046 = vpop.permute.xlu0 %1045
      %1049 = vset.pattern.permute.xlu0 0
      %1050 = vperm.xlu0 %1049, %v1016
      %v1051 = vpop.permute.xlu0 %1050
      %1054 = vset.pattern.permute.xlu0 0
      %1055 = vperm.xlu0 %1054, %v1017
      %v1056 = vpop.permute.xlu0 %1055
      %1059 = vset.pattern.permute.xlu0 0
      %1060 = vperm.xlu0 %1059, %v1018
      %v1061 = vpop.permute.xlu0 %1060
      %1064 = vset.pattern.permute.xlu0 0
      %1065 = vperm.xlu0 %1064, %v1019
      %v1066 = vpop.permute.xlu0 %1065
      %1069 = vset.pattern.permute.xlu0 0
      %1070 = vperm.xlu0 %1069, %v1020
      %v1071 = vpop.permute.xlu0 %1070
      %1074 = vset.pattern.permute.xlu0 0
      %1075 = vperm.xlu0 %1074, %v1021
      %v1076 = vpop.permute.xlu0 %1075
      %1079 = vset.pattern.permute.xlu0 0
      %1080 = vperm.xlu0 %1079, %v1022
      %v1081 = vpop.permute.xlu0 %1080
      %1084 = vset.pattern.permute.xlu0 0
      %1085 = vperm.xlu0 %1084, %v1023
      %v1086 = vpop.permute.xlu0 %1085
      %1089 = vset.pattern.permute.xlu0 0
      %1090 = vperm.xlu0 %1089, %v1024
      %v1091 = vpop.permute.xlu0 %1090
      %1094 = vset.pattern.permute.xlu0 0
      %1095 = vperm.xlu0 %1094, %v1025
      %v1096 = vpop.permute.xlu0 %1095
      %1099 = vset.pattern.permute.xlu0 0
      %1100 = vperm.xlu0 %1099, %v1026
      %v1101 = vpop.permute.xlu0 %1100
      %1104 = vset.pattern.permute.xlu0 0
      %1105 = vperm.xlu0 %1104, %v1027
      %v1106 = vpop.permute.xlu0 %1105
      %v1124 = vunpack.c.l.b16 %v996
      %v1125 = vunpack.c.l.b16 %v997
      %v1126 = vunpack.c.l.b16 %v998
      %v1127 = vunpack.c.l.b16 %v999
      %v1128 = vunpack.c.l.b16 %v1000
      %v1129 = vunpack.c.l.b16 %v1001
      %v1130 = vunpack.c.l.b16 %v1002
      %v1131 = vunpack.c.l.b16 %v1003
      %v1132 = vunpack.c.l.b16 %v1004
      %v1133 = vunpack.c.l.b16 %v1005
      %v1134 = vunpack.c.l.b16 %v1006
      %v1135 = vunpack.c.l.b16 %v1007
      %v1136 = vunpack.c.l.b16 %v1008
      %v1137 = vunpack.c.l.b16 %v1009
      %v1138 = vunpack.c.l.b16 %v1010
      %v1139 = vunpack.c.l.b16 %v1011
      %v1140 = vpack.c.b16 %v1125, %v1124
      %v1141 = vpack.c.b16 %v1127, %v1126
      %v1142 = vpack.c.b16 %v1129, %v1128
      %v1143 = vpack.c.b16 %v1131, %v1130
      %v1144 = vpack.c.b16 %v1133, %v1132
      %v1145 = vpack.c.b16 %v1135, %v1134
      %v1146 = vpack.c.b16 %v1137, %v1136
      %v1147 = vpack.c.b16 %v1139, %v1138
      %vm1148 = vcmask 523264
      %v1150 = vsel %vm1148, %v1140, 0
      %v1153 = vsel %vm1148, %v1141, 0
      %v1156 = vsel %vm1148, %v1142, 0
      %v1159 = vsel %vm1148, %v1143, 0
      %v1162 = vsel %vm1148, %v1144, 0
      %v1165 = vsel %vm1148, %v1145, 0
      %v1168 = vsel %vm1148, %v1146, 0
      %v1171 = vsel %vm1148, %v1147, 0
      %1173 = vmatprep.subr.bf16.mxu0 0
      %1174 = vmatpush1.bf16.msra.mxu0 0
      %1175 = vmatprep.subr.bf16.mxu0 0
      %1176 = vmatpush1.bf16.msra.mxu0 0
      %1177 = vmatprep.subr.bf16.mxu0 0
      %1178 = vmatpush1.bf16.msra.mxu0 0
      %1179 = vmatprep.subr.bf16.mxu0 0
      %1180 = vmatpush1.bf16.msra.mxu0 0
      %1181 = vmatprep.subr.bf16.mxu0 %v989
      %1182 = vmatpush1.bf16.msra.mxu0 %v988
      %1183 = vmatprep.subr.bf16.mxu0 %v981
      %1184 = vmatpush1.bf16.msra.mxu0 %v980
      %1185 = vmatprep.subr.bf16.mxu0 %v973
      %1186 = vmatpush1.bf16.msra.mxu0 %v972
      %1187 = vmatprep.subr.bf16.mxu0 %v965
      %1188 = vmatpush1.bf16.msra.mxu0 %v964
      %1189 = vmatprep.subr.bf16.mxu0 0
      %1190 = vmatpush2.bf16.msra.mxu0 0
      %1191 = vmatprep.subr.bf16.mxu0 0
      %1192 = vmatpush2.bf16.msra.mxu0 0
      %1193 = vmatprep.subr.bf16.mxu0 0
      %1194 = vmatpush2.bf16.msra.mxu0 0
      %1195 = vmatprep.subr.bf16.mxu0 0
      %1196 = vmatpush2.bf16.msra.mxu0 0
      %1197 = vmatprep.subr.bf16.mxu0 0
      %1198 = vmatpush2.bf16.msra.mxu0 0
      %1199 = vmatprep.subr.bf16.mxu0 0
      %1200 = vmatpush2.bf16.msra.mxu0 0
      %1201 = vmatprep.subr.bf16.mxu0 0
      %1202 = vmatpush2.bf16.msra.mxu0 0
      %1203 = vmatprep.subr.bf16.mxu0 0
      %1204 = vmatpush2.bf16.msra.mxu0 0
      %1205 = vmatprep.mubr.bf16.mxu0 0
      %1206 = vmatmul.mubr.bf16.gmra.mxu0 %v1150
      %v1207 = vpop.f32.mrf.mxu0
      %v1208 = vadd.f32 %v1031, %v1207
      %v1209 = vpop.f32.mrf.mxu0
      %v1210 = vadd.f32 %v1031, %v1209
      %v1211 = vpop.f32.mrf.mxu0
      %v1212 = vadd.f32 %v1036, %v1211
      %v1213 = vpop.f32.mrf.mxu0
      %v1214 = vadd.f32 %v1036, %v1213
      %1215 = vmatprep.mubr.bf16.mxu0 0
      %1216 = vmatmul.mubr.bf16.gmra.mxu0 %v1153
      %v1217 = vpop.f32.mrf.mxu0
      %v1218 = vadd.f32 %v1041, %v1217
      %v1219 = vpop.f32.mrf.mxu0
      %v1220 = vadd.f32 %v1041, %v1219
      %v1221 = vpop.f32.mrf.mxu0
      %v1222 = vadd.f32 %v1046, %v1221
      %v1223 = vpop.f32.mrf.mxu0
      %v1224 = vadd.f32 %v1046, %v1223
      %1225 = vmatprep.mubr.bf16.mxu0 0
      %1226 = vmatmul.mubr.bf16.gmra.mxu0 %v1156
      %v1227 = vpop.f32.mrf.mxu0
      %v1228 = vadd.f32 %v1051, %v1227
      %v1229 = vpop.f32.mrf.mxu0
      %v1230 = vadd.f32 %v1051, %v1229
      %v1231 = vpop.f32.mrf.mxu0
      %v1232 = vadd.f32 %v1056, %v1231
      %v1233 = vpop.f32.mrf.mxu0
      %v1234 = vadd.f32 %v1056, %v1233
      %1235 = vmatprep.mubr.bf16.mxu0 0
      %1236 = vmatmul.mubr.bf16.gmra.mxu0 %v1159
      %v1237 = vpop.f32.mrf.mxu0
      %v1238 = vadd.f32 %v1061, %v1237
      %v1239 = vpop.f32.mrf.mxu0
      %v1240 = vadd.f32 %v1061, %v1239
      %v1241 = vpop.f32.mrf.mxu0
      %v1242 = vadd.f32 %v1066, %v1241
      %v1243 = vpop.f32.mrf.mxu0
      %v1244 = vadd.f32 %v1066, %v1243
      %1245 = vmatprep.mubr.bf16.mxu0 0
      %1246 = vmatmul.mubr.bf16.gmra.mxu0 %v1162
      %v1247 = vpop.f32.mrf.mxu0
      %v1248 = vadd.f32 %v1071, %v1247
      %v1249 = vpop.f32.mrf.mxu0
      %v1250 = vadd.f32 %v1071, %v1249
      %v1251 = vpop.f32.mrf.mxu0
      %v1252 = vadd.f32 %v1076, %v1251
      %v1253 = vpop.f32.mrf.mxu0
      %v1254 = vadd.f32 %v1076, %v1253
      %1255 = vmatprep.mubr.bf16.mxu0 0
      %1256 = vmatmul.mubr.bf16.gmra.mxu0 %v1165
      %v1257 = vpop.f32.mrf.mxu0
      %v1258 = vadd.f32 %v1081, %v1257
      %v1259 = vpop.f32.mrf.mxu0
      %v1260 = vadd.f32 %v1081, %v1259
      %v1261 = vpop.f32.mrf.mxu0
      %v1262 = vadd.f32 %v1086, %v1261
      %v1263 = vpop.f32.mrf.mxu0
      %v1264 = vadd.f32 %v1086, %v1263
      %1265 = vmatprep.mubr.bf16.mxu0 0
      %1266 = vmatmul.mubr.bf16.gmra.mxu0 %v1168
      %v1267 = vpop.f32.mrf.mxu0
      %v1268 = vadd.f32 %v1091, %v1267
      %v1269 = vpop.f32.mrf.mxu0
      %v1270 = vadd.f32 %v1091, %v1269
      %v1271 = vpop.f32.mrf.mxu0
      %v1272 = vadd.f32 %v1096, %v1271
      %v1273 = vpop.f32.mrf.mxu0
      %v1274 = vadd.f32 %v1096, %v1273
      %1275 = vmatprep.mubr.bf16.mxu0 0
      %1276 = vmatmul.mubr.bf16.gmra.mxu0 %v1171
      %v1277 = vpop.f32.mrf.mxu0
      %v1278 = vadd.f32 %v1101, %v1277
      %v1279 = vpop.f32.mrf.mxu0
      %v1280 = vadd.f32 %v1101, %v1279
      %v1281 = vpop.f32.mrf.mxu0
      %v1282 = vadd.f32 %v1106, %v1281
      %v1283 = vpop.f32.mrf.mxu0
      %v1284 = vadd.f32 %v1106, %v1283
      %1285 = vdwg.mxu0
      %1286 = vmatprep.subr.bf16.mxu0 0
      %1287 = vmatpush1.bf16.msra.mxu0 0
      %1288 = vmatprep.subr.bf16.mxu0 0
      %1289 = vmatpush1.bf16.msra.mxu0 0
      %1290 = vmatprep.subr.bf16.mxu0 0
      %1291 = vmatpush1.bf16.msra.mxu0 0
      %1292 = vmatprep.subr.bf16.mxu0 0
      %1293 = vmatpush1.bf16.msra.mxu0 0
      %1294 = vmatprep.subr.bf16.mxu0 %v991
      %1295 = vmatpush1.bf16.msra.mxu0 %v990
      %1296 = vmatprep.subr.bf16.mxu0 %v983
      %1297 = vmatpush1.bf16.msra.mxu0 %v982
      %1298 = vmatprep.subr.bf16.mxu0 %v975
      %1299 = vmatpush1.bf16.msra.mxu0 %v974
      %1300 = vmatprep.subr.bf16.mxu0 %v967
      %1301 = vmatpush1.bf16.msra.mxu0 %v966
      %1302 = vmatprep.subr.bf16.mxu0 0
      %1303 = vmatpush2.bf16.msra.mxu0 0
      %1304 = vmatprep.subr.bf16.mxu0 0
      %1305 = vmatpush2.bf16.msra.mxu0 0
      %1306 = vmatprep.subr.bf16.mxu0 0
      %1307 = vmatpush2.bf16.msra.mxu0 0
      %1308 = vmatprep.subr.bf16.mxu0 0
      %1309 = vmatpush2.bf16.msra.mxu0 0
      %1310 = vmatprep.subr.bf16.mxu0 0
      %1311 = vmatpush2.bf16.msra.mxu0 0
      %1312 = vmatprep.subr.bf16.mxu0 0
      %1313 = vmatpush2.bf16.msra.mxu0 0
      %1314 = vmatprep.subr.bf16.mxu0 0
      %1315 = vmatpush2.bf16.msra.mxu0 0
      %1316 = vmatprep.subr.bf16.mxu0 0
      %1317 = vmatpush2.bf16.msra.mxu0 0
      %1318 = vmatprep.mubr.bf16.mxu0 0
      %1319 = vmatmul.mubr.bf16.gmra.mxu0 %v1150
      %v1320 = vpop.f32.mrf.mxu0
      %v1321 = vadd.f32 %v1031, %v1320
      %v1322 = vpop.f32.mrf.mxu0
      %v1323 = vadd.f32 %v1031, %v1322
      %v1324 = vpop.f32.mrf.mxu0
      %v1325 = vadd.f32 %v1036, %v1324
      %v1326 = vpop.f32.mrf.mxu0
      %v1327 = vadd.f32 %v1036, %v1326
      %1328 = vmatprep.mubr.bf16.mxu0 0
      %1329 = vmatmul.mubr.bf16.gmra.mxu0 %v1153
      %v1330 = vpop.f32.mrf.mxu0
      %v1331 = vadd.f32 %v1041, %v1330
      %v1332 = vpop.f32.mrf.mxu0
      %v1333 = vadd.f32 %v1041, %v1332
      %v1334 = vpop.f32.mrf.mxu0
      %v1335 = vadd.f32 %v1046, %v1334
      %v1336 = vpop.f32.mrf.mxu0
      %v1337 = vadd.f32 %v1046, %v1336
      %1338 = vmatprep.mubr.bf16.mxu0 0
      %1339 = vmatmul.mubr.bf16.gmra.mxu0 %v1156
      %v1340 = vpop.f32.mrf.mxu0
      %v1341 = vadd.f32 %v1051, %v1340
      %v1342 = vpop.f32.mrf.mxu0
      %v1343 = vadd.f32 %v1051, %v1342
      %v1344 = vpop.f32.mrf.mxu0
      %v1345 = vadd.f32 %v1056, %v1344
      %v1346 = vpop.f32.mrf.mxu0
      %v1347 = vadd.f32 %v1056, %v1346
      %1348 = vmatprep.mubr.bf16.mxu0 0
      %1349 = vmatmul.mubr.bf16.gmra.mxu0 %v1159
      %v1350 = vpop.f32.mrf.mxu0
      %v1351 = vadd.f32 %v1061, %v1350
      %v1352 = vpop.f32.mrf.mxu0
      %v1353 = vadd.f32 %v1061, %v1352
      %v1354 = vpop.f32.mrf.mxu0
      %v1355 = vadd.f32 %v1066, %v1354
      %v1356 = vpop.f32.mrf.mxu0
      %v1357 = vadd.f32 %v1066, %v1356
      %1358 = vmatprep.mubr.bf16.mxu0 0
      %1359 = vmatmul.mubr.bf16.gmra.mxu0 %v1162
      %v1360 = vpop.f32.mrf.mxu0
      %v1361 = vadd.f32 %v1071, %v1360
      %v1362 = vpop.f32.mrf.mxu0
      %v1363 = vadd.f32 %v1071, %v1362
      %v1364 = vpop.f32.mrf.mxu0
      %v1365 = vadd.f32 %v1076, %v1364
      %v1366 = vpop.f32.mrf.mxu0
      %v1367 = vadd.f32 %v1076, %v1366
      %1368 = vmatprep.mubr.bf16.mxu0 0
      %1369 = vmatmul.mubr.bf16.gmra.mxu0 %v1165
      %v1370 = vpop.f32.mrf.mxu0
      %v1371 = vadd.f32 %v1081, %v1370
      %v1372 = vpop.f32.mrf.mxu0
      %v1373 = vadd.f32 %v1081, %v1372
      %v1374 = vpop.f32.mrf.mxu0
      %v1375 = vadd.f32 %v1086, %v1374
      %v1376 = vpop.f32.mrf.mxu0
      %v1377 = vadd.f32 %v1086, %v1376
      %1378 = vmatprep.mubr.bf16.mxu0 0
      %1379 = vmatmul.mubr.bf16.gmra.mxu0 %v1168
      %v1380 = vpop.f32.mrf.mxu0
      %v1381 = vadd.f32 %v1091, %v1380
      %v1382 = vpop.f32.mrf.mxu0
      %v1383 = vadd.f32 %v1091, %v1382
      %v1384 = vpop.f32.mrf.mxu0
      %v1385 = vadd.f32 %v1096, %v1384
      %v1386 = vpop.f32.mrf.mxu0
      %v1387 = vadd.f32 %v1096, %v1386
      %1388 = vmatprep.mubr.bf16.mxu0 0
      %1389 = vmatmul.mubr.bf16.gmra.mxu0 %v1171
      %v1390 = vpop.f32.mrf.mxu0
      %v1391 = vadd.f32 %v1101, %v1390
      %v1392 = vpop.f32.mrf.mxu0
      %v1393 = vadd.f32 %v1101, %v1392
      %v1394 = vpop.f32.mrf.mxu0
      %v1395 = vadd.f32 %v1106, %v1394
      %v1396 = vpop.f32.mrf.mxu0
      %v1397 = vadd.f32 %v1106, %v1396
      %1398 = vdwg.mxu0
      %1399 = vmatprep.subr.bf16.mxu0 0
      %1400 = vmatpush1.bf16.msra.mxu0 0
      %1401 = vmatprep.subr.bf16.mxu0 0
      %1402 = vmatpush1.bf16.msra.mxu0 0
      %1403 = vmatprep.subr.bf16.mxu0 0
      %1404 = vmatpush1.bf16.msra.mxu0 0
      %1405 = vmatprep.subr.bf16.mxu0 0
      %1406 = vmatpush1.bf16.msra.mxu0 0
      %1407 = vmatprep.subr.bf16.mxu0 %v993
      %1408 = vmatpush1.bf16.msra.mxu0 %v992
      %1409 = vmatprep.subr.bf16.mxu0 %v985
      %1410 = vmatpush1.bf16.msra.mxu0 %v984
      %1411 = vmatprep.subr.bf16.mxu0 %v977
      %1412 = vmatpush1.bf16.msra.mxu0 %v976
      %1413 = vmatprep.subr.bf16.mxu0 %v969
      %1414 = vmatpush1.bf16.msra.mxu0 %v968
      %1415 = vmatprep.subr.bf16.mxu0 0
      %1416 = vmatpush2.bf16.msra.mxu0 0
      %1417 = vmatprep.subr.bf16.mxu0 0
      %1418 = vmatpush2.bf16.msra.mxu0 0
      %1419 = vmatprep.subr.bf16.mxu0 0
      %1420 = vmatpush2.bf16.msra.mxu0 0
      %1421 = vmatprep.subr.bf16.mxu0 0
      %1422 = vmatpush2.bf16.msra.mxu0 0
      %1423 = vmatprep.subr.bf16.mxu0 0
      %1424 = vmatpush2.bf16.msra.mxu0 0
      %1425 = vmatprep.subr.bf16.mxu0 0
      %1426 = vmatpush2.bf16.msra.mxu0 0
      %1427 = vmatprep.subr.bf16.mxu0 0
      %1428 = vmatpush2.bf16.msra.mxu0 0
      %1429 = vmatprep.subr.bf16.mxu0 0
      %1430 = vmatpush2.bf16.msra.mxu0 0
      %1431 = vmatprep.mubr.bf16.mxu0 0
      %1432 = vmatmul.mubr.bf16.gmra.mxu0 %v1150
      %v1433 = vpop.f32.mrf.mxu0
      %v1434 = vadd.f32 %v1031, %v1433
      %v1435 = vpop.f32.mrf.mxu0
      %v1436 = vadd.f32 %v1031, %v1435
      %v1437 = vpop.f32.mrf.mxu0
      %v1438 = vadd.f32 %v1036, %v1437
      %v1439 = vpop.f32.mrf.mxu0
      %v1440 = vadd.f32 %v1036, %v1439
      %1441 = vmatprep.mubr.bf16.mxu0 0
      %1442 = vmatmul.mubr.bf16.gmra.mxu0 %v1153
      %v1443 = vpop.f32.mrf.mxu0
      %v1444 = vadd.f32 %v1041, %v1443
      %v1445 = vpop.f32.mrf.mxu0
      %v1446 = vadd.f32 %v1041, %v1445
      %v1447 = vpop.f32.mrf.mxu0
      %v1448 = vadd.f32 %v1046, %v1447
      %v1449 = vpop.f32.mrf.mxu0
      %v1450 = vadd.f32 %v1046, %v1449
      %1451 = vmatprep.mubr.bf16.mxu0 0
      %1452 = vmatmul.mubr.bf16.gmra.mxu0 %v1156
      %v1453 = vpop.f32.mrf.mxu0
      %v1454 = vadd.f32 %v1051, %v1453
      %v1455 = vpop.f32.mrf.mxu0
      %v1456 = vadd.f32 %v1051, %v1455
      %v1457 = vpop.f32.mrf.mxu0
      %v1458 = vadd.f32 %v1056, %v1457
      %v1459 = vpop.f32.mrf.mxu0
      %v1460 = vadd.f32 %v1056, %v1459
      %1461 = vmatprep.mubr.bf16.mxu0 0
      %1462 = vmatmul.mubr.bf16.gmra.mxu0 %v1159
      %v1463 = vpop.f32.mrf.mxu0
      %v1464 = vadd.f32 %v1061, %v1463
      %v1465 = vpop.f32.mrf.mxu0
      %v1466 = vadd.f32 %v1061, %v1465
      %v1467 = vpop.f32.mrf.mxu0
      %v1468 = vadd.f32 %v1066, %v1467
      %v1469 = vpop.f32.mrf.mxu0
      %v1470 = vadd.f32 %v1066, %v1469
      %1471 = vmatprep.mubr.bf16.mxu0 0
      %1472 = vmatmul.mubr.bf16.gmra.mxu0 %v1162
      %v1473 = vpop.f32.mrf.mxu0
      %v1474 = vadd.f32 %v1071, %v1473
      %v1475 = vpop.f32.mrf.mxu0
      %v1476 = vadd.f32 %v1071, %v1475
      %v1477 = vpop.f32.mrf.mxu0
      %v1478 = vadd.f32 %v1076, %v1477
      %v1479 = vpop.f32.mrf.mxu0
      %v1480 = vadd.f32 %v1076, %v1479
      %1481 = vmatprep.mubr.bf16.mxu0 0
      %1482 = vmatmul.mubr.bf16.gmra.mxu0 %v1165
      %v1483 = vpop.f32.mrf.mxu0
      %v1484 = vadd.f32 %v1081, %v1483
      %v1485 = vpop.f32.mrf.mxu0
      %v1486 = vadd.f32 %v1081, %v1485
      %v1487 = vpop.f32.mrf.mxu0
      %v1488 = vadd.f32 %v1086, %v1487
      %v1489 = vpop.f32.mrf.mxu0
      %v1490 = vadd.f32 %v1086, %v1489
      %1491 = vmatprep.mubr.bf16.mxu0 0
      %1492 = vmatmul.mubr.bf16.gmra.mxu0 %v1168
      %v1493 = vpop.f32.mrf.mxu0
      %v1494 = vadd.f32 %v1091, %v1493
      %v1495 = vpop.f32.mrf.mxu0
      %v1496 = vadd.f32 %v1091, %v1495
      %v1497 = vpop.f32.mrf.mxu0
      %v1498 = vadd.f32 %v1096, %v1497
      %v1499 = vpop.f32.mrf.mxu0
      %v1500 = vadd.f32 %v1096, %v1499
      %1501 = vmatprep.mubr.bf16.mxu0 0
      %1502 = vmatmul.mubr.bf16.gmra.mxu0 %v1171
      %v1503 = vpop.f32.mrf.mxu0
      %v1504 = vadd.f32 %v1101, %v1503
      %v1505 = vpop.f32.mrf.mxu0
      %v1506 = vadd.f32 %v1101, %v1505
      %v1507 = vpop.f32.mrf.mxu0
      %v1508 = vadd.f32 %v1106, %v1507
      %v1509 = vpop.f32.mrf.mxu0
      %v1510 = vadd.f32 %v1106, %v1509
      %1511 = vdwg.mxu0
      %1512 = vmatprep.subr.bf16.mxu0 0
      %1513 = vmatpush1.bf16.msra.mxu0 0
      %1514 = vmatprep.subr.bf16.mxu0 0
      %1515 = vmatpush1.bf16.msra.mxu0 0
      %1516 = vmatprep.subr.bf16.mxu0 0
      %1517 = vmatpush1.bf16.msra.mxu0 0
      %1518 = vmatprep.subr.bf16.mxu0 0
      %1519 = vmatpush1.bf16.msra.mxu0 0
      %1520 = vmatprep.subr.bf16.mxu0 %v995
      %1521 = vmatpush1.bf16.msra.mxu0 %v994
      %1522 = vmatprep.subr.bf16.mxu0 %v987
      %1523 = vmatpush1.bf16.msra.mxu0 %v986
      %1524 = vmatprep.subr.bf16.mxu0 %v979
      %1525 = vmatpush1.bf16.msra.mxu0 %v978
      %1526 = vmatprep.subr.bf16.mxu0 %v971
      %1527 = vmatpush1.bf16.msra.mxu0 %v970
      %1528 = vmatprep.subr.bf16.mxu0 0
      %1529 = vmatpush2.bf16.msra.mxu0 0
      %1530 = vmatprep.subr.bf16.mxu0 0
      %1531 = vmatpush2.bf16.msra.mxu0 0
      %1532 = vmatprep.subr.bf16.mxu0 0
      %1533 = vmatpush2.bf16.msra.mxu0 0
      %1534 = vmatprep.subr.bf16.mxu0 0
      %1535 = vmatpush2.bf16.msra.mxu0 0
      %1536 = vmatprep.subr.bf16.mxu0 0
      %1537 = vmatpush2.bf16.msra.mxu0 0
      %1538 = vmatprep.subr.bf16.mxu0 0
      %1539 = vmatpush2.bf16.msra.mxu0 0
      %1540 = vmatprep.subr.bf16.mxu0 0
      %1541 = vmatpush2.bf16.msra.mxu0 0
      %1542 = vmatprep.subr.bf16.mxu0 0
      %1543 = vmatpush2.bf16.msra.mxu0 0
      %1544 = vmatprep.mubr.bf16.mxu0 0
      %1545 = vmatmul.mubr.bf16.gmra.mxu0 %v1150
      %v1546 = vpop.f32.mrf.mxu0
      %v1547 = vadd.f32 %v1031, %v1546
      %v1548 = vpop.f32.mrf.mxu0
      %v1549 = vadd.f32 %v1031, %v1548
      %v1550 = vpop.f32.mrf.mxu0
      %v1551 = vadd.f32 %v1036, %v1550
      %v1552 = vpop.f32.mrf.mxu0
      %v1553 = vadd.f32 %v1036, %v1552
      %1554 = vmatprep.mubr.bf16.mxu0 0
      %1555 = vmatmul.mubr.bf16.gmra.mxu0 %v1153
      %v1556 = vpop.f32.mrf.mxu0
      %v1557 = vadd.f32 %v1041, %v1556
      %v1558 = vpop.f32.mrf.mxu0
      %v1559 = vadd.f32 %v1041, %v1558
      %v1560 = vpop.f32.mrf.mxu0
      %v1561 = vadd.f32 %v1046, %v1560
      %v1562 = vpop.f32.mrf.mxu0
      %v1563 = vadd.f32 %v1046, %v1562
      %1564 = vmatprep.mubr.bf16.mxu0 0
      %1565 = vmatmul.mubr.bf16.gmra.mxu0 %v1156
      %v1566 = vpop.f32.mrf.mxu0
      %v1567 = vadd.f32 %v1051, %v1566
      %v1568 = vpop.f32.mrf.mxu0
      %v1569 = vadd.f32 %v1051, %v1568
      %v1570 = vpop.f32.mrf.mxu0
      %v1571 = vadd.f32 %v1056, %v1570
      %v1572 = vpop.f32.mrf.mxu0
      %v1573 = vadd.f32 %v1056, %v1572
      %1574 = vmatprep.mubr.bf16.mxu0 0
      %1575 = vmatmul.mubr.bf16.gmra.mxu0 %v1159
      %v1576 = vpop.f32.mrf.mxu0
      %v1577 = vadd.f32 %v1061, %v1576
      %v1578 = vpop.f32.mrf.mxu0
      %v1579 = vadd.f32 %v1061, %v1578
      %v1580 = vpop.f32.mrf.mxu0
      %v1581 = vadd.f32 %v1066, %v1580
      %v1582 = vpop.f32.mrf.mxu0
      %v1583 = vadd.f32 %v1066, %v1582
      %1584 = vmatprep.mubr.bf16.mxu0 0
      %1585 = vmatmul.mubr.bf16.gmra.mxu0 %v1162
      %v1586 = vpop.f32.mrf.mxu0
      %v1587 = vadd.f32 %v1071, %v1586
      %v1588 = vpop.f32.mrf.mxu0
      %v1589 = vadd.f32 %v1071, %v1588
      %v1590 = vpop.f32.mrf.mxu0
      %v1591 = vadd.f32 %v1076, %v1590
      %v1592 = vpop.f32.mrf.mxu0
      %v1593 = vadd.f32 %v1076, %v1592
      %1594 = vmatprep.mubr.bf16.mxu0 0
      %1595 = vmatmul.mubr.bf16.gmra.mxu0 %v1165
      %v1596 = vpop.f32.mrf.mxu0
      %v1597 = vadd.f32 %v1081, %v1596
      %v1598 = vpop.f32.mrf.mxu0
      %v1599 = vadd.f32 %v1081, %v1598
      %v1600 = vpop.f32.mrf.mxu0
      %v1601 = vadd.f32 %v1086, %v1600
      %v1602 = vpop.f32.mrf.mxu0
      %v1603 = vadd.f32 %v1086, %v1602
      %1604 = vmatprep.mubr.bf16.mxu0 0
      %1605 = vmatmul.mubr.bf16.gmra.mxu0 %v1168
      %v1606 = vpop.f32.mrf.mxu0
      %v1607 = vadd.f32 %v1091, %v1606
      %v1608 = vpop.f32.mrf.mxu0
      %v1609 = vadd.f32 %v1091, %v1608
      %v1610 = vpop.f32.mrf.mxu0
      %v1611 = vadd.f32 %v1096, %v1610
      %v1612 = vpop.f32.mrf.mxu0
      %v1613 = vadd.f32 %v1096, %v1612
      %1614 = vmatprep.mubr.bf16.mxu0 0
      %1615 = vmatmul.mubr.bf16.gmra.mxu0 %v1171
      %v1616 = vpop.f32.mrf.mxu0
      %v1617 = vadd.f32 %v1101, %v1616
      %v1618 = vpop.f32.mrf.mxu0
      %v1619 = vadd.f32 %v1101, %v1618
      %v1620 = vpop.f32.mrf.mxu0
      %v1621 = vadd.f32 %v1106, %v1620
      %v1622 = vpop.f32.mrf.mxu0
      %v1623 = vadd.f32 %v1106, %v1622
      %1624 = vdwg.mxu0
      %v1625 = vmax.f32 %v1208, 0.0
      %v1626 = vmax.f32 %v1210, 0.0
      %v1627 = vmax.f32 %v1321, 0.0
      %v1628 = vmax.f32 %v1323, 0.0
      %v1629 = vmax.f32 %v1434, 0.0
      %v1630 = vmax.f32 %v1436, 0.0
      %v1631 = vmax.f32 %v1547, 0.0
      %v1632 = vmax.f32 %v1549, 0.0
      %v1633 = vmax.f32 %v1212, 0.0
      %v1634 = vmax.f32 %v1214, 0.0
      %v1635 = vmax.f32 %v1325, 0.0
      %v1636 = vmax.f32 %v1327, 0.0
      %v1637 = vmax.f32 %v1438, 0.0
      %v1638 = vmax.f32 %v1440, 0.0
      %v1639 = vmax.f32 %v1551, 0.0
      %v1640 = vmax.f32 %v1553, 0.0
      %v1641 = vmax.f32 %v1218, 0.0
      %v1642 = vmax.f32 %v1220, 0.0
      %v1643 = vmax.f32 %v1331, 0.0
      %v1644 = vmax.f32 %v1333, 0.0
      %v1645 = vmax.f32 %v1444, 0.0
      %v1646 = vmax.f32 %v1446, 0.0
      %v1647 = vmax.f32 %v1557, 0.0
      %v1648 = vmax.f32 %v1559, 0.0
      %v1649 = vmax.f32 %v1222, 0.0
      %v1650 = vmax.f32 %v1224, 0.0
      %v1651 = vmax.f32 %v1335, 0.0
      %v1652 = vmax.f32 %v1337, 0.0
      %v1653 = vmax.f32 %v1448, 0.0
      %v1654 = vmax.f32 %v1450, 0.0
      %v1655 = vmax.f32 %v1561, 0.0
      %v1656 = vmax.f32 %v1563, 0.0
      %v1657 = vmax.f32 %v1228, 0.0
      %v1658 = vmax.f32 %v1230, 0.0
      %v1659 = vmax.f32 %v1341, 0.0
      %v1660 = vmax.f32 %v1343, 0.0
      %v1661 = vmax.f32 %v1454, 0.0
      %v1662 = vmax.f32 %v1456, 0.0
      %v1663 = vmax.f32 %v1567, 0.0
      %v1664 = vmax.f32 %v1569, 0.0
      %v1665 = vmax.f32 %v1232, 0.0
      %v1666 = vmax.f32 %v1234, 0.0
      %v1667 = vmax.f32 %v1345, 0.0
      %v1668 = vmax.f32 %v1347, 0.0
      %v1669 = vmax.f32 %v1458, 0.0
      %v1670 = vmax.f32 %v1460, 0.0
      %v1671 = vmax.f32 %v1571, 0.0
      %v1672 = vmax.f32 %v1573, 0.0
      %v1673 = vmax.f32 %v1238, 0.0
      %v1674 = vmax.f32 %v1240, 0.0
      %v1675 = vmax.f32 %v1351, 0.0
      %v1676 = vmax.f32 %v1353, 0.0
      %v1677 = vmax.f32 %v1464, 0.0
      %v1678 = vmax.f32 %v1466, 0.0
      %v1679 = vmax.f32 %v1577, 0.0
      %v1680 = vmax.f32 %v1579, 0.0
      %v1681 = vmax.f32 %v1242, 0.0
      %v1682 = vmax.f32 %v1244, 0.0
      %v1683 = vmax.f32 %v1355, 0.0
      %v1684 = vmax.f32 %v1357, 0.0
      %v1685 = vmax.f32 %v1468, 0.0
      %v1686 = vmax.f32 %v1470, 0.0
      %v1687 = vmax.f32 %v1581, 0.0
      %v1688 = vmax.f32 %v1583, 0.0
      %v1689 = vmax.f32 %v1248, 0.0
      %v1690 = vmax.f32 %v1250, 0.0
      %v1691 = vmax.f32 %v1361, 0.0
      %v1692 = vmax.f32 %v1363, 0.0
      %v1693 = vmax.f32 %v1474, 0.0
      %v1694 = vmax.f32 %v1476, 0.0
      %v1695 = vmax.f32 %v1587, 0.0
      %v1696 = vmax.f32 %v1589, 0.0
      %v1697 = vmax.f32 %v1252, 0.0
      %v1698 = vmax.f32 %v1254, 0.0
      %v1699 = vmax.f32 %v1365, 0.0
      %v1700 = vmax.f32 %v1367, 0.0
      %v1701 = vmax.f32 %v1478, 0.0
      %v1702 = vmax.f32 %v1480, 0.0
      %v1703 = vmax.f32 %v1591, 0.0
      %v1704 = vmax.f32 %v1593, 0.0
      %v1705 = vmax.f32 %v1258, 0.0
      %v1706 = vmax.f32 %v1260, 0.0
      %v1707 = vmax.f32 %v1371, 0.0
      %v1708 = vmax.f32 %v1373, 0.0
      %v1709 = vmax.f32 %v1484, 0.0
      %v1710 = vmax.f32 %v1486, 0.0
      %v1711 = vmax.f32 %v1597, 0.0
      %v1712 = vmax.f32 %v1599, 0.0
      %v1713 = vmax.f32 %v1262, 0.0
      %v1714 = vmax.f32 %v1264, 0.0
      %v1715 = vmax.f32 %v1375, 0.0
      %v1716 = vmax.f32 %v1377, 0.0
      %v1717 = vmax.f32 %v1488, 0.0
      %v1718 = vmax.f32 %v1490, 0.0
      %v1719 = vmax.f32 %v1601, 0.0
      %v1720 = vmax.f32 %v1603, 0.0
      %v1721 = vmax.f32 %v1268, 0.0
      %v1722 = vmax.f32 %v1270, 0.0
      %v1723 = vmax.f32 %v1381, 0.0
      %v1724 = vmax.f32 %v1383, 0.0
      %v1725 = vmax.f32 %v1494, 0.0
      %v1726 = vmax.f32 %v1496, 0.0
      %v1727 = vmax.f32 %v1607, 0.0
      %v1728 = vmax.f32 %v1609, 0.0
      %v1729 = vmax.f32 %v1272, 0.0
      %v1730 = vmax.f32 %v1274, 0.0
      %v1731 = vmax.f32 %v1385, 0.0
      %v1732 = vmax.f32 %v1387, 0.0
      %v1733 = vmax.f32 %v1498, 0.0
      %v1734 = vmax.f32 %v1500, 0.0
      %v1735 = vmax.f32 %v1611, 0.0
      %v1736 = vmax.f32 %v1613, 0.0
      %v1737 = vmax.f32 %v1278, 0.0
      %v1738 = vmax.f32 %v1280, 0.0
      %v1739 = vmax.f32 %v1391, 0.0
      %v1740 = vmax.f32 %v1393, 0.0
      %v1741 = vmax.f32 %v1504, 0.0
      %v1742 = vmax.f32 %v1506, 0.0
      %v1743 = vmax.f32 %v1617, 0.0
      %v1744 = vmax.f32 %v1619, 0.0
      %v1745 = vmax.f32 %v1282, 0.0
      %v1746 = vmax.f32 %v1284, 0.0
      %v1747 = vmax.f32 %v1395, 0.0
      %v1748 = vmax.f32 %v1397, 0.0
      %v1749 = vmax.f32 %v1508, 0.0
      %v1750 = vmax.f32 %v1510, 0.0
      %v1751 = vmax.f32 %v1621, 0.0
      %v1752 = vmax.f32 %v1623, 0.0
      %v1753 = vpack.c.bf16 %v1633, %v1625
      %v1754 = vpack.c.bf16 %v1634, %v1626
      %v1755 = vpack.c.bf16 %v1635, %v1627
      %v1756 = vpack.c.bf16 %v1636, %v1628
      %v1757 = vpack.c.bf16 %v1637, %v1629
      %v1758 = vpack.c.bf16 %v1638, %v1630
      %v1759 = vpack.c.bf16 %v1639, %v1631
      %v1760 = vpack.c.bf16 %v1640, %v1632
      %v1761 = vpack.c.bf16 %v1649, %v1641
      %v1762 = vpack.c.bf16 %v1650, %v1642
      %v1763 = vpack.c.bf16 %v1651, %v1643
      %v1764 = vpack.c.bf16 %v1652, %v1644
      %v1765 = vpack.c.bf16 %v1653, %v1645
      %v1766 = vpack.c.bf16 %v1654, %v1646
      %v1767 = vpack.c.bf16 %v1655, %v1647
      %v1768 = vpack.c.bf16 %v1656, %v1648
      %v1769 = vpack.c.bf16 %v1665, %v1657
      %v1770 = vpack.c.bf16 %v1666, %v1658
      %v1771 = vpack.c.bf16 %v1667, %v1659
      %v1772 = vpack.c.bf16 %v1668, %v1660
      %v1773 = vpack.c.bf16 %v1669, %v1661
      %v1774 = vpack.c.bf16 %v1670, %v1662
      %v1775 = vpack.c.bf16 %v1671, %v1663
      %v1776 = vpack.c.bf16 %v1672, %v1664
      %v1777 = vpack.c.bf16 %v1681, %v1673
      %v1778 = vpack.c.bf16 %v1682, %v1674
      %v1779 = vpack.c.bf16 %v1683, %v1675
      %v1780 = vpack.c.bf16 %v1684, %v1676
      %v1781 = vpack.c.bf16 %v1685, %v1677
      %v1782 = vpack.c.bf16 %v1686, %v1678
      %v1783 = vpack.c.bf16 %v1687, %v1679
      %v1784 = vpack.c.bf16 %v1688, %v1680
      %v1785 = vpack.c.bf16 %v1697, %v1689
      %v1786 = vpack.c.bf16 %v1698, %v1690
      %v1787 = vpack.c.bf16 %v1699, %v1691
      %v1788 = vpack.c.bf16 %v1700, %v1692
      %v1789 = vpack.c.bf16 %v1701, %v1693
      %v1790 = vpack.c.bf16 %v1702, %v1694
      %v1791 = vpack.c.bf16 %v1703, %v1695
      %v1792 = vpack.c.bf16 %v1704, %v1696
      %v1793 = vpack.c.bf16 %v1713, %v1705
      %v1794 = vpack.c.bf16 %v1714, %v1706
      %v1795 = vpack.c.bf16 %v1715, %v1707
      %v1796 = vpack.c.bf16 %v1716, %v1708
      %v1797 = vpack.c.bf16 %v1717, %v1709
      %v1798 = vpack.c.bf16 %v1718, %v1710
      %v1799 = vpack.c.bf16 %v1719, %v1711
      %v1800 = vpack.c.bf16 %v1720, %v1712
      %v1801 = vpack.c.bf16 %v1729, %v1721
      %v1802 = vpack.c.bf16 %v1730, %v1722
      %v1803 = vpack.c.bf16 %v1731, %v1723
      %v1804 = vpack.c.bf16 %v1732, %v1724
      %v1805 = vpack.c.bf16 %v1733, %v1725
      %v1806 = vpack.c.bf16 %v1734, %v1726
      %v1807 = vpack.c.bf16 %v1735, %v1727
      %v1808 = vpack.c.bf16 %v1736, %v1728
      %v1809 = vpack.c.bf16 %v1745, %v1737
      %v1810 = vpack.c.bf16 %v1746, %v1738
      %v1811 = vpack.c.bf16 %v1747, %v1739
      %v1812 = vpack.c.bf16 %v1748, %v1740
      %v1813 = vpack.c.bf16 %v1749, %v1741
      %v1814 = vpack.c.bf16 %v1750, %v1742
      %v1815 = vpack.c.bf16 %v1751, %v1743
      %v1816 = vpack.c.bf16 %v1752, %v1744
      %v1817 = vld [vmem:[%s5] sm:$0xf]
      %v1818 = vld [vmem:[%s5 + $0x4] sm:$0xf]
      %v1819 = vld [vmem:[%s5 + $0x8] sm:$0xf]
      %v1820 = vld [vmem:[%s5 + $0xc] sm:$0xf]
      %v1821 = vld [vmem:[%s5 + $0x10] sm:$0xf]
      %v1822 = vld [vmem:[%s5 + $0x14] sm:$0xf]
      %v1823 = vld [vmem:[%s5 + $0x18] sm:$0xf]
      %v1824 = vld [vmem:[%s5 + $0x1c] sm:$0xf]
      %v1825 = vld [vmem:[%s5 + $0x20] sm:$0xf]
      %v1826 = vld [vmem:[%s5 + $0x24] sm:$0xf]
      %v1827 = vld [vmem:[%s5 + $0x28] sm:$0xf]
      %v1828 = vld [vmem:[%s5 + $0x2c] sm:$0xf]
      %v1829 = vld [vmem:[%s5 + $0x30] sm:$0xf]
      %v1830 = vld [vmem:[%s5 + $0x34] sm:$0xf]
      %v1831 = vld [vmem:[%s5 + $0x38] sm:$0xf]
      %v1832 = vld [vmem:[%s5 + $0x3c] sm:$0xf]
      %v1833 = vld [vmem:[%s5 + $0x40] sm:$0xf]
      %v1834 = vld [vmem:[%s5 + $0x44] sm:$0xf]
      %v1835 = vld [vmem:[%s5 + $0x48] sm:$0xf]
      %v1836 = vld [vmem:[%s5 + $0x4c] sm:$0xf]
      %v1837 = vld [vmem:[%s5 + $0x50] sm:$0xf]
      %v1838 = vld [vmem:[%s5 + $0x54] sm:$0xf]
      %v1839 = vld [vmem:[%s5 + $0x58] sm:$0xf]
      %v1840 = vld [vmem:[%s5 + $0x5c] sm:$0xf]
      %v1841 = vld [vmem:[%s5 + $0x60] sm:$0xf]
      %v1842 = vld [vmem:[%s5 + $0x64] sm:$0xf]
      %v1843 = vld [vmem:[%s5 + $0x68] sm:$0xf]
      %v1844 = vld [vmem:[%s5 + $0x6c] sm:$0xf]
      %v1845 = vld [vmem:[%s5 + $0x70] sm:$0xf]
      %v1846 = vld [vmem:[%s5 + $0x74] sm:$0xf]
      %v1847 = vld [vmem:[%s5 + $0x78] sm:$0xf]
      %v1848 = vld [vmem:[%s5 + $0x7c] sm:$0xf]
      %v1881 = vunpack.c.l.b16 %v1817
      %v1882 = vunpack.c.l.b16 %v1818
      %v1883 = vunpack.c.l.b16 %v1819
      %v1884 = vunpack.c.l.b16 %v1820
      %v1885 = vunpack.c.l.b16 %v1821
      %v1886 = vunpack.c.l.b16 %v1822
      %v1887 = vunpack.c.l.b16 %v1823
      %v1888 = vunpack.c.l.b16 %v1824
      %v1889 = vunpack.c.l.b16 %v1825
      %v1890 = vunpack.c.l.b16 %v1826
      %v1891 = vunpack.c.l.b16 %v1827
      %v1892 = vunpack.c.l.b16 %v1828
      %v1893 = vunpack.c.l.b16 %v1829
      %v1894 = vunpack.c.l.b16 %v1830
      %v1895 = vunpack.c.l.b16 %v1831
      %v1896 = vunpack.c.l.b16 %v1832
      %v1897 = vunpack.c.l.b16 %v1833
      %v1898 = vunpack.c.l.b16 %v1834
      %v1899 = vunpack.c.l.b16 %v1835
      %v1900 = vunpack.c.l.b16 %v1836
      %v1901 = vunpack.c.l.b16 %v1837
      %v1902 = vunpack.c.l.b16 %v1838
      %v1903 = vunpack.c.l.b16 %v1839
      %v1904 = vunpack.c.l.b16 %v1840
      %v1905 = vunpack.c.l.b16 %v1841
      %v1906 = vunpack.c.l.b16 %v1842
      %v1907 = vunpack.c.l.b16 %v1843
      %v1908 = vunpack.c.l.b16 %v1844
      %v1909 = vunpack.c.l.b16 %v1845
      %v1910 = vunpack.c.l.b16 %v1846
      %v1911 = vunpack.c.l.b16 %v1847
      %v1912 = vunpack.c.l.b16 %v1848
      %v1913 = vpack.c.b16 %v1882, %v1881
      %v1914 = vpack.c.b16 %v1884, %v1883
      %v1915 = vpack.c.b16 %v1886, %v1885
      %v1916 = vpack.c.b16 %v1888, %v1887
      %v1917 = vpack.c.b16 %v1890, %v1889
      %v1918 = vpack.c.b16 %v1892, %v1891
      %v1919 = vpack.c.b16 %v1894, %v1893
      %v1920 = vpack.c.b16 %v1896, %v1895
      %v1921 = vpack.c.b16 %v1898, %v1897
      %v1922 = vpack.c.b16 %v1900, %v1899
      %v1923 = vpack.c.b16 %v1902, %v1901
      %v1924 = vpack.c.b16 %v1904, %v1903
      %v1925 = vpack.c.b16 %v1906, %v1905
      %v1926 = vpack.c.b16 %v1908, %v1907
      %v1927 = vpack.c.b16 %v1910, %v1909
      %v1928 = vpack.c.b16 %v1912, %v1911
      %1945 = vmatprep.subr.bf16.mxu0 %v1810
      %1946 = vmatpush1.bf16.msra.mxu0 %v1809
      %1947 = vmatprep.subr.bf16.mxu0 %v1802
      %1948 = vmatpush1.bf16.msra.mxu0 %v1801
      %1949 = vmatprep.subr.bf16.mxu0 %v1794
      %1950 = vmatpush1.bf16.msra.mxu0 %v1793
      %1951 = vmatprep.subr.bf16.mxu0 %v1786
      %1952 = vmatpush1.bf16.msra.mxu0 %v1785
      %1953 = vmatprep.subr.bf16.mxu0 %v1778
      %1954 = vmatpush1.bf16.msra.mxu0 %v1777
      %1955 = vmatprep.subr.bf16.mxu0 %v1770
      %1956 = vmatpush1.bf16.msra.mxu0 %v1769
      %1957 = vmatprep.subr.bf16.mxu0 %v1762
      %1958 = vmatpush1.bf16.msra.mxu0 %v1761
      %1959 = vmatprep.subr.bf16.mxu0 %v1754
      %1960 = vmatpush1.bf16.msra.mxu0 %v1753
      %1961 = vmatprep.subr.bf16.mxu0 0
      %1962 = vmatpush2.bf16.msra.mxu0 0
      %1963 = vmatprep.subr.bf16.mxu0 0
      %1964 = vmatpush2.bf16.msra.mxu0 0
      %1965 = vmatprep.subr.bf16.mxu0 0
      %1966 = vmatpush2.bf16.msra.mxu0 0
      %1967 = vmatprep.subr.bf16.mxu0 0
      %1968 = vmatpush2.bf16.msra.mxu0 0
      %1969 = vmatprep.subr.bf16.mxu0 0
      %1970 = vmatpush2.bf16.msra.mxu0 0
      %1971 = vmatprep.subr.bf16.mxu0 0
      %1972 = vmatpush2.bf16.msra.mxu0 0
      %1973 = vmatprep.subr.bf16.mxu0 0
      %1974 = vmatpush2.bf16.msra.mxu0 0
      %1975 = vmatprep.subr.bf16.mxu0 0
      %1976 = vmatpush2.bf16.msra.mxu0 0
      %1977 = vmatprep.mubr.bf16.mxu0 0
      %1978 = vmatmul.mubr.bf16.gmra.mxu0 %v1913
      %v1979 = vpop.f32.mrf.mxu0
      %v1980 = vadd.f32 0.0, %v1979
      %v1981 = vpop.f32.mrf.mxu0
      %v1982 = vadd.f32 0.0, %v1981
      %v1983 = vpop.f32.mrf.mxu0
      %v1984 = vadd.f32 0.0, %v1983
      %v1985 = vpop.f32.mrf.mxu0
      %v1986 = vadd.f32 0.0, %v1985
      %1987 = vmatprep.mubr.bf16.mxu0 0
      %1988 = vmatmul.mubr.bf16.gmra.mxu0 %v1914
      %v1989 = vpop.f32.mrf.mxu0
      %v1990 = vadd.f32 0.0, %v1989
      %v1991 = vpop.f32.mrf.mxu0
      %v1992 = vadd.f32 0.0, %v1991
      %v1993 = vpop.f32.mrf.mxu0
      %v1994 = vadd.f32 0.0, %v1993
      %v1995 = vpop.f32.mrf.mxu0
      %v1996 = vadd.f32 0.0, %v1995
      %1997 = vmatprep.mubr.bf16.mxu0 0
      %1998 = vmatmul.mubr.bf16.gmra.mxu0 %v1915
      %v1999 = vpop.f32.mrf.mxu0
      %v2000 = vadd.f32 0.0, %v1999
      %v2001 = vpop.f32.mrf.mxu0
      %v2002 = vadd.f32 0.0, %v2001
      %v2003 = vpop.f32.mrf.mxu0
      %v2004 = vadd.f32 0.0, %v2003
      %v2005 = vpop.f32.mrf.mxu0
      %v2006 = vadd.f32 0.0, %v2005
      %2007 = vmatprep.mubr.bf16.mxu0 0
      %2008 = vmatmul.mubr.bf16.gmra.mxu0 %v1916
      %v2009 = vpop.f32.mrf.mxu0
      %v2010 = vadd.f32 0.0, %v2009
      %v2011 = vpop.f32.mrf.mxu0
      %v2012 = vadd.f32 0.0, %v2011
      %v2013 = vpop.f32.mrf.mxu0
      %v2014 = vadd.f32 0.0, %v2013
      %v2015 = vpop.f32.mrf.mxu0
      %v2016 = vadd.f32 0.0, %v2015
      %2017 = vmatprep.mubr.bf16.mxu0 0
      %2018 = vmatmul.mubr.bf16.gmra.mxu0 %v1917
      %v2019 = vpop.f32.mrf.mxu0
      %v2020 = vadd.f32 0.0, %v2019
      %v2021 = vpop.f32.mrf.mxu0
      %v2022 = vadd.f32 0.0, %v2021
      %v2023 = vpop.f32.mrf.mxu0
      %v2024 = vadd.f32 0.0, %v2023
      %v2025 = vpop.f32.mrf.mxu0
      %v2026 = vadd.f32 0.0, %v2025
      %2027 = vmatprep.mubr.bf16.mxu0 0
      %2028 = vmatmul.mubr.bf16.gmra.mxu0 %v1918
      %v2029 = vpop.f32.mrf.mxu0
      %v2030 = vadd.f32 0.0, %v2029
      %v2031 = vpop.f32.mrf.mxu0
      %v2032 = vadd.f32 0.0, %v2031
      %v2033 = vpop.f32.mrf.mxu0
      %v2034 = vadd.f32 0.0, %v2033
      %v2035 = vpop.f32.mrf.mxu0
      %v2036 = vadd.f32 0.0, %v2035
      %2037 = vmatprep.mubr.bf16.mxu0 0
      %2038 = vmatmul.mubr.bf16.gmra.mxu0 %v1919
      %v2039 = vpop.f32.mrf.mxu0
      %v2040 = vadd.f32 0.0, %v2039
      %v2041 = vpop.f32.mrf.mxu0
      %v2042 = vadd.f32 0.0, %v2041
      %v2043 = vpop.f32.mrf.mxu0
      %v2044 = vadd.f32 0.0, %v2043
      %v2045 = vpop.f32.mrf.mxu0
      %v2046 = vadd.f32 0.0, %v2045
      %2047 = vmatprep.mubr.bf16.mxu0 0
      %2048 = vmatmul.mubr.bf16.gmra.mxu0 %v1920
      %v2049 = vpop.f32.mrf.mxu0
      %v2050 = vadd.f32 0.0, %v2049
      %v2051 = vpop.f32.mrf.mxu0
      %v2052 = vadd.f32 0.0, %v2051
      %v2053 = vpop.f32.mrf.mxu0
      %v2054 = vadd.f32 0.0, %v2053
      %v2055 = vpop.f32.mrf.mxu0
      %v2056 = vadd.f32 0.0, %v2055
      %2057 = vmatprep.mubr.bf16.mxu0 0
      %2058 = vmatmul.mubr.bf16.gmra.mxu0 %v1921
      %v2059 = vpop.f32.mrf.mxu0
      %v2060 = vadd.f32 0.0, %v2059
      %v2061 = vpop.f32.mrf.mxu0
      %v2062 = vadd.f32 0.0, %v2061
      %v2063 = vpop.f32.mrf.mxu0
      %v2064 = vadd.f32 0.0, %v2063
      %v2065 = vpop.f32.mrf.mxu0
      %v2066 = vadd.f32 0.0, %v2065
      %2067 = vmatprep.mubr.bf16.mxu0 0
      %2068 = vmatmul.mubr.bf16.gmra.mxu0 %v1922
      %v2069 = vpop.f32.mrf.mxu0
      %v2070 = vadd.f32 0.0, %v2069
      %v2071 = vpop.f32.mrf.mxu0
      %v2072 = vadd.f32 0.0, %v2071
      %v2073 = vpop.f32.mrf.mxu0
      %v2074 = vadd.f32 0.0, %v2073
      %v2075 = vpop.f32.mrf.mxu0
      %v2076 = vadd.f32 0.0, %v2075
      %2077 = vmatprep.mubr.bf16.mxu0 0
      %2078 = vmatmul.mubr.bf16.gmra.mxu0 %v1923
      %v2079 = vpop.f32.mrf.mxu0
      %v2080 = vadd.f32 0.0, %v2079
      %v2081 = vpop.f32.mrf.mxu0
      %v2082 = vadd.f32 0.0, %v2081
      %v2083 = vpop.f32.mrf.mxu0
      %v2084 = vadd.f32 0.0, %v2083
      %v2085 = vpop.f32.mrf.mxu0
      %v2086 = vadd.f32 0.0, %v2085
      %2087 = vmatprep.mubr.bf16.mxu0 0
      %2088 = vmatmul.mubr.bf16.gmra.mxu0 %v1924
      %v2089 = vpop.f32.mrf.mxu0
      %v2090 = vadd.f32 0.0, %v2089
      %v2091 = vpop.f32.mrf.mxu0
      %v2092 = vadd.f32 0.0, %v2091
      %v2093 = vpop.f32.mrf.mxu0
      %v2094 = vadd.f32 0.0, %v2093
      %v2095 = vpop.f32.mrf.mxu0
      %v2096 = vadd.f32 0.0, %v2095
      %2097 = vmatprep.mubr.bf16.mxu0 0
      %2098 = vmatmul.mubr.bf16.gmra.mxu0 %v1925
      %v2099 = vpop.f32.mrf.mxu0
      %v2100 = vadd.f32 0.0, %v2099
      %v2101 = vpop.f32.mrf.mxu0
      %v2102 = vadd.f32 0.0, %v2101
      %v2103 = vpop.f32.mrf.mxu0
      %v2104 = vadd.f32 0.0, %v2103
      %v2105 = vpop.f32.mrf.mxu0
      %v2106 = vadd.f32 0.0, %v2105
      %2107 = vmatprep.mubr.bf16.mxu0 0
      %2108 = vmatmul.mubr.bf16.gmra.mxu0 %v1926
      %v2109 = vpop.f32.mrf.mxu0
      %v2110 = vadd.f32 0.0, %v2109
      %v2111 = vpop.f32.mrf.mxu0
      %v2112 = vadd.f32 0.0, %v2111
      %v2113 = vpop.f32.mrf.mxu0
      %v2114 = vadd.f32 0.0, %v2113
      %v2115 = vpop.f32.mrf.mxu0
      %v2116 = vadd.f32 0.0, %v2115
      %2117 = vmatprep.mubr.bf16.mxu0 0
      %2118 = vmatmul.mubr.bf16.gmra.mxu0 %v1927
      %v2119 = vpop.f32.mrf.mxu0
      %v2120 = vadd.f32 0.0, %v2119
      %v2121 = vpop.f32.mrf.mxu0
      %v2122 = vadd.f32 0.0, %v2121
      %v2123 = vpop.f32.mrf.mxu0
      %v2124 = vadd.f32 0.0, %v2123
      %v2125 = vpop.f32.mrf.mxu0
      %v2126 = vadd.f32 0.0, %v2125
      %2127 = vmatprep.mubr.bf16.mxu0 0
      %2128 = vmatmul.mubr.bf16.gmra.mxu0 %v1928
      %v2129 = vpop.f32.mrf.mxu0
      %v2130 = vadd.f32 0.0, %v2129
      %v2131 = vpop.f32.mrf.mxu0
      %v2132 = vadd.f32 0.0, %v2131
      %v2133 = vpop.f32.mrf.mxu0
      %v2134 = vadd.f32 0.0, %v2133
      %v2135 = vpop.f32.mrf.mxu0
      %v2136 = vadd.f32 0.0, %v2135
      %2137 = vdwg.mxu0
      %2138 = vmatprep.subr.bf16.mxu0 %v1812
      %2139 = vmatpush1.bf16.msra.mxu0 %v1811
      %2140 = vmatprep.subr.bf16.mxu0 %v1804
      %2141 = vmatpush1.bf16.msra.mxu0 %v1803
      %2142 = vmatprep.subr.bf16.mxu0 %v1796
      %2143 = vmatpush1.bf16.msra.mxu0 %v1795
      %2144 = vmatprep.subr.bf16.mxu0 %v1788
      %2145 = vmatpush1.bf16.msra.mxu0 %v1787
      %2146 = vmatprep.subr.bf16.mxu0 %v1780
      %2147 = vmatpush1.bf16.msra.mxu0 %v1779
      %2148 = vmatprep.subr.bf16.mxu0 %v1772
      %2149 = vmatpush1.bf16.msra.mxu0 %v1771
      %2150 = vmatprep.subr.bf16.mxu0 %v1764
      %2151 = vmatpush1.bf16.msra.mxu0 %v1763
      %2152 = vmatprep.subr.bf16.mxu0 %v1756
      %2153 = vmatpush1.bf16.msra.mxu0 %v1755
      %2154 = vmatprep.subr.bf16.mxu0 0
      %2155 = vmatpush2.bf16.msra.mxu0 0
      %2156 = vmatprep.subr.bf16.mxu0 0
      %2157 = vmatpush2.bf16.msra.mxu0 0
      %2158 = vmatprep.subr.bf16.mxu0 0
      %2159 = vmatpush2.bf16.msra.mxu0 0
      %2160 = vmatprep.subr.bf16.mxu0 0
      %2161 = vmatpush2.bf16.msra.mxu0 0
      %2162 = vmatprep.subr.bf16.mxu0 0
      %2163 = vmatpush2.bf16.msra.mxu0 0
      %2164 = vmatprep.subr.bf16.mxu0 0
      %2165 = vmatpush2.bf16.msra.mxu0 0
      %2166 = vmatprep.subr.bf16.mxu0 0
      %2167 = vmatpush2.bf16.msra.mxu0 0
      %2168 = vmatprep.subr.bf16.mxu0 0
      %2169 = vmatpush2.bf16.msra.mxu0 0
      %2170 = vmatprep.mubr.bf16.mxu0 0
      %2171 = vmatmul.mubr.bf16.gmra.mxu0 %v1913
      %v2172 = vpop.f32.mrf.mxu0
      %v2173 = vadd.f32 0.0, %v2172
      %v2174 = vpop.f32.mrf.mxu0
      %v2175 = vadd.f32 0.0, %v2174
      %v2176 = vpop.f32.mrf.mxu0
      %v2177 = vadd.f32 0.0, %v2176
      %v2178 = vpop.f32.mrf.mxu0
      %v2179 = vadd.f32 0.0, %v2178
      %2180 = vmatprep.mubr.bf16.mxu0 0
      %2181 = vmatmul.mubr.bf16.gmra.mxu0 %v1914
      %v2182 = vpop.f32.mrf.mxu0
      %v2183 = vadd.f32 0.0, %v2182
      %v2184 = vpop.f32.mrf.mxu0
      %v2185 = vadd.f32 0.0, %v2184
      %v2186 = vpop.f32.mrf.mxu0
      %v2187 = vadd.f32 0.0, %v2186
      %v2188 = vpop.f32.mrf.mxu0
      %v2189 = vadd.f32 0.0, %v2188
      %2190 = vmatprep.mubr.bf16.mxu0 0
      %2191 = vmatmul.mubr.bf16.gmra.mxu0 %v1915
      %v2192 = vpop.f32.mrf.mxu0
      %v2193 = vadd.f32 0.0, %v2192
      %v2194 = vpop.f32.mrf.mxu0
      %v2195 = vadd.f32 0.0, %v2194
      %v2196 = vpop.f32.mrf.mxu0
      %v2197 = vadd.f32 0.0, %v2196
      %v2198 = vpop.f32.mrf.mxu0
      %v2199 = vadd.f32 0.0, %v2198
      %2200 = vmatprep.mubr.bf16.mxu0 0
      %2201 = vmatmul.mubr.bf16.gmra.mxu0 %v1916
      %v2202 = vpop.f32.mrf.mxu0
      %v2203 = vadd.f32 0.0, %v2202
      %v2204 = vpop.f32.mrf.mxu0
      %v2205 = vadd.f32 0.0, %v2204
      %v2206 = vpop.f32.mrf.mxu0
      %v2207 = vadd.f32 0.0, %v2206
      %v2208 = vpop.f32.mrf.mxu0
      %v2209 = vadd.f32 0.0, %v2208
      %2210 = vmatprep.mubr.bf16.mxu0 0
      %2211 = vmatmul.mubr.bf16.gmra.mxu0 %v1917
      %v2212 = vpop.f32.mrf.mxu0
      %v2213 = vadd.f32 0.0, %v2212
      %v2214 = vpop.f32.mrf.mxu0
      %v2215 = vadd.f32 0.0, %v2214
      %v2216 = vpop.f32.mrf.mxu0
      %v2217 = vadd.f32 0.0, %v2216
      %v2218 = vpop.f32.mrf.mxu0
      %v2219 = vadd.f32 0.0, %v2218
      %2220 = vmatprep.mubr.bf16.mxu0 0
      %2221 = vmatmul.mubr.bf16.gmra.mxu0 %v1918
      %v2222 = vpop.f32.mrf.mxu0
      %v2223 = vadd.f32 0.0, %v2222
      %v2224 = vpop.f32.mrf.mxu0
      %v2225 = vadd.f32 0.0, %v2224
      %v2226 = vpop.f32.mrf.mxu0
      %v2227 = vadd.f32 0.0, %v2226
      %v2228 = vpop.f32.mrf.mxu0
      %v2229 = vadd.f32 0.0, %v2228
      %2230 = vmatprep.mubr.bf16.mxu0 0
      %2231 = vmatmul.mubr.bf16.gmra.mxu0 %v1919
      %v2232 = vpop.f32.mrf.mxu0
      %v2233 = vadd.f32 0.0, %v2232
      %v2234 = vpop.f32.mrf.mxu0
      %v2235 = vadd.f32 0.0, %v2234
      %v2236 = vpop.f32.mrf.mxu0
      %v2237 = vadd.f32 0.0, %v2236
      %v2238 = vpop.f32.mrf.mxu0
      %v2239 = vadd.f32 0.0, %v2238
      %2240 = vmatprep.mubr.bf16.mxu0 0
      %2241 = vmatmul.mubr.bf16.gmra.mxu0 %v1920
      %v2242 = vpop.f32.mrf.mxu0
      %v2243 = vadd.f32 0.0, %v2242
      %v2244 = vpop.f32.mrf.mxu0
      %v2245 = vadd.f32 0.0, %v2244
      %v2246 = vpop.f32.mrf.mxu0
      %v2247 = vadd.f32 0.0, %v2246
      %v2248 = vpop.f32.mrf.mxu0
      %v2249 = vadd.f32 0.0, %v2248
      %2250 = vmatprep.mubr.bf16.mxu0 0
      %2251 = vmatmul.mubr.bf16.gmra.mxu0 %v1921
      %v2252 = vpop.f32.mrf.mxu0
      %v2253 = vadd.f32 0.0, %v2252
      %v2254 = vpop.f32.mrf.mxu0
      %v2255 = vadd.f32 0.0, %v2254
      %v2256 = vpop.f32.mrf.mxu0
      %v2257 = vadd.f32 0.0, %v2256
      %v2258 = vpop.f32.mrf.mxu0
      %v2259 = vadd.f32 0.0, %v2258
      %2260 = vmatprep.mubr.bf16.mxu0 0
      %2261 = vmatmul.mubr.bf16.gmra.mxu0 %v1922
      %v2262 = vpop.f32.mrf.mxu0
      %v2263 = vadd.f32 0.0, %v2262
      %v2264 = vpop.f32.mrf.mxu0
      %v2265 = vadd.f32 0.0, %v2264
      %v2266 = vpop.f32.mrf.mxu0
      %v2267 = vadd.f32 0.0, %v2266
      %v2268 = vpop.f32.mrf.mxu0
      %v2269 = vadd.f32 0.0, %v2268
      %2270 = vmatprep.mubr.bf16.mxu0 0
      %2271 = vmatmul.mubr.bf16.gmra.mxu0 %v1923
      %v2272 = vpop.f32.mrf.mxu0
      %v2273 = vadd.f32 0.0, %v2272
      %v2274 = vpop.f32.mrf.mxu0
      %v2275 = vadd.f32 0.0, %v2274
      %v2276 = vpop.f32.mrf.mxu0
      %v2277 = vadd.f32 0.0, %v2276
      %v2278 = vpop.f32.mrf.mxu0
      %v2279 = vadd.f32 0.0, %v2278
      %2280 = vmatprep.mubr.bf16.mxu0 0
      %2281 = vmatmul.mubr.bf16.gmra.mxu0 %v1924
      %v2282 = vpop.f32.mrf.mxu0
      %v2283 = vadd.f32 0.0, %v2282
      %v2284 = vpop.f32.mrf.mxu0
      %v2285 = vadd.f32 0.0, %v2284
      %v2286 = vpop.f32.mrf.mxu0
      %v2287 = vadd.f32 0.0, %v2286
      %v2288 = vpop.f32.mrf.mxu0
      %v2289 = vadd.f32 0.0, %v2288
      %2290 = vmatprep.mubr.bf16.mxu0 0
      %2291 = vmatmul.mubr.bf16.gmra.mxu0 %v1925
      %v2292 = vpop.f32.mrf.mxu0
      %v2293 = vadd.f32 0.0, %v2292
      %v2294 = vpop.f32.mrf.mxu0
      %v2295 = vadd.f32 0.0, %v2294
      %v2296 = vpop.f32.mrf.mxu0
      %v2297 = vadd.f32 0.0, %v2296
      %v2298 = vpop.f32.mrf.mxu0
      %v2299 = vadd.f32 0.0, %v2298
      %2300 = vmatprep.mubr.bf16.mxu0 0
      %2301 = vmatmul.mubr.bf16.gmra.mxu0 %v1926
      %v2302 = vpop.f32.mrf.mxu0
      %v2303 = vadd.f32 0.0, %v2302
      %v2304 = vpop.f32.mrf.mxu0
      %v2305 = vadd.f32 0.0, %v2304
      %v2306 = vpop.f32.mrf.mxu0
      %v2307 = vadd.f32 0.0, %v2306
      %v2308 = vpop.f32.mrf.mxu0
      %v2309 = vadd.f32 0.0, %v2308
      %2310 = vmatprep.mubr.bf16.mxu0 0
      %2311 = vmatmul.mubr.bf16.gmra.mxu0 %v1927
      %v2312 = vpop.f32.mrf.mxu0
      %v2313 = vadd.f32 0.0, %v2312
      %v2314 = vpop.f32.mrf.mxu0
      %v2315 = vadd.f32 0.0, %v2314
      %v2316 = vpop.f32.mrf.mxu0
      %v2317 = vadd.f32 0.0, %v2316
      %v2318 = vpop.f32.mrf.mxu0
      %v2319 = vadd.f32 0.0, %v2318
      %2320 = vmatprep.mubr.bf16.mxu0 0
      %2321 = vmatmul.mubr.bf16.gmra.mxu0 %v1928
      %v2322 = vpop.f32.mrf.mxu0
      %v2323 = vadd.f32 0.0, %v2322
      %v2324 = vpop.f32.mrf.mxu0
      %v2325 = vadd.f32 0.0, %v2324
      %v2326 = vpop.f32.mrf.mxu0
      %v2327 = vadd.f32 0.0, %v2326
      %v2328 = vpop.f32.mrf.mxu0
      %v2329 = vadd.f32 0.0, %v2328
      %2330 = vdwg.mxu0
      %2331 = vmatprep.subr.bf16.mxu0 %v1814
      %2332 = vmatpush1.bf16.msra.mxu0 %v1813
      %2333 = vmatprep.subr.bf16.mxu0 %v1806
      %2334 = vmatpush1.bf16.msra.mxu0 %v1805
      %2335 = vmatprep.subr.bf16.mxu0 %v1798
      %2336 = vmatpush1.bf16.msra.mxu0 %v1797
      %2337 = vmatprep.subr.bf16.mxu0 %v1790
      %2338 = vmatpush1.bf16.msra.mxu0 %v1789
      %2339 = vmatprep.subr.bf16.mxu0 %v1782
      %2340 = vmatpush1.bf16.msra.mxu0 %v1781
      %2341 = vmatprep.subr.bf16.mxu0 %v1774
      %2342 = vmatpush1.bf16.msra.mxu0 %v1773
      %2343 = vmatprep.subr.bf16.mxu0 %v1766
      %2344 = vmatpush1.bf16.msra.mxu0 %v1765
      %2345 = vmatprep.subr.bf16.mxu0 %v1758
      %2346 = vmatpush1.bf16.msra.mxu0 %v1757
      %2347 = vmatprep.subr.bf16.mxu0 0
      %2348 = vmatpush2.bf16.msra.mxu0 0
      %2349 = vmatprep.subr.bf16.mxu0 0
      %2350 = vmatpush2.bf16.msra.mxu0 0
      %2351 = vmatprep.subr.bf16.mxu0 0
      %2352 = vmatpush2.bf16.msra.mxu0 0
      %2353 = vmatprep.subr.bf16.mxu0 0
      %2354 = vmatpush2.bf16.msra.mxu0 0
      %2355 = vmatprep.subr.bf16.mxu0 0
      %2356 = vmatpush2.bf16.msra.mxu0 0
      %2357 = vmatprep.subr.bf16.mxu0 0
      %2358 = vmatpush2.bf16.msra.mxu0 0
      %2359 = vmatprep.subr.bf16.mxu0 0
      %2360 = vmatpush2.bf16.msra.mxu0 0
      %2361 = vmatprep.subr.bf16.mxu0 0
      %2362 = vmatpush2.bf16.msra.mxu0 0
      %2363 = vmatprep.mubr.bf16.mxu0 0
      %2364 = vmatmul.mubr.bf16.gmra.mxu0 %v1913
      %v2365 = vpop.f32.mrf.mxu0
      %v2366 = vadd.f32 0.0, %v2365
      %v2367 = vpop.f32.mrf.mxu0
      %v2368 = vadd.f32 0.0, %v2367
      %v2369 = vpop.f32.mrf.mxu0
      %v2370 = vadd.f32 0.0, %v2369
      %v2371 = vpop.f32.mrf.mxu0
      %v2372 = vadd.f32 0.0, %v2371
      %2373 = vmatprep.mubr.bf16.mxu0 0
      %2374 = vmatmul.mubr.bf16.gmra.mxu0 %v1914
      %v2375 = vpop.f32.mrf.mxu0
      %v2376 = vadd.f32 0.0, %v2375
      %v2377 = vpop.f32.mrf.mxu0
      %v2378 = vadd.f32 0.0, %v2377
      %v2379 = vpop.f32.mrf.mxu0
      %v2380 = vadd.f32 0.0, %v2379
      %v2381 = vpop.f32.mrf.mxu0
      %v2382 = vadd.f32 0.0, %v2381
      %2383 = vmatprep.mubr.bf16.mxu0 0
      %2384 = vmatmul.mubr.bf16.gmra.mxu0 %v1915
      %v2385 = vpop.f32.mrf.mxu0
      %v2386 = vadd.f32 0.0, %v2385
      %v2387 = vpop.f32.mrf.mxu0
      %v2388 = vadd.f32 0.0, %v2387
      %v2389 = vpop.f32.mrf.mxu0
      %v2390 = vadd.f32 0.0, %v2389
      %v2391 = vpop.f32.mrf.mxu0
      %v2392 = vadd.f32 0.0, %v2391
      %2393 = vmatprep.mubr.bf16.mxu0 0
      %2394 = vmatmul.mubr.bf16.gmra.mxu0 %v1916
      %v2395 = vpop.f32.mrf.mxu0
      %v2396 = vadd.f32 0.0, %v2395
      %v2397 = vpop.f32.mrf.mxu0
      %v2398 = vadd.f32 0.0, %v2397
      %v2399 = vpop.f32.mrf.mxu0
      %v2400 = vadd.f32 0.0, %v2399
      %v2401 = vpop.f32.mrf.mxu0
      %v2402 = vadd.f32 0.0, %v2401
      %2403 = vmatprep.mubr.bf16.mxu0 0
      %2404 = vmatmul.mubr.bf16.gmra.mxu0 %v1917
      %v2405 = vpop.f32.mrf.mxu0
      %v2406 = vadd.f32 0.0, %v2405
      %v2407 = vpop.f32.mrf.mxu0
      %v2408 = vadd.f32 0.0, %v2407
      %v2409 = vpop.f32.mrf.mxu0
      %v2410 = vadd.f32 0.0, %v2409
      %v2411 = vpop.f32.mrf.mxu0
      %v2412 = vadd.f32 0.0, %v2411
      %2413 = vmatprep.mubr.bf16.mxu0 0
      %2414 = vmatmul.mubr.bf16.gmra.mxu0 %v1918
      %v2415 = vpop.f32.mrf.mxu0
      %v2416 = vadd.f32 0.0, %v2415
      %v2417 = vpop.f32.mrf.mxu0
      %v2418 = vadd.f32 0.0, %v2417
      %v2419 = vpop.f32.mrf.mxu0
      %v2420 = vadd.f32 0.0, %v2419
      %v2421 = vpop.f32.mrf.mxu0
      %v2422 = vadd.f32 0.0, %v2421
      %2423 = vmatprep.mubr.bf16.mxu0 0
      %2424 = vmatmul.mubr.bf16.gmra.mxu0 %v1919
      %v2425 = vpop.f32.mrf.mxu0
      %v2426 = vadd.f32 0.0, %v2425
      %v2427 = vpop.f32.mrf.mxu0
      %v2428 = vadd.f32 0.0, %v2427
      %v2429 = vpop.f32.mrf.mxu0
      %v2430 = vadd.f32 0.0, %v2429
      %v2431 = vpop.f32.mrf.mxu0
      %v2432 = vadd.f32 0.0, %v2431
      %2433 = vmatprep.mubr.bf16.mxu0 0
      %2434 = vmatmul.mubr.bf16.gmra.mxu0 %v1920
      %v2435 = vpop.f32.mrf.mxu0
      %v2436 = vadd.f32 0.0, %v2435
      %v2437 = vpop.f32.mrf.mxu0
      %v2438 = vadd.f32 0.0, %v2437
      %v2439 = vpop.f32.mrf.mxu0
      %v2440 = vadd.f32 0.0, %v2439
      %v2441 = vpop.f32.mrf.mxu0
      %v2442 = vadd.f32 0.0, %v2441
      %2443 = vmatprep.mubr.bf16.mxu0 0
      %2444 = vmatmul.mubr.bf16.gmra.mxu0 %v1921
      %v2445 = vpop.f32.mrf.mxu0
      %v2446 = vadd.f32 0.0, %v2445
      %v2447 = vpop.f32.mrf.mxu0
      %v2448 = vadd.f32 0.0, %v2447
      %v2449 = vpop.f32.mrf.mxu0
      %v2450 = vadd.f32 0.0, %v2449
      %v2451 = vpop.f32.mrf.mxu0
      %v2452 = vadd.f32 0.0, %v2451
      %2453 = vmatprep.mubr.bf16.mxu0 0
      %2454 = vmatmul.mubr.bf16.gmra.mxu0 %v1922
      %v2455 = vpop.f32.mrf.mxu0
      %v2456 = vadd.f32 0.0, %v2455
      %v2457 = vpop.f32.mrf.mxu0
      %v2458 = vadd.f32 0.0, %v2457
      %v2459 = vpop.f32.mrf.mxu0
      %v2460 = vadd.f32 0.0, %v2459
      %v2461 = vpop.f32.mrf.mxu0
      %v2462 = vadd.f32 0.0, %v2461
      %2463 = vmatprep.mubr.bf16.mxu0 0
      %2464 = vmatmul.mubr.bf16.gmra.mxu0 %v1923
      %v2465 = vpop.f32.mrf.mxu0
      %v2466 = vadd.f32 0.0, %v2465
      %v2467 = vpop.f32.mrf.mxu0
      %v2468 = vadd.f32 0.0, %v2467
      %v2469 = vpop.f32.mrf.mxu0
      %v2470 = vadd.f32 0.0, %v2469
      %v2471 = vpop.f32.mrf.mxu0
      %v2472 = vadd.f32 0.0, %v2471
      %2473 = vmatprep.mubr.bf16.mxu0 0
      %2474 = vmatmul.mubr.bf16.gmra.mxu0 %v1924
      %v2475 = vpop.f32.mrf.mxu0
      %v2476 = vadd.f32 0.0, %v2475
      %v2477 = vpop.f32.mrf.mxu0
      %v2478 = vadd.f32 0.0, %v2477
      %v2479 = vpop.f32.mrf.mxu0
      %v2480 = vadd.f32 0.0, %v2479
      %v2481 = vpop.f32.mrf.mxu0
      %v2482 = vadd.f32 0.0, %v2481
      %2483 = vmatprep.mubr.bf16.mxu0 0
      %2484 = vmatmul.mubr.bf16.gmra.mxu0 %v1925
      %v2485 = vpop.f32.mrf.mxu0
      %v2486 = vadd.f32 0.0, %v2485
      %v2487 = vpop.f32.mrf.mxu0
      %v2488 = vadd.f32 0.0, %v2487
      %v2489 = vpop.f32.mrf.mxu0
      %v2490 = vadd.f32 0.0, %v2489
      %v2491 = vpop.f32.mrf.mxu0
      %v2492 = vadd.f32 0.0, %v2491
      %2493 = vmatprep.mubr.bf16.mxu0 0
      %2494 = vmatmul.mubr.bf16.gmra.mxu0 %v1926
      %v2495 = vpop.f32.mrf.mxu0
      %v2496 = vadd.f32 0.0, %v2495
      %v2497 = vpop.f32.mrf.mxu0
      %v2498 = vadd.f32 0.0, %v2497
      %v2499 = vpop.f32.mrf.mxu0
      %v2500 = vadd.f32 0.0, %v2499
      %v2501 = vpop.f32.mrf.mxu0
      %v2502 = vadd.f32 0.0, %v2501
      %2503 = vmatprep.mubr.bf16.mxu0 0
      %2504 = vmatmul.mubr.bf16.gmra.mxu0 %v1927
      %v2505 = vpop.f32.mrf.mxu0
      %v2506 = vadd.f32 0.0, %v2505
      %v2507 = vpop.f32.mrf.mxu0
      %v2508 = vadd.f32 0.0, %v2507
      %v2509 = vpop.f32.mrf.mxu0
      %v2510 = vadd.f32 0.0, %v2509
      %v2511 = vpop.f32.mrf.mxu0
      %v2512 = vadd.f32 0.0, %v2511
      %2513 = vmatprep.mubr.bf16.mxu0 0
      %2514 = vmatmul.mubr.bf16.gmra.mxu0 %v1928
      %v2515 = vpop.f32.mrf.mxu0
      %v2516 = vadd.f32 0.0, %v2515
      %v2517 = vpop.f32.mrf.mxu0
      %v2518 = vadd.f32 0.0, %v2517
      %v2519 = vpop.f32.mrf.mxu0
      %v2520 = vadd.f32 0.0, %v2519
      %v2521 = vpop.f32.mrf.mxu0
      %v2522 = vadd.f32 0.0, %v2521
      %2523 = vdwg.mxu0
      %2524 = vmatprep.subr.bf16.mxu0 %v1816
      %2525 = vmatpush1.bf16.msra.mxu0 %v1815
      %2526 = vmatprep.subr.bf16.mxu0 %v1808
      %2527 = vmatpush1.bf16.msra.mxu0 %v1807
      %2528 = vmatprep.subr.bf16.mxu0 %v1800
      %2529 = vmatpush1.bf16.msra.mxu0 %v1799
      %2530 = vmatprep.subr.bf16.mxu0 %v1792
      %2531 = vmatpush1.bf16.msra.mxu0 %v1791
      %2532 = vmatprep.subr.bf16.mxu0 %v1784
      %2533 = vmatpush1.bf16.msra.mxu0 %v1783
      %2534 = vmatprep.subr.bf16.mxu0 %v1776
      %2535 = vmatpush1.bf16.msra.mxu0 %v1775
      %2536 = vmatprep.subr.bf16.mxu0 %v1768
      %2537 = vmatpush1.bf16.msra.mxu0 %v1767
      %2538 = vmatprep.subr.bf16.mxu0 %v1760
      %2539 = vmatpush1.bf16.msra.mxu0 %v1759
      %2540 = vmatprep.subr.bf16.mxu0 0
      %2541 = vmatpush2.bf16.msra.mxu0 0
      %2542 = vmatprep.subr.bf16.mxu0 0
      %2543 = vmatpush2.bf16.msra.mxu0 0
      %2544 = vmatprep.subr.bf16.mxu0 0
      %2545 = vmatpush2.bf16.msra.mxu0 0
      %2546 = vmatprep.subr.bf16.mxu0 0
      %2547 = vmatpush2.bf16.msra.mxu0 0
      %2548 = vmatprep.subr.bf16.mxu0 0
      %2549 = vmatpush2.bf16.msra.mxu0 0
      %2550 = vmatprep.subr.bf16.mxu0 0
      %2551 = vmatpush2.bf16.msra.mxu0 0
      %2552 = vmatprep.subr.bf16.mxu0 0
      %2553 = vmatpush2.bf16.msra.mxu0 0
      %2554 = vmatprep.subr.bf16.mxu0 0
      %2555 = vmatpush2.bf16.msra.mxu0 0
      %2556 = vmatprep.mubr.bf16.mxu0 0
      %2557 = vmatmul.mubr.bf16.gmra.mxu0 %v1913
      %v2558 = vpop.f32.mrf.mxu0
      %v2559 = vadd.f32 0.0, %v2558
      %v2560 = vpop.f32.mrf.mxu0
      %v2561 = vadd.f32 0.0, %v2560
      %v2562 = vpop.f32.mrf.mxu0
      %v2563 = vadd.f32 0.0, %v2562
      %v2564 = vpop.f32.mrf.mxu0
      %v2565 = vadd.f32 0.0, %v2564
      %2566 = vmatprep.mubr.bf16.mxu0 0
      %2567 = vmatmul.mubr.bf16.gmra.mxu0 %v1914
      %v2568 = vpop.f32.mrf.mxu0
      %v2569 = vadd.f32 0.0, %v2568
      %v2570 = vpop.f32.mrf.mxu0
      %v2571 = vadd.f32 0.0, %v2570
      %v2572 = vpop.f32.mrf.mxu0
      %v2573 = vadd.f32 0.0, %v2572
      %v2574 = vpop.f32.mrf.mxu0
      %v2575 = vadd.f32 0.0, %v2574
      %2576 = vmatprep.mubr.bf16.mxu0 0
      %2577 = vmatmul.mubr.bf16.gmra.mxu0 %v1915
      %v2578 = vpop.f32.mrf.mxu0
      %v2579 = vadd.f32 0.0, %v2578
      %v2580 = vpop.f32.mrf.mxu0
      %v2581 = vadd.f32 0.0, %v2580
      %v2582 = vpop.f32.mrf.mxu0
      %v2583 = vadd.f32 0.0, %v2582
      %v2584 = vpop.f32.mrf.mxu0
      %v2585 = vadd.f32 0.0, %v2584
      %2586 = vmatprep.mubr.bf16.mxu0 0
      %2587 = vmatmul.mubr.bf16.gmra.mxu0 %v1916
      %v2588 = vpop.f32.mrf.mxu0
      %v2589 = vadd.f32 0.0, %v2588
      %v2590 = vpop.f32.mrf.mxu0
      %v2591 = vadd.f32 0.0, %v2590
      %v2592 = vpop.f32.mrf.mxu0
      %v2593 = vadd.f32 0.0, %v2592
      %v2594 = vpop.f32.mrf.mxu0
      %v2595 = vadd.f32 0.0, %v2594
      %2596 = vmatprep.mubr.bf16.mxu0 0
      %2597 = vmatmul.mubr.bf16.gmra.mxu0 %v1917
      %v2598 = vpop.f32.mrf.mxu0
      %v2599 = vadd.f32 0.0, %v2598
      %v2600 = vpop.f32.mrf.mxu0
      %v2601 = vadd.f32 0.0, %v2600
      %v2602 = vpop.f32.mrf.mxu0
      %v2603 = vadd.f32 0.0, %v2602
      %v2604 = vpop.f32.mrf.mxu0
      %v2605 = vadd.f32 0.0, %v2604
      %2606 = vmatprep.mubr.bf16.mxu0 0
      %2607 = vmatmul.mubr.bf16.gmra.mxu0 %v1918
      %v2608 = vpop.f32.mrf.mxu0
      %v2609 = vadd.f32 0.0, %v2608
      %v2610 = vpop.f32.mrf.mxu0
      %v2611 = vadd.f32 0.0, %v2610
      %v2612 = vpop.f32.mrf.mxu0
      %v2613 = vadd.f32 0.0, %v2612
      %v2614 = vpop.f32.mrf.mxu0
      %v2615 = vadd.f32 0.0, %v2614
      %2616 = vmatprep.mubr.bf16.mxu0 0
      %2617 = vmatmul.mubr.bf16.gmra.mxu0 %v1919
      %v2618 = vpop.f32.mrf.mxu0
      %v2619 = vadd.f32 0.0, %v2618
      %v2620 = vpop.f32.mrf.mxu0
      %v2621 = vadd.f32 0.0, %v2620
      %v2622 = vpop.f32.mrf.mxu0
      %v2623 = vadd.f32 0.0, %v2622
      %v2624 = vpop.f32.mrf.mxu0
      %v2625 = vadd.f32 0.0, %v2624
      %2626 = vmatprep.mubr.bf16.mxu0 0
      %2627 = vmatmul.mubr.bf16.gmra.mxu0 %v1920
      %v2628 = vpop.f32.mrf.mxu0
      %v2629 = vadd.f32 0.0, %v2628
      %v2630 = vpop.f32.mrf.mxu0
      %v2631 = vadd.f32 0.0, %v2630
      %v2632 = vpop.f32.mrf.mxu0
      %v2633 = vadd.f32 0.0, %v2632
      %v2634 = vpop.f32.mrf.mxu0
      %v2635 = vadd.f32 0.0, %v2634
      %2636 = vmatprep.mubr.bf16.mxu0 0
      %2637 = vmatmul.mubr.bf16.gmra.mxu0 %v1921
      %v2638 = vpop.f32.mrf.mxu0
      %v2639 = vadd.f32 0.0, %v2638
      %v2640 = vpop.f32.mrf.mxu0
      %v2641 = vadd.f32 0.0, %v2640
      %v2642 = vpop.f32.mrf.mxu0
      %v2643 = vadd.f32 0.0, %v2642
      %v2644 = vpop.f32.mrf.mxu0
      %v2645 = vadd.f32 0.0, %v2644
      %2646 = vmatprep.mubr.bf16.mxu0 0
      %2647 = vmatmul.mubr.bf16.gmra.mxu0 %v1922
      %v2648 = vpop.f32.mrf.mxu0
      %v2649 = vadd.f32 0.0, %v2648
      %v2650 = vpop.f32.mrf.mxu0
      %v2651 = vadd.f32 0.0, %v2650
      %v2652 = vpop.f32.mrf.mxu0
      %v2653 = vadd.f32 0.0, %v2652
      %v2654 = vpop.f32.mrf.mxu0
      %v2655 = vadd.f32 0.0, %v2654
      %2656 = vmatprep.mubr.bf16.mxu0 0
      %2657 = vmatmul.mubr.bf16.gmra.mxu0 %v1923
      %v2658 = vpop.f32.mrf.mxu0
      %v2659 = vadd.f32 0.0, %v2658
      %v2660 = vpop.f32.mrf.mxu0
      %v2661 = vadd.f32 0.0, %v2660
      %v2662 = vpop.f32.mrf.mxu0
      %v2663 = vadd.f32 0.0, %v2662
      %v2664 = vpop.f32.mrf.mxu0
      %v2665 = vadd.f32 0.0, %v2664
      %2666 = vmatprep.mubr.bf16.mxu0 0
      %2667 = vmatmul.mubr.bf16.gmra.mxu0 %v1924
      %v2668 = vpop.f32.mrf.mxu0
      %v2669 = vadd.f32 0.0, %v2668
      %v2670 = vpop.f32.mrf.mxu0
      %v2671 = vadd.f32 0.0, %v2670
      %v2672 = vpop.f32.mrf.mxu0
      %v2673 = vadd.f32 0.0, %v2672
      %v2674 = vpop.f32.mrf.mxu0
      %v2675 = vadd.f32 0.0, %v2674
      %2676 = vmatprep.mubr.bf16.mxu0 0
      %2677 = vmatmul.mubr.bf16.gmra.mxu0 %v1925
      %v2678 = vpop.f32.mrf.mxu0
      %v2679 = vadd.f32 0.0, %v2678
      %v2680 = vpop.f32.mrf.mxu0
      %v2681 = vadd.f32 0.0, %v2680
      %v2682 = vpop.f32.mrf.mxu0
      %v2683 = vadd.f32 0.0, %v2682
      %v2684 = vpop.f32.mrf.mxu0
      %v2685 = vadd.f32 0.0, %v2684
      %2686 = vmatprep.mubr.bf16.mxu0 0
      %2687 = vmatmul.mubr.bf16.gmra.mxu0 %v1926
      %v2688 = vpop.f32.mrf.mxu0
      %v2689 = vadd.f32 0.0, %v2688
      %v2690 = vpop.f32.mrf.mxu0
      %v2691 = vadd.f32 0.0, %v2690
      %v2692 = vpop.f32.mrf.mxu0
      %v2693 = vadd.f32 0.0, %v2692
      %v2694 = vpop.f32.mrf.mxu0
      %v2695 = vadd.f32 0.0, %v2694
      %2696 = vmatprep.mubr.bf16.mxu0 0
      %2697 = vmatmul.mubr.bf16.gmra.mxu0 %v1927
      %v2698 = vpop.f32.mrf.mxu0
      %v2699 = vadd.f32 0.0, %v2698
      %v2700 = vpop.f32.mrf.mxu0
      %v2701 = vadd.f32 0.0, %v2700
      %v2702 = vpop.f32.mrf.mxu0
      %v2703 = vadd.f32 0.0, %v2702
      %v2704 = vpop.f32.mrf.mxu0
      %v2705 = vadd.f32 0.0, %v2704
      %2706 = vmatprep.mubr.bf16.mxu0 0
      %2707 = vmatmul.mubr.bf16.gmra.mxu0 %v1928
      %v2708 = vpop.f32.mrf.mxu0
      %v2709 = vadd.f32 0.0, %v2708
      %v2710 = vpop.f32.mrf.mxu0
      %v2711 = vadd.f32 0.0, %v2710
      %v2712 = vpop.f32.mrf.mxu0
      %v2713 = vadd.f32 0.0, %v2712
      %v2714 = vpop.f32.mrf.mxu0
      %v2715 = vadd.f32 0.0, %v2714
      %2716 = vdwg.mxu0
      %p2717 = scmp.eq.s32.totalorder %s29, 0
      // Predicated region
      $region73: #{_transformation_net_impl.1} parent=71 // pred_check
        %p2718 = pneg %p2717
      $region74: #{_transformation_net_impl.1} parent=71 // pred_check_branch
        %2720 = sbr.rel (%p2718) target = $region76
      $region75: #{_transformation_net_impl.1} parent=71 // pred_region
        %2721 = vst [vmem:[#allocation2] sm:$0xff] -inf
        %2722 = vst [vmem:[#allocation2 + $0x8] sm:$0xff] -inf
        %2723 = vst [vmem:[#allocation2 + $0x10] sm:$0xff] -inf
        %2724 = vst [vmem:[#allocation2 + $0x18] sm:$0xff] -inf
        %2725 = vst [vmem:[#allocation2 + $0x20] sm:$0xff] -inf
        %2726 = vst [vmem:[#allocation2 + $0x28] sm:$0xff] -inf
        %2727 = vst [vmem:[#allocation2 + $0x30] sm:$0xff] -inf
        %2728 = vst [vmem:[#allocation2 + $0x38] sm:$0xff] -inf
        %2729 = vst [vmem:[#allocation2 + $0x40] sm:$0xff] -inf
        %2730 = vst [vmem:[#allocation2 + $0x48] sm:$0xff] -inf
        %2731 = vst [vmem:[#allocation2 + $0x50] sm:$0xff] -inf
        %2732 = vst [vmem:[#allocation2 + $0x58] sm:$0xff] -inf
        %2733 = vst [vmem:[#allocation2 + $0x60] sm:$0xff] -inf
        %2734 = vst [vmem:[#allocation2 + $0x68] sm:$0xff] -inf
        %2735 = vst [vmem:[#allocation2 + $0x70] sm:$0xff] -inf
        %2736 = vst [vmem:[#allocation2 + $0x78] sm:$0xff] -inf
        %2737 = vst [vmem:[#allocation2 + $0x80] sm:$0xff] -inf
        %2738 = vst [vmem:[#allocation2 + $0x88] sm:$0xff] -inf
        %2739 = vst [vmem:[#allocation2 + $0x90] sm:$0xff] -inf
        %2740 = vst [vmem:[#allocation2 + $0x98] sm:$0xff] -inf
        %2741 = vst [vmem:[#allocation2 + $0xa0] sm:$0xff] -inf
        %2742 = vst [vmem:[#allocation2 + $0xa8] sm:$0xff] -inf
        %2743 = vst [vmem:[#allocation2 + $0xb0] sm:$0xff] -inf
        %2744 = vst [vmem:[#allocation2 + $0xb8] sm:$0xff] -inf
        %2745 = vst [vmem:[#allocation2 + $0xc0] sm:$0xff] -inf
        %2746 = vst [vmem:[#allocation2 + $0xc8] sm:$0xff] -inf
        %2747 = vst [vmem:[#allocation2 + $0xd0] sm:$0xff] -inf
        %2748 = vst [vmem:[#allocation2 + $0xd8] sm:$0xff] -inf
        %2749 = vst [vmem:[#allocation2 + $0xe0] sm:$0xff] -inf
        %2750 = vst [vmem:[#allocation2 + $0xe8] sm:$0xff] -inf
        %2751 = vst [vmem:[#allocation2 + $0xf0] sm:$0xff] -inf
        %2752 = vst [vmem:[#allocation2 + $0xf8] sm:$0xff] -inf
      $region76: #{_transformation_net_impl.1} parent=71 // pred_fallthru
        _
      %v2753 = vmax.f32 %v1980, %v1982
      %v2754 = vmax.f32 %v1984, %v1986
      %v2755 = vmax.f32 %v1990, %v1992
      %v2756 = vmax.f32 %v1994, %v1996
      %v2757 = vmax.f32 %v2000, %v2002
      %v2758 = vmax.f32 %v2004, %v2006
      %v2759 = vmax.f32 %v2010, %v2012
      %v2760 = vmax.f32 %v2014, %v2016
      %v2761 = vmax.f32 %v2020, %v2022
      %v2762 = vmax.f32 %v2024, %v2026
      %v2763 = vmax.f32 %v2030, %v2032
      %v2764 = vmax.f32 %v2034, %v2036
      %v2765 = vmax.f32 %v2040, %v2042
      %v2766 = vmax.f32 %v2044, %v2046
      %v2767 = vmax.f32 %v2050, %v2052
      %v2768 = vmax.f32 %v2054, %v2056
      %v2769 = vmax.f32 %v2060, %v2062
      %v2770 = vmax.f32 %v2064, %v2066
      %v2771 = vmax.f32 %v2070, %v2072
      %v2772 = vmax.f32 %v2074, %v2076
      %v2773 = vmax.f32 %v2080, %v2082
      %v2774 = vmax.f32 %v2084, %v2086
      %v2775 = vmax.f32 %v2090, %v2092
      %v2776 = vmax.f32 %v2094, %v2096
      %v2777 = vmax.f32 %v2100, %v2102
      %v2778 = vmax.f32 %v2104, %v2106
      %v2779 = vmax.f32 %v2110, %v2112
      %v2780 = vmax.f32 %v2114, %v2116
      %v2781 = vmax.f32 %v2120, %v2122
      %v2782 = vmax.f32 %v2124, %v2126
      %v2783 = vmax.f32 %v2130, %v2132
      %v2784 = vmax.f32 %v2134, %v2136
      %v2785 = vmax.f32 %v2753, %v2173
      %v2786 = vmax.f32 %v2754, %v2177
      %v2787 = vmax.f32 %v2755, %v2183
      %v2788 = vmax.f32 %v2756, %v2187
      %v2789 = vmax.f32 %v2757, %v2193
      %v2790 = vmax.f32 %v2758, %v2197
      %v2791 = vmax.f32 %v2759, %v2203
      %v2792 = vmax.f32 %v2760, %v2207
      %v2793 = vmax.f32 %v2761, %v2213
      %v2794 = vmax.f32 %v2762, %v2217
      %v2795 = vmax.f32 %v2763, %v2223
      %v2796 = vmax.f32 %v2764, %v2227
      %v2797 = vmax.f32 %v2765, %v2233
      %v2798 = vmax.f32 %v2766, %v2237
      %v2799 = vmax.f32 %v2767, %v2243
      %v2800 = vmax.f32 %v2768, %v2247
      %v2801 = vmax.f32 %v2769, %v2253
      %v2802 = vmax.f32 %v2770, %v2257
      %v2803 = vmax.f32 %v2771, %v2263
      %v2804 = vmax.f32 %v2772, %v2267
      %v2805 = vmax.f32 %v2773, %v2273
      %v2806 = vmax.f32 %v2774, %v2277
      %v2807 = vmax.f32 %v2775, %v2283
      %v2808 = vmax.f32 %v2776, %v2287
      %v2809 = vmax.f32 %v2777, %v2293
      %v2810 = vmax.f32 %v2778, %v2297
      %v2811 = vmax.f32 %v2779, %v2303
      %v2812 = vmax.f32 %v2780, %v2307
      %v2813 = vmax.f32 %v2781, %v2313
      %v2814 = vmax.f32 %v2782, %v2317
      %v2815 = vmax.f32 %v2783, %v2323
      %v2816 = vmax.f32 %v2784, %v2327
      %v2817 = vmax.f32 %v2785, %v2175
      %v2818 = vmax.f32 %v2786, %v2179
      %v2819 = vmax.f32 %v2787, %v2185
      %v2820 = vmax.f32 %v2788, %v2189
      %v2821 = vmax.f32 %v2789, %v2195
      %v2822 = vmax.f32 %v2790, %v2199
      %v2823 = vmax.f32 %v2791, %v2205
      %v2824 = vmax.f32 %v2792, %v2209
      %v2825 = vmax.f32 %v2793, %v2215
      %v2826 = vmax.f32 %v2794, %v2219
      %v2827 = vmax.f32 %v2795, %v2225
      %v2828 = vmax.f32 %v2796, %v2229
      %v2829 = vmax.f32 %v2797, %v2235
      %v2830 = vmax.f32 %v2798, %v2239
      %v2831 = vmax.f32 %v2799, %v2245
      %v2832 = vmax.f32 %v2800, %v2249
      %v2833 = vmax.f32 %v2801, %v2255
      %v2834 = vmax.f32 %v2802, %v2259
      %v2835 = vmax.f32 %v2803, %v2265
      %v2836 = vmax.f32 %v2804, %v2269
      %v2837 = vmax.f32 %v2805, %v2275
      %v2838 = vmax.f32 %v2806, %v2279
      %v2839 = vmax.f32 %v2807, %v2285
      %v2840 = vmax.f32 %v2808, %v2289
      %v2841 = vmax.f32 %v2809, %v2295
      %v2842 = vmax.f32 %v2810, %v2299
      %v2843 = vmax.f32 %v2811, %v2305
      %v2844 = vmax.f32 %v2812, %v2309
      %v2845 = vmax.f32 %v2813, %v2315
      %v2846 = vmax.f32 %v2814, %v2319
      %v2847 = vmax.f32 %v2815, %v2325
      %v2848 = vmax.f32 %v2816, %v2329
      %v2849 = vmax.f32 %v2817, %v2366
      %v2850 = vmax.f32 %v2818, %v2370
      %v2851 = vmax.f32 %v2819, %v2376
      %v2852 = vmax.f32 %v2820, %v2380
      %v2853 = vmax.f32 %v2821, %v2386
      %v2854 = vmax.f32 %v2822, %v2390
      %v2855 = vmax.f32 %v2823, %v2396
      %v2856 = vmax.f32 %v2824, %v2400
      %v2857 = vmax.f32 %v2825, %v2406
      %v2858 = vmax.f32 %v2826, %v2410
      %v2859 = vmax.f32 %v2827, %v2416
      %v2860 = vmax.f32 %v2828, %v2420
      %v2861 = vmax.f32 %v2829, %v2426
      %v2862 = vmax.f32 %v2830, %v2430
      %v2863 = vmax.f32 %v2831, %v2436
      %v2864 = vmax.f32 %v2832, %v2440
      %v2865 = vmax.f32 %v2833, %v2446
      %v2866 = vmax.f32 %v2834, %v2450
      %v2867 = vmax.f32 %v2835, %v2456
      %v2868 = vmax.f32 %v2836, %v2460
      %v2869 = vmax.f32 %v2837, %v2466
      %v2870 = vmax.f32 %v2838, %v2470
      %v2871 = vmax.f32 %v2839, %v2476
      %v2872 = vmax.f32 %v2840, %v2480
      %v2873 = vmax.f32 %v2841, %v2486
      %v2874 = vmax.f32 %v2842, %v2490
      %v2875 = vmax.f32 %v2843, %v2496
      %v2876 = vmax.f32 %v2844, %v2500
      %v2877 = vmax.f32 %v2845, %v2506
      %v2878 = vmax.f32 %v2846, %v2510
      %v2879 = vmax.f32 %v2847, %v2516
      %v2880 = vmax.f32 %v2848, %v2520
      %v2881 = vmax.f32 %v2849, %v2368
      %v2882 = vmax.f32 %v2850, %v2372
      %v2883 = vmax.f32 %v2851, %v2378
      %v2884 = vmax.f32 %v2852, %v2382
      %v2885 = vmax.f32 %v2853, %v2388
      %v2886 = vmax.f32 %v2854, %v2392
      %v2887 = vmax.f32 %v2855, %v2398
      %v2888 = vmax.f32 %v2856, %v2402
      %v2889 = vmax.f32 %v2857, %v2408
      %v2890 = vmax.f32 %v2858, %v2412
      %v2891 = vmax.f32 %v2859, %v2418
      %v2892 = vmax.f32 %v2860, %v2422
      %v2893 = vmax.f32 %v2861, %v2428
      %v2894 = vmax.f32 %v2862, %v2432
      %v2895 = vmax.f32 %v2863, %v2438
      %v2896 = vmax.f32 %v2864, %v2442
      %v2897 = vmax.f32 %v2865, %v2448
      %v2898 = vmax.f32 %v2866, %v2452
      %v2899 = vmax.f32 %v2867, %v2458
      %v2900 = vmax.f32 %v2868, %v2462
      %v2901 = vmax.f32 %v2869, %v2468
      %v2902 = vmax.f32 %v2870, %v2472
      %v2903 = vmax.f32 %v2871, %v2478
      %v2904 = vmax.f32 %v2872, %v2482
      %v2905 = vmax.f32 %v2873, %v2488
      %v2906 = vmax.f32 %v2874, %v2492
      %v2907 = vmax.f32 %v2875, %v2498
      %v2908 = vmax.f32 %v2876, %v2502
      %v2909 = vmax.f32 %v2877, %v2508
      %v2910 = vmax.f32 %v2878, %v2512
      %v2911 = vmax.f32 %v2879, %v2518
      %v2912 = vmax.f32 %v2880, %v2522
      %v2913 = vmax.f32 %v2881, %v2559
      %v2914 = vmax.f32 %v2882, %v2563
      %v2915 = vmax.f32 %v2883, %v2569
      %v2916 = vmax.f32 %v2884, %v2573
      %v2917 = vmax.f32 %v2885, %v2579
      %v2918 = vmax.f32 %v2886, %v2583
      %v2919 = vmax.f32 %v2887, %v2589
      %v2920 = vmax.f32 %v2888, %v2593
      %v2921 = vmax.f32 %v2889, %v2599
      %v2922 = vmax.f32 %v2890, %v2603
      %v2923 = vmax.f32 %v2891, %v2609
      %v2924 = vmax.f32 %v2892, %v2613
      %v2925 = vmax.f32 %v2893, %v2619
      %v2926 = vmax.f32 %v2894, %v2623
      %v2927 = vmax.f32 %v2895, %v2629
      %v2928 = vmax.f32 %v2896, %v2633
      %v2929 = vmax.f32 %v2897, %v2639
      %v2930 = vmax.f32 %v2898, %v2643
      %v2931 = vmax.f32 %v2899, %v2649
      %v2932 = vmax.f32 %v2900, %v2653
      %v2933 = vmax.f32 %v2901, %v2659
      %v2934 = vmax.f32 %v2902, %v2663
      %v2935 = vmax.f32 %v2903, %v2669
      %v2936 = vmax.f32 %v2904, %v2673
      %v2937 = vmax.f32 %v2905, %v2679
      %v2938 = vmax.f32 %v2906, %v2683
      %v2939 = vmax.f32 %v2907, %v2689
      %v2940 = vmax.f32 %v2908, %v2693
      %v2941 = vmax.f32 %v2909, %v2699
      %v2942 = vmax.f32 %v2910, %v2703
      %v2943 = vmax.f32 %v2911, %v2709
      %v2944 = vmax.f32 %v2912, %v2713
      %v2945 = vmax.f32 %v2913, %v2561
      %v2946 = vmax.f32 %v2914, %v2565
      %v2947 = vmax.f32 %v2915, %v2571
      %v2948 = vmax.f32 %v2916, %v2575
      %v2949 = vmax.f32 %v2917, %v2581
      %v2950 = vmax.f32 %v2918, %v2585
      %v2951 = vmax.f32 %v2919, %v2591
      %v2952 = vmax.f32 %v2920, %v2595
      %v2953 = vmax.f32 %v2921, %v2601
      %v2954 = vmax.f32 %v2922, %v2605
      %v2955 = vmax.f32 %v2923, %v2611
      %v2956 = vmax.f32 %v2924, %v2615
      %v2957 = vmax.f32 %v2925, %v2621
      %v2958 = vmax.f32 %v2926, %v2625
      %v2959 = vmax.f32 %v2927, %v2631
      %v2960 = vmax.f32 %v2928, %v2635
      %v2961 = vmax.f32 %v2929, %v2641
      %v2962 = vmax.f32 %v2930, %v2645
      %v2963 = vmax.f32 %v2931, %v2651
      %v2964 = vmax.f32 %v2932, %v2655
      %v2965 = vmax.f32 %v2933, %v2661
      %v2966 = vmax.f32 %v2934, %v2665
      %v2967 = vmax.f32 %v2935, %v2671
      %v2968 = vmax.f32 %v2936, %v2675
      %v2969 = vmax.f32 %v2937, %v2681
      %v2970 = vmax.f32 %v2938, %v2685
      %v2971 = vmax.f32 %v2939, %v2691
      %v2972 = vmax.f32 %v2940, %v2695
      %v2973 = vmax.f32 %v2941, %v2701
      %v2974 = vmax.f32 %v2942, %v2705
      %v2975 = vmax.f32 %v2943, %v2711
      %v2976 = vmax.f32 %v2944, %v2715
      %v2977 = vld [vmem:[#allocation2] sm:$0xff]
      %v2978 = vld [vmem:[#allocation2 + $0x8] sm:$0xff]
      %v2979 = vld [vmem:[#allocation2 + $0x10] sm:$0xff]
      %v2980 = vld [vmem:[#allocation2 + $0x18] sm:$0xff]
      %v2981 = vld [vmem:[#allocation2 + $0x20] sm:$0xff]
      %v2982 = vld [vmem:[#allocation2 + $0x28] sm:$0xff]
      %v2983 = vld [vmem:[#allocation2 + $0x30] sm:$0xff]
      %v2984 = vld [vmem:[#allocation2 + $0x38] sm:$0xff]
      %v2985 = vld [vmem:[#allocation2 + $0x40] sm:$0xff]
      %v2986 = vld [vmem:[#allocation2 + $0x48] sm:$0xff]
      %v2987 = vld [vmem:[#allocation2 + $0x50] sm:$0xff]
      %v2988 = vld [vmem:[#allocation2 + $0x58] sm:$0xff]
      %v2989 = vld [vmem:[#allocation2 + $0x60] sm:$0xff]
      %v2990 = vld [vmem:[#allocation2 + $0x68] sm:$0xff]
      %v2991 = vld [vmem:[#allocation2 + $0x70] sm:$0xff]
      %v2992 = vld [vmem:[#allocation2 + $0x78] sm:$0xff]
      %v2993 = vld [vmem:[#allocation2 + $0x80] sm:$0xff]
      %v2994 = vld [vmem:[#allocation2 + $0x88] sm:$0xff]
      %v2995 = vld [vmem:[#allocation2 + $0x90] sm:$0xff]
      %v2996 = vld [vmem:[#allocation2 + $0x98] sm:$0xff]
      %v2997 = vld [vmem:[#allocation2 + $0xa0] sm:$0xff]
      %v2998 = vld [vmem:[#allocation2 + $0xa8] sm:$0xff]
      %v2999 = vld [vmem:[#allocation2 + $0xb0] sm:$0xff]
      %v3000 = vld [vmem:[#allocation2 + $0xb8] sm:$0xff]
      %v3001 = vld [vmem:[#allocation2 + $0xc0] sm:$0xff]
      %v3002 = vld [vmem:[#allocation2 + $0xc8] sm:$0xff]
      %v3003 = vld [vmem:[#allocation2 + $0xd0] sm:$0xff]
      %v3004 = vld [vmem:[#allocation2 + $0xd8] sm:$0xff]
      %v3005 = vld [vmem:[#allocation2 + $0xe0] sm:$0xff]
      %v3006 = vld [vmem:[#allocation2 + $0xe8] sm:$0xff]
      %v3007 = vld [vmem:[#allocation2 + $0xf0] sm:$0xff]
      %v3008 = vld [vmem:[#allocation2 + $0xf8] sm:$0xff]
      %v3009 = vmax.f32 %v2977, %v2945
      %v3010 = vmax.f32 %v2978, %v2946
      %v3011 = vmax.f32 %v2979, %v2947
      %v3012 = vmax.f32 %v2980, %v2948
      %v3013 = vmax.f32 %v2981, %v2949
      %v3014 = vmax.f32 %v2982, %v2950
      %v3015 = vmax.f32 %v2983, %v2951
      %v3016 = vmax.f32 %v2984, %v2952
      %v3017 = vmax.f32 %v2985, %v2953
      %v3018 = vmax.f32 %v2986, %v2954
      %v3019 = vmax.f32 %v2987, %v2955
      %v3020 = vmax.f32 %v2988, %v2956
      %v3021 = vmax.f32 %v2989, %v2957
      %v3022 = vmax.f32 %v2990, %v2958
      %v3023 = vmax.f32 %v2991, %v2959
      %v3024 = vmax.f32 %v2992, %v2960
      %v3025 = vmax.f32 %v2993, %v2961
      %v3026 = vmax.f32 %v2994, %v2962
      %v3027 = vmax.f32 %v2995, %v2963
      %v3028 = vmax.f32 %v2996, %v2964
      %v3029 = vmax.f32 %v2997, %v2965
      %v3030 = vmax.f32 %v2998, %v2966
      %v3031 = vmax.f32 %v2999, %v2967
      %v3032 = vmax.f32 %v3000, %v2968
      %v3033 = vmax.f32 %v3001, %v2969
      %v3034 = vmax.f32 %v3002, %v2970
      %v3035 = vmax.f32 %v3003, %v2971
      %v3036 = vmax.f32 %v3004, %v2972
      %v3037 = vmax.f32 %v3005, %v2973
      %v3038 = vmax.f32 %v3006, %v2974
      %v3039 = vmax.f32 %v3007, %v2975
      %v3040 = vmax.f32 %v3008, %v2976
      %3041 = vst [vmem:[#allocation2] sm:$0xff] %v3009
      %3042 = vst [vmem:[#allocation2 + $0x8] sm:$0xff] %v3010
      %3043 = vst [vmem:[#allocation2 + $0x10] sm:$0xff] %v3011
      %3044 = vst [vmem:[#allocation2 + $0x18] sm:$0xff] %v3012
      %3045 = vst [vmem:[#allocation2 + $0x20] sm:$0xff] %v3013
      %3046 = vst [vmem:[#allocation2 + $0x28] sm:$0xff] %v3014
      %3047 = vst [vmem:[#allocation2 + $0x30] sm:$0xff] %v3015
      %3048 = vst [vmem:[#allocation2 + $0x38] sm:$0xff] %v3016
      %3049 = vst [vmem:[#allocation2 + $0x40] sm:$0xff] %v3017
      %3050 = vst [vmem:[#allocation2 + $0x48] sm:$0xff] %v3018
      %3051 = vst [vmem:[#allocation2 + $0x50] sm:$0xff] %v3019
      %3052 = vst [vmem:[#allocation2 + $0x58] sm:$0xff] %v3020
      %3053 = vst [vmem:[#allocation2 + $0x60] sm:$0xff] %v3021
      %3054 = vst [vmem:[#allocation2 + $0x68] sm:$0xff] %v3022
      %3055 = vst [vmem:[#allocation2 + $0x70] sm:$0xff] %v3023
      %3056 = vst [vmem:[#allocation2 + $0x78] sm:$0xff] %v3024
      %3057 = vst [vmem:[#allocation2 + $0x80] sm:$0xff] %v3025
      %3058 = vst [vmem:[#allocation2 + $0x88] sm:$0xff] %v3026
      %3059 = vst [vmem:[#allocation2 + $0x90] sm:$0xff] %v3027
      %3060 = vst [vmem:[#allocation2 + $0x98] sm:$0xff] %v3028
      %3061 = vst [vmem:[#allocation2 + $0xa0] sm:$0xff] %v3029
      %3062 = vst [vmem:[#allocation2 + $0xa8] sm:$0xff] %v3030
      %3063 = vst [vmem:[#allocation2 + $0xb0] sm:$0xff] %v3031
      %3064 = vst [vmem:[#allocation2 + $0xb8] sm:$0xff] %v3032
      %3065 = vst [vmem:[#allocation2 + $0xc0] sm:$0xff] %v3033
      %3066 = vst [vmem:[#allocation2 + $0xc8] sm:$0xff] %v3034
      %3067 = vst [vmem:[#allocation2 + $0xd0] sm:$0xff] %v3035
      %3068 = vst [vmem:[#allocation2 + $0xd8] sm:$0xff] %v3036
      %3069 = vst [vmem:[#allocation2 + $0xe0] sm:$0xff] %v3037
      %3070 = vst [vmem:[#allocation2 + $0xe8] sm:$0xff] %v3038
      %3071 = vst [vmem:[#allocation2 + $0xf0] sm:$0xff] %v3039
      %3072 = vst [vmem:[#allocation2 + $0xf8] sm:$0xff] %v3040
      // Predicated region
      $region77: #{_transformation_net_impl.1} parent=71 // pred_check
        %p3073 = pneg %p2717
      $region78: #{_transformation_net_impl.1} parent=71 // pred_check_branch
        %3075 = sbr.rel (%p3073) target = $region80
      $region79: #{_transformation_net_impl.1} parent=71 // pred_region
        %v3076 = vld [vmem:[#allocation2] sm:$0xff]
        %v3077 = vld [vmem:[#allocation2 + $0x8] sm:$0xff]
        %v3078 = vld [vmem:[#allocation2 + $0x10] sm:$0xff]
        %v3079 = vld [vmem:[#allocation2 + $0x18] sm:$0xff]
        %v3080 = vld [vmem:[#allocation2 + $0x20] sm:$0xff]
        %v3081 = vld [vmem:[#allocation2 + $0x28] sm:$0xff]
        %v3082 = vld [vmem:[#allocation2 + $0x30] sm:$0xff]
        %v3083 = vld [vmem:[#allocation2 + $0x38] sm:$0xff]
        %v3084 = vld [vmem:[#allocation2 + $0x40] sm:$0xff]
        %v3085 = vld [vmem:[#allocation2 + $0x48] sm:$0xff]
        %v3086 = vld [vmem:[#allocation2 + $0x50] sm:$0xff]
        %v3087 = vld [vmem:[#allocation2 + $0x58] sm:$0xff]
        %v3088 = vld [vmem:[#allocation2 + $0x60] sm:$0xff]
        %v3089 = vld [vmem:[#allocation2 + $0x68] sm:$0xff]
        %v3090 = vld [vmem:[#allocation2 + $0x70] sm:$0xff]
        %v3091 = vld [vmem:[#allocation2 + $0x78] sm:$0xff]
        %v3092 = vld [vmem:[#allocation2 + $0x80] sm:$0xff]
        %v3093 = vld [vmem:[#allocation2 + $0x88] sm:$0xff]
        %v3094 = vld [vmem:[#allocation2 + $0x90] sm:$0xff]
        %v3095 = vld [vmem:[#allocation2 + $0x98] sm:$0xff]
        %v3096 = vld [vmem:[#allocation2 + $0xa0] sm:$0xff]
        %v3097 = vld [vmem:[#allocation2 + $0xa8] sm:$0xff]
        %v3098 = vld [vmem:[#allocation2 + $0xb0] sm:$0xff]
        %v3099 = vld [vmem:[#allocation2 + $0xb8] sm:$0xff]
        %v3100 = vld [vmem:[#allocation2 + $0xc0] sm:$0xff]
        %v3101 = vld [vmem:[#allocation2 + $0xc8] sm:$0xff]
        %v3102 = vld [vmem:[#allocation2 + $0xd0] sm:$0xff]
        %v3103 = vld [vmem:[#allocation2 + $0xd8] sm:$0xff]
        %v3104 = vld [vmem:[#allocation2 + $0xe0] sm:$0xff]
        %v3105 = vld [vmem:[#allocation2 + $0xe8] sm:$0xff]
        %v3106 = vld [vmem:[#allocation2 + $0xf0] sm:$0xff]
        %v3107 = vld [vmem:[#allocation2 + $0xf8] sm:$0xff]
        %3108 = vmax.xlane.f32.xlu0 %v3076
        %v3109 = vpop.xlane.xlu0 %3108
        %3110 = vmax.xlane.f32.xlu0 %v3077
        %v3111 = vpop.xlane.xlu0 %3110
        %3112 = vmax.xlane.f32.xlu0 %v3078
        %v3113 = vpop.xlane.xlu0 %3112
        %3114 = vmax.xlane.f32.xlu0 %v3079
        %v3115 = vpop.xlane.xlu0 %3114
        %3116 = vmax.xlane.f32.xlu0 %v3080
        %v3117 = vpop.xlane.xlu0 %3116
        %3118 = vmax.xlane.f32.xlu0 %v3081
        %v3119 = vpop.xlane.xlu0 %3118
        %3120 = vmax.xlane.f32.xlu0 %v3082
        %v3121 = vpop.xlane.xlu0 %3120
        %3122 = vmax.xlane.f32.xlu0 %v3083
        %v3123 = vpop.xlane.xlu0 %3122
        %3124 = vmax.xlane.f32.xlu0 %v3084
        %v3125 = vpop.xlane.xlu0 %3124
        %3126 = vmax.xlane.f32.xlu0 %v3085
        %v3127 = vpop.xlane.xlu0 %3126
        %3128 = vmax.xlane.f32.xlu0 %v3086
        %v3129 = vpop.xlane.xlu0 %3128
        %3130 = vmax.xlane.f32.xlu0 %v3087
        %v3131 = vpop.xlane.xlu0 %3130
        %3132 = vmax.xlane.f32.xlu0 %v3088
        %v3133 = vpop.xlane.xlu0 %3132
        %3134 = vmax.xlane.f32.xlu0 %v3089
        %v3135 = vpop.xlane.xlu0 %3134
        %3136 = vmax.xlane.f32.xlu0 %v3090
        %v3137 = vpop.xlane.xlu0 %3136
        %3138 = vmax.xlane.f32.xlu0 %v3091
        %v3139 = vpop.xlane.xlu0 %3138
        %3140 = vmax.xlane.f32.xlu0 %v3092
        %v3141 = vpop.xlane.xlu0 %3140
        %3142 = vmax.xlane.f32.xlu0 %v3093
        %v3143 = vpop.xlane.xlu0 %3142
        %3144 = vmax.xlane.f32.xlu0 %v3094
        %v3145 = vpop.xlane.xlu0 %3144
        %3146 = vmax.xlane.f32.xlu0 %v3095
        %v3147 = vpop.xlane.xlu0 %3146
        %3148 = vmax.xlane.f32.xlu0 %v3096
        %v3149 = vpop.xlane.xlu0 %3148
        %3150 = vmax.xlane.f32.xlu0 %v3097
        %v3151 = vpop.xlane.xlu0 %3150
        %3152 = vmax.xlane.f32.xlu0 %v3098
        %v3153 = vpop.xlane.xlu0 %3152
        %3154 = vmax.xlane.f32.xlu0 %v3099
        %v3155 = vpop.xlane.xlu0 %3154
        %3156 = vmax.xlane.f32.xlu0 %v3100
        %v3157 = vpop.xlane.xlu0 %3156
        %3158 = vmax.xlane.f32.xlu0 %v3101
        %v3159 = vpop.xlane.xlu0 %3158
        %3160 = vmax.xlane.f32.xlu0 %v3102
        %v3161 = vpop.xlane.xlu0 %3160
        %3162 = vmax.xlane.f32.xlu0 %v3103
        %v3163 = vpop.xlane.xlu0 %3162
        %3164 = vmax.xlane.f32.xlu0 %v3104
        %v3165 = vpop.xlane.xlu0 %3164
        %3166 = vmax.xlane.f32.xlu0 %v3105
        %v3167 = vpop.xlane.xlu0 %3166
        %3168 = vmax.xlane.f32.xlu0 %v3106
        %v3169 = vpop.xlane.xlu0 %3168
        %3170 = vmax.xlane.f32.xlu0 %v3107
        %v3171 = vpop.xlane.xlu0 %3170
        %v3172 = vld [vmem:[%s6] sm:$0xff]
        %v3173 = vld [vmem:[%s6 + $0x8] sm:$0xff]
        %v3174 = vld [vmem:[%s6 + $0x10] sm:$0xff]
        %v3175 = vld [vmem:[%s6 + $0x18] sm:$0xff]
        %v3176 = vld [vmem:[%s6 + $0x20] sm:$0xff]
        %v3177 = vld [vmem:[%s6 + $0x28] sm:$0xff]
        %v3178 = vld [vmem:[%s6 + $0x30] sm:$0xff]
        %v3179 = vld [vmem:[%s6 + $0x38] sm:$0xff]
        %v3180 = vld [vmem:[%s6 + $0x40] sm:$0xff]
        %v3181 = vld [vmem:[%s6 + $0x48] sm:$0xff]
        %v3182 = vld [vmem:[%s6 + $0x50] sm:$0xff]
        %v3183 = vld [vmem:[%s6 + $0x58] sm:$0xff]
        %v3184 = vld [vmem:[%s6 + $0x60] sm:$0xff]
        %v3185 = vld [vmem:[%s6 + $0x68] sm:$0xff]
        %v3186 = vld [vmem:[%s6 + $0x70] sm:$0xff]
        %v3187 = vld [vmem:[%s6 + $0x78] sm:$0xff]
        %v3188 = vld [vmem:[%s6 + $0x80] sm:$0xff]
        %v3189 = vld [vmem:[%s6 + $0x88] sm:$0xff]
        %v3190 = vld [vmem:[%s6 + $0x90] sm:$0xff]
        %v3191 = vld [vmem:[%s6 + $0x98] sm:$0xff]
        %v3192 = vld [vmem:[%s6 + $0xa0] sm:$0xff]
        %v3193 = vld [vmem:[%s6 + $0xa8] sm:$0xff]
        %v3194 = vld [vmem:[%s6 + $0xb0] sm:$0xff]
        %v3195 = vld [vmem:[%s6 + $0xb8] sm:$0xff]
        %v3196 = vld [vmem:[%s6 + $0xc0] sm:$0xff]
        %v3197 = vld [vmem:[%s6 + $0xc8] sm:$0xff]
        %v3198 = vld [vmem:[%s6 + $0xd0] sm:$0xff]
        %v3199 = vld [vmem:[%s6 + $0xd8] sm:$0xff]
        %v3200 = vld [vmem:[%s6 + $0xe0] sm:$0xff]
        %v3201 = vld [vmem:[%s6 + $0xe8] sm:$0xff]
        %v3202 = vld [vmem:[%s6 + $0xf0] sm:$0xff]
        %v3203 = vld [vmem:[%s6 + $0xf8] sm:$0xff]
        %v3204 = vadd.f32 %v3109, %v3172
        %v3205 = vadd.f32 %v3111, %v3173
        %v3206 = vadd.f32 %v3113, %v3174
        %v3207 = vadd.f32 %v3115, %v3175
        %v3208 = vadd.f32 %v3117, %v3176
        %v3209 = vadd.f32 %v3119, %v3177
        %v3210 = vadd.f32 %v3121, %v3178
        %v3211 = vadd.f32 %v3123, %v3179
        %v3212 = vadd.f32 %v3125, %v3180
        %v3213 = vadd.f32 %v3127, %v3181
        %v3214 = vadd.f32 %v3129, %v3182
        %v3215 = vadd.f32 %v3131, %v3183
        %v3216 = vadd.f32 %v3133, %v3184
        %v3217 = vadd.f32 %v3135, %v3185
        %v3218 = vadd.f32 %v3137, %v3186
        %v3219 = vadd.f32 %v3139, %v3187
        %v3220 = vadd.f32 %v3141, %v3188
        %v3221 = vadd.f32 %v3143, %v3189
        %v3222 = vadd.f32 %v3145, %v3190
        %v3223 = vadd.f32 %v3147, %v3191
        %v3224 = vadd.f32 %v3149, %v3192
        %v3225 = vadd.f32 %v3151, %v3193
        %v3226 = vadd.f32 %v3153, %v3194
        %v3227 = vadd.f32 %v3155, %v3195
        %v3228 = vadd.f32 %v3157, %v3196
        %v3229 = vadd.f32 %v3159, %v3197
        %v3230 = vadd.f32 %v3161, %v3198
        %v3231 = vadd.f32 %v3163, %v3199
        %v3232 = vadd.f32 %v3165, %v3200
        %v3233 = vadd.f32 %v3167, %v3201
        %v3234 = vadd.f32 %v3169, %v3202
        %v3235 = vadd.f32 %v3171, %v3203
        %v3236 = vmax.f32 %v3204, 0.0
        %v3237 = vmax.f32 %v3205, 0.0
        %v3238 = vmax.f32 %v3206, 0.0
        %v3239 = vmax.f32 %v3207, 0.0
        %v3240 = vmax.f32 %v3208, 0.0
        %v3241 = vmax.f32 %v3209, 0.0
        %v3242 = vmax.f32 %v3210, 0.0
        %v3243 = vmax.f32 %v3211, 0.0
        %v3244 = vmax.f32 %v3212, 0.0
        %v3245 = vmax.f32 %v3213, 0.0
        %v3246 = vmax.f32 %v3214, 0.0
        %v3247 = vmax.f32 %v3215, 0.0
        %v3248 = vmax.f32 %v3216, 0.0
        %v3249 = vmax.f32 %v3217, 0.0
        %v3250 = vmax.f32 %v3218, 0.0
        %v3251 = vmax.f32 %v3219, 0.0
        %v3252 = vmax.f32 %v3220, 0.0
        %v3253 = vmax.f32 %v3221, 0.0
        %v3254 = vmax.f32 %v3222, 0.0
        %v3255 = vmax.f32 %v3223, 0.0
        %v3256 = vmax.f32 %v3224, 0.0
        %v3257 = vmax.f32 %v3225, 0.0
        %v3258 = vmax.f32 %v3226, 0.0
        %v3259 = vmax.f32 %v3227, 0.0
        %v3260 = vmax.f32 %v3228, 0.0
        %v3261 = vmax.f32 %v3229, 0.0
        %v3262 = vmax.f32 %v3230, 0.0
        %v3263 = vmax.f32 %v3231, 0.0
        %v3264 = vmax.f32 %v3232, 0.0
        %v3265 = vmax.f32 %v3233, 0.0
        %v3266 = vmax.f32 %v3234, 0.0
        %v3267 = vmax.f32 %v3235, 0.0
        %v3268 = vld [vmem:[%s7] sm:$0xff]
        %v3269 = vld [vmem:[%s7 + $0x8] sm:$0xff]
        %v3270 = vld [vmem:[%s7 + $0x10] sm:$0xff]
        %v3271 = vld [vmem:[%s7 + $0x18] sm:$0xff]
        %v3272 = vld [vmem:[%s7 + $0x20] sm:$0xff]
        %v3273 = vld [vmem:[%s7 + $0x28] sm:$0xff]
        %v3274 = vld [vmem:[%s7 + $0x30] sm:$0xff]
        %v3275 = vld [vmem:[%s7 + $0x38] sm:$0xff]
        %v3276 = vld [vmem:[%s7 + $0x40] sm:$0xff]
        %v3277 = vld [vmem:[%s7 + $0x48] sm:$0xff]
        %v3278 = vld [vmem:[%s7 + $0x50] sm:$0xff]
        %v3279 = vld [vmem:[%s7 + $0x58] sm:$0xff]
        %v3280 = vld [vmem:[%s7 + $0x60] sm:$0xff]
        %v3281 = vld [vmem:[%s7 + $0x68] sm:$0xff]
        %v3282 = vld [vmem:[%s7 + $0x70] sm:$0xff]
        %v3283 = vld [vmem:[%s7 + $0x78] sm:$0xff]
        %v3284 = vld [vmem:[%s7 + $0x80] sm:$0xff]
        %v3285 = vld [vmem:[%s7 + $0x88] sm:$0xff]
        %v3286 = vld [vmem:[%s7 + $0x90] sm:$0xff]
        %v3287 = vld [vmem:[%s7 + $0x98] sm:$0xff]
        %v3288 = vld [vmem:[%s7 + $0xa0] sm:$0xff]
        %v3289 = vld [vmem:[%s7 + $0xa8] sm:$0xff]
        %v3290 = vld [vmem:[%s7 + $0xb0] sm:$0xff]
        %v3291 = vld [vmem:[%s7 + $0xb8] sm:$0xff]
        %v3292 = vld [vmem:[%s7 + $0xc0] sm:$0xff]
        %v3293 = vld [vmem:[%s7 + $0xc8] sm:$0xff]
        %v3294 = vld [vmem:[%s7 + $0xd0] sm:$0xff]
        %v3295 = vld [vmem:[%s7 + $0xd8] sm:$0xff]
        %v3296 = vld [vmem:[%s7 + $0xe0] sm:$0xff]
        %v3297 = vld [vmem:[%s7 + $0xe8] sm:$0xff]
        %v3298 = vld [vmem:[%s7 + $0xf0] sm:$0xff]
        %v3299 = vld [vmem:[%s7 + $0xf8] sm:$0xff]
        %v3300 = vpack.c.bf16 %v3237, %v3236
        %v3301 = vpack.c.bf16 %v3239, %v3238
        %v3302 = vpack.c.bf16 %v3241, %v3240
        %v3303 = vpack.c.bf16 %v3243, %v3242
        %v3304 = vpack.c.bf16 %v3245, %v3244
        %v3305 = vpack.c.bf16 %v3247, %v3246
        %v3306 = vpack.c.bf16 %v3249, %v3248
        %v3307 = vpack.c.bf16 %v3251, %v3250
        %v3308 = vpack.c.bf16 %v3253, %v3252
        %v3309 = vpack.c.bf16 %v3255, %v3254
        %v3310 = vpack.c.bf16 %v3257, %v3256
        %v3311 = vpack.c.bf16 %v3259, %v3258
        %v3312 = vpack.c.bf16 %v3261, %v3260
        %v3313 = vpack.c.bf16 %v3263, %v3262
        %v3314 = vpack.c.bf16 %v3265, %v3264
        %v3315 = vpack.c.bf16 %v3267, %v3266
        %v3316 = vld [vmem:[%s8] sm:$0xff]
        %v3317 = vld [vmem:[%s8 + $0x8] sm:$0xff]
        %v3318 = vld [vmem:[%s8 + $0x10] sm:$0xff]
        %v3319 = vld [vmem:[%s8 + $0x18] sm:$0xff]
        %v3320 = vld [vmem:[%s8 + $0x20] sm:$0xff]
        %v3321 = vld [vmem:[%s8 + $0x28] sm:$0xff]
        %v3322 = vld [vmem:[%s8 + $0x30] sm:$0xff]
        %v3323 = vld [vmem:[%s8 + $0x38] sm:$0xff]
        %v3324 = vld [vmem:[%s8 + $0x40] sm:$0xff]
        %v3325 = vld [vmem:[%s8 + $0x48] sm:$0xff]
        %v3326 = vld [vmem:[%s8 + $0x50] sm:$0xff]
        %v3327 = vld [vmem:[%s8 + $0x58] sm:$0xff]
        %v3328 = vld [vmem:[%s8 + $0x60] sm:$0xff]
        %v3329 = vld [vmem:[%s8 + $0x68] sm:$0xff]
        %v3330 = vld [vmem:[%s8 + $0x70] sm:$0xff]
        %v3331 = vld [vmem:[%s8 + $0x78] sm:$0xff]
        %v3332 = vld [vmem:[%s8 + $0x80] sm:$0xff]
        %v3333 = vld [vmem:[%s8 + $0x88] sm:$0xff]
        %v3334 = vld [vmem:[%s8 + $0x90] sm:$0xff]
        %v3335 = vld [vmem:[%s8 + $0x98] sm:$0xff]
        %v3336 = vld [vmem:[%s8 + $0xa0] sm:$0xff]
        %v3337 = vld [vmem:[%s8 + $0xa8] sm:$0xff]
        %v3338 = vld [vmem:[%s8 + $0xb0] sm:$0xff]
        %v3339 = vld [vmem:[%s8 + $0xb8] sm:$0xff]
        %v3340 = vld [vmem:[%s8 + $0xc0] sm:$0xff]
        %v3341 = vld [vmem:[%s8 + $0xc8] sm:$0xff]
        %v3342 = vld [vmem:[%s8 + $0xd0] sm:$0xff]
        %v3343 = vld [vmem:[%s8 + $0xd8] sm:$0xff]
        %v3344 = vld [vmem:[%s8 + $0xe0] sm:$0xff]
        %v3345 = vld [vmem:[%s8 + $0xe8] sm:$0xff]
        %v3346 = vld [vmem:[%s8 + $0xf0] sm:$0xff]
        %v3347 = vld [vmem:[%s8 + $0xf8] sm:$0xff]
        %v3380 = vunpack.c.l.b16 %v3268
        %v3381 = vunpack.c.h.b16 %v3268
        %v3382 = vunpack.c.l.b16 %v3269
        %v3383 = vunpack.c.h.b16 %v3269
        %v3384 = vunpack.c.l.b16 %v3270
        %v3385 = vunpack.c.h.b16 %v3270
        %v3386 = vunpack.c.l.b16 %v3271
        %v3387 = vunpack.c.h.b16 %v3271
        %v3388 = vunpack.c.l.b16 %v3272
        %v3389 = vunpack.c.h.b16 %v3272
        %v3390 = vunpack.c.l.b16 %v3273
        %v3391 = vunpack.c.h.b16 %v3273
        %v3392 = vunpack.c.l.b16 %v3274
        %v3393 = vunpack.c.h.b16 %v3274
        %v3394 = vunpack.c.l.b16 %v3275
        %v3395 = vunpack.c.h.b16 %v3275
        %v3396 = vunpack.c.l.b16 %v3276
        %v3397 = vunpack.c.h.b16 %v3276
        %v3398 = vunpack.c.l.b16 %v3277
        %v3399 = vunpack.c.h.b16 %v3277
        %v3400 = vunpack.c.l.b16 %v3278
        %v3401 = vunpack.c.h.b16 %v3278
        %v3402 = vunpack.c.l.b16 %v3279
        %v3403 = vunpack.c.h.b16 %v3279
        %v3404 = vunpack.c.l.b16 %v3280
        %v3405 = vunpack.c.h.b16 %v3280
        %v3406 = vunpack.c.l.b16 %v3281
        %v3407 = vunpack.c.h.b16 %v3281
        %v3408 = vunpack.c.l.b16 %v3282
        %v3409 = vunpack.c.h.b16 %v3282
        %v3410 = vunpack.c.l.b16 %v3283
        %v3411 = vunpack.c.h.b16 %v3283
        %v3412 = vunpack.c.l.b16 %v3284
        %v3413 = vunpack.c.h.b16 %v3284
        %v3414 = vunpack.c.l.b16 %v3285
        %v3415 = vunpack.c.h.b16 %v3285
        %v3416 = vunpack.c.l.b16 %v3286
        %v3417 = vunpack.c.h.b16 %v3286
        %v3418 = vunpack.c.l.b16 %v3287
        %v3419 = vunpack.c.h.b16 %v3287
        %v3420 = vunpack.c.l.b16 %v3288
        %v3421 = vunpack.c.h.b16 %v3288
        %v3422 = vunpack.c.l.b16 %v3289
        %v3423 = vunpack.c.h.b16 %v3289
        %v3424 = vunpack.c.l.b16 %v3290
        %v3425 = vunpack.c.h.b16 %v3290
        %v3426 = vunpack.c.l.b16 %v3291
        %v3427 = vunpack.c.h.b16 %v3291
        %v3428 = vunpack.c.l.b16 %v3292
        %v3429 = vunpack.c.h.b16 %v3292
        %v3430 = vunpack.c.l.b16 %v3293
        %v3431 = vunpack.c.h.b16 %v3293
        %v3432 = vunpack.c.l.b16 %v3294
        %v3433 = vunpack.c.h.b16 %v3294
        %v3434 = vunpack.c.l.b16 %v3295
        %v3435 = vunpack.c.h.b16 %v3295
        %v3436 = vunpack.c.l.b16 %v3296
        %v3437 = vunpack.c.h.b16 %v3296
        %v3438 = vunpack.c.l.b16 %v3297
        %v3439 = vunpack.c.h.b16 %v3297
        %v3440 = vunpack.c.l.b16 %v3298
        %v3441 = vunpack.c.h.b16 %v3298
        %v3442 = vunpack.c.l.b16 %v3299
        %v3443 = vunpack.c.h.b16 %v3299
        %v3444 = vpack.c.b16 %v3382, %v3380
        %v3445 = vpack.c.b16 %v3383, %v3381
        %v3446 = vpack.c.b16 %v3386, %v3384
        %v3447 = vpack.c.b16 %v3387, %v3385
        %v3448 = vpack.c.b16 %v3390, %v3388
        %v3449 = vpack.c.b16 %v3391, %v3389
        %v3450 = vpack.c.b16 %v3394, %v3392
        %v3451 = vpack.c.b16 %v3395, %v3393
        %v3452 = vpack.c.b16 %v3398, %v3396
        %v3453 = vpack.c.b16 %v3399, %v3397
        %v3454 = vpack.c.b16 %v3402, %v3400
        %v3455 = vpack.c.b16 %v3403, %v3401
        %v3456 = vpack.c.b16 %v3406, %v3404
        %v3457 = vpack.c.b16 %v3407, %v3405
        %v3458 = vpack.c.b16 %v3410, %v3408
        %v3459 = vpack.c.b16 %v3411, %v3409
        %v3460 = vpack.c.b16 %v3414, %v3412
        %v3461 = vpack.c.b16 %v3415, %v3413
        %v3462 = vpack.c.b16 %v3418, %v3416
        %v3463 = vpack.c.b16 %v3419, %v3417
        %v3464 = vpack.c.b16 %v3422, %v3420
        %v3465 = vpack.c.b16 %v3423, %v3421
        %v3466 = vpack.c.b16 %v3426, %v3424
        %v3467 = vpack.c.b16 %v3427, %v3425
        %v3468 = vpack.c.b16 %v3430, %v3428
        %v3469 = vpack.c.b16 %v3431, %v3429
        %v3470 = vpack.c.b16 %v3434, %v3432
        %v3471 = vpack.c.b16 %v3435, %v3433
        %v3472 = vpack.c.b16 %v3438, %v3436
        %v3473 = vpack.c.b16 %v3439, %v3437
        %v3474 = vpack.c.b16 %v3442, %v3440
        %v3475 = vpack.c.b16 %v3443, %v3441
        %3508 = vmatprep.subr.bf16.mxu0 0
        %3509 = vmatpush1.bf16.msra.mxu0 %v3307
        %3510 = vmatprep.subr.bf16.mxu0 0
        %3511 = vmatpush1.bf16.msra.mxu0 %v3306
        %3512 = vmatprep.subr.bf16.mxu0 0
        %3513 = vmatpush1.bf16.msra.mxu0 %v3305
        %3514 = vmatprep.subr.bf16.mxu0 0
        %3515 = vmatpush1.bf16.msra.mxu0 %v3304
        %3516 = vmatprep.subr.bf16.mxu0 0
        %3517 = vmatpush1.bf16.msra.mxu0 %v3303
        %3518 = vmatprep.subr.bf16.mxu0 0
        %3519 = vmatpush1.bf16.msra.mxu0 %v3302
        %3520 = vmatprep.subr.bf16.mxu0 0
        %3521 = vmatpush1.bf16.msra.mxu0 %v3301
        %3522 = vmatprep.subr.bf16.mxu0 0
        %3523 = vmatpush1.bf16.msra.mxu0 %v3300
        %3524 = vmatprep.subr.bf16.mxu0 0
        %3525 = vmatpush2.bf16.msra.mxu0 %v3315
        %3526 = vmatprep.subr.bf16.mxu0 0
        %3527 = vmatpush2.bf16.msra.mxu0 %v3314
        %3528 = vmatprep.subr.bf16.mxu0 0
        %3529 = vmatpush2.bf16.msra.mxu0 %v3313
        %3530 = vmatprep.subr.bf16.mxu0 0
        %3531 = vmatpush2.bf16.msra.mxu0 %v3312
        %3532 = vmatprep.subr.bf16.mxu0 0
        %3533 = vmatpush2.bf16.msra.mxu0 %v3311
        %3534 = vmatprep.subr.bf16.mxu0 0
        %3535 = vmatpush2.bf16.msra.mxu0 %v3310
        %3536 = vmatprep.subr.bf16.mxu0 0
        %3537 = vmatpush2.bf16.msra.mxu0 %v3309
        %3538 = vmatprep.subr.bf16.mxu0 0
        %3539 = vmatpush2.bf16.msra.mxu0 %v3308
        %3540 = vmatprep.mubr.bf16.mxu0 %v3445
        %3541 = vmatmul.mubr.bf16.gmra.mxu0 %v3444
        %v3542 = vpop.f32.mrf.mxu0
        %v3543 = vadd.f32 %v3316, %v3542
        %v3544 = vpop.f32.mrf.mxu0
        %v3545 = vpop.f32.mrf.mxu0
        %v3546 = vadd.f32 %v3317, %v3545
        %v3547 = vpop.f32.mrf.mxu0
        %3548 = vmatprep.mubr.bf16.mxu0 %v3447
        %3549 = vmatmul.mubr.bf16.gmra.mxu0 %v3446
        %v3550 = vpop.f32.mrf.mxu0
        %v3551 = vadd.f32 %v3318, %v3550
        %v3552 = vpop.f32.mrf.mxu0
        %v3553 = vpop.f32.mrf.mxu0
        %v3554 = vadd.f32 %v3319, %v3553
        %v3555 = vpop.f32.mrf.mxu0
        %3556 = vmatprep.mubr.bf16.mxu0 %v3449
        %3557 = vmatmul.mubr.bf16.gmra.mxu0 %v3448
        %v3558 = vpop.f32.mrf.mxu0
        %v3559 = vadd.f32 %v3320, %v3558
        %v3560 = vpop.f32.mrf.mxu0
        %v3561 = vpop.f32.mrf.mxu0
        %v3562 = vadd.f32 %v3321, %v3561
        %v3563 = vpop.f32.mrf.mxu0
        %3564 = vmatprep.mubr.bf16.mxu0 %v3451
        %3565 = vmatmul.mubr.bf16.gmra.mxu0 %v3450
        %v3566 = vpop.f32.mrf.mxu0
        %v3567 = vadd.f32 %v3322, %v3566
        %v3568 = vpop.f32.mrf.mxu0
        %v3569 = vpop.f32.mrf.mxu0
        %v3570 = vadd.f32 %v3323, %v3569
        %v3571 = vpop.f32.mrf.mxu0
        %3572 = vmatprep.mubr.bf16.mxu0 %v3453
        %3573 = vmatmul.mubr.bf16.gmra.mxu0 %v3452
        %v3574 = vpop.f32.mrf.mxu0
        %v3575 = vadd.f32 %v3324, %v3574
        %v3576 = vpop.f32.mrf.mxu0
        %v3577 = vpop.f32.mrf.mxu0
        %v3578 = vadd.f32 %v3325, %v3577
        %v3579 = vpop.f32.mrf.mxu0
        %3580 = vmatprep.mubr.bf16.mxu0 %v3455
        %3581 = vmatmul.mubr.bf16.gmra.mxu0 %v3454
        %v3582 = vpop.f32.mrf.mxu0
        %v3583 = vadd.f32 %v3326, %v3582
        %v3584 = vpop.f32.mrf.mxu0
        %v3585 = vpop.f32.mrf.mxu0
        %v3586 = vadd.f32 %v3327, %v3585
        %v3587 = vpop.f32.mrf.mxu0
        %3588 = vmatprep.mubr.bf16.mxu0 %v3457
        %3589 = vmatmul.mubr.bf16.gmra.mxu0 %v3456
        %v3590 = vpop.f32.mrf.mxu0
        %v3591 = vadd.f32 %v3328, %v3590
        %v3592 = vpop.f32.mrf.mxu0
        %v3593 = vpop.f32.mrf.mxu0
        %v3594 = vadd.f32 %v3329, %v3593
        %v3595 = vpop.f32.mrf.mxu0
        %3596 = vmatprep.mubr.bf16.mxu0 %v3459
        %3597 = vmatmul.mubr.bf16.gmra.mxu0 %v3458
        %v3598 = vpop.f32.mrf.mxu0
        %v3599 = vadd.f32 %v3330, %v3598
        %v3600 = vpop.f32.mrf.mxu0
        %v3601 = vpop.f32.mrf.mxu0
        %v3602 = vadd.f32 %v3331, %v3601
        %v3603 = vpop.f32.mrf.mxu0
        %3604 = vmatprep.mubr.bf16.mxu0 %v3461
        %3605 = vmatmul.mubr.bf16.gmra.mxu0 %v3460
        %v3606 = vpop.f32.mrf.mxu0
        %v3607 = vadd.f32 %v3332, %v3606
        %v3608 = vpop.f32.mrf.mxu0
        %v3609 = vpop.f32.mrf.mxu0
        %v3610 = vadd.f32 %v3333, %v3609
        %v3611 = vpop.f32.mrf.mxu0
        %3612 = vmatprep.mubr.bf16.mxu0 %v3463
        %3613 = vmatmul.mubr.bf16.gmra.mxu0 %v3462
        %v3614 = vpop.f32.mrf.mxu0
        %v3615 = vadd.f32 %v3334, %v3614
        %v3616 = vpop.f32.mrf.mxu0
        %v3617 = vpop.f32.mrf.mxu0
        %v3618 = vadd.f32 %v3335, %v3617
        %v3619 = vpop.f32.mrf.mxu0
        %3620 = vmatprep.mubr.bf16.mxu0 %v3465
        %3621 = vmatmul.mubr.bf16.gmra.mxu0 %v3464
        %v3622 = vpop.f32.mrf.mxu0
        %v3623 = vadd.f32 %v3336, %v3622
        %v3624 = vpop.f32.mrf.mxu0
        %v3625 = vpop.f32.mrf.mxu0
        %v3626 = vadd.f32 %v3337, %v3625
        %v3627 = vpop.f32.mrf.mxu0
        %3628 = vmatprep.mubr.bf16.mxu0 %v3467
        %3629 = vmatmul.mubr.bf16.gmra.mxu0 %v3466
        %v3630 = vpop.f32.mrf.mxu0
        %v3631 = vadd.f32 %v3338, %v3630
        %v3632 = vpop.f32.mrf.mxu0
        %v3633 = vpop.f32.mrf.mxu0
        %v3634 = vadd.f32 %v3339, %v3633
        %v3635 = vpop.f32.mrf.mxu0
        %3636 = vmatprep.mubr.bf16.mxu0 %v3469
        %3637 = vmatmul.mubr.bf16.gmra.mxu0 %v3468
        %v3638 = vpop.f32.mrf.mxu0
        %v3639 = vadd.f32 %v3340, %v3638
        %v3640 = vpop.f32.mrf.mxu0
        %v3641 = vpop.f32.mrf.mxu0
        %v3642 = vadd.f32 %v3341, %v3641
        %v3643 = vpop.f32.mrf.mxu0
        %3644 = vmatprep.mubr.bf16.mxu0 %v3471
        %3645 = vmatmul.mubr.bf16.gmra.mxu0 %v3470
        %v3646 = vpop.f32.mrf.mxu0
        %v3647 = vadd.f32 %v3342, %v3646
        %v3648 = vpop.f32.mrf.mxu0
        %v3649 = vpop.f32.mrf.mxu0
        %v3650 = vadd.f32 %v3343, %v3649
        %v3651 = vpop.f32.mrf.mxu0
        %3652 = vmatprep.mubr.bf16.mxu0 %v3473
        %3653 = vmatmul.mubr.bf16.gmra.mxu0 %v3472
        %v3654 = vpop.f32.mrf.mxu0
        %v3655 = vadd.f32 %v3344, %v3654
        %v3656 = vpop.f32.mrf.mxu0
        %v3657 = vpop.f32.mrf.mxu0
        %v3658 = vadd.f32 %v3345, %v3657
        %v3659 = vpop.f32.mrf.mxu0
        %3660 = vmatprep.mubr.bf16.mxu0 %v3475
        %3661 = vmatmul.mubr.bf16.gmra.mxu0 %v3474
        %v3662 = vpop.f32.mrf.mxu0
        %v3663 = vadd.f32 %v3346, %v3662
        %v3664 = vpop.f32.mrf.mxu0
        %v3665 = vpop.f32.mrf.mxu0
        %v3666 = vadd.f32 %v3347, %v3665
        %v3667 = vpop.f32.mrf.mxu0
        %3668 = vdwg.mxu0
        %v3669 = vmax.f32 %v3543, 0.0
        %v3670 = vmax.f32 %v3546, 0.0
        %v3671 = vmax.f32 %v3551, 0.0
        %v3672 = vmax.f32 %v3554, 0.0
        %v3673 = vmax.f32 %v3559, 0.0
        %v3674 = vmax.f32 %v3562, 0.0
        %v3675 = vmax.f32 %v3567, 0.0
        %v3676 = vmax.f32 %v3570, 0.0
        %v3677 = vmax.f32 %v3575, 0.0
        %v3678 = vmax.f32 %v3578, 0.0
        %v3679 = vmax.f32 %v3583, 0.0
        %v3680 = vmax.f32 %v3586, 0.0
        %v3681 = vmax.f32 %v3591, 0.0
        %v3682 = vmax.f32 %v3594, 0.0
        %v3683 = vmax.f32 %v3599, 0.0
        %v3684 = vmax.f32 %v3602, 0.0
        %v3685 = vmax.f32 %v3607, 0.0
        %v3686 = vmax.f32 %v3610, 0.0
        %v3687 = vmax.f32 %v3615, 0.0
        %v3688 = vmax.f32 %v3618, 0.0
        %v3689 = vmax.f32 %v3623, 0.0
        %v3690 = vmax.f32 %v3626, 0.0
        %v3691 = vmax.f32 %v3631, 0.0
        %v3692 = vmax.f32 %v3634, 0.0
        %v3693 = vmax.f32 %v3639, 0.0
        %v3694 = vmax.f32 %v3642, 0.0
        %v3695 = vmax.f32 %v3647, 0.0
        %v3696 = vmax.f32 %v3650, 0.0
        %v3697 = vmax.f32 %v3655, 0.0
        %v3698 = vmax.f32 %v3658, 0.0
        %v3699 = vmax.f32 %v3663, 0.0
        %v3700 = vmax.f32 %v3666, 0.0
        %v3701 = vld [vmem:[%s9] sm:$0xff]
        %v3702 = vld [vmem:[%s9 + $0x8] sm:$0xff]
        %v3703 = vld [vmem:[%s9 + $0x10] sm:$0xff]
        %v3704 = vld [vmem:[%s9 + $0x18] sm:$0xff]
        %v3705 = vld [vmem:[%s9 + $0x20] sm:$0xff]
        %v3706 = vld [vmem:[%s9 + $0x28] sm:$0xff]
        %v3707 = vld [vmem:[%s9 + $0x30] sm:$0xff]
        %v3708 = vld [vmem:[%s9 + $0x38] sm:$0xff]
        %v3709 = vld [vmem:[%s9 + $0x40] sm:$0xff]
        %v3710 = vld [vmem:[%s9 + $0x48] sm:$0xff]
        %v3711 = vld [vmem:[%s9 + $0x50] sm:$0xff]
        %v3712 = vld [vmem:[%s9 + $0x58] sm:$0xff]
        %v3713 = vld [vmem:[%s9 + $0x60] sm:$0xff]
        %v3714 = vld [vmem:[%s9 + $0x68] sm:$0xff]
        %v3715 = vld [vmem:[%s9 + $0x70] sm:$0xff]
        %v3716 = vld [vmem:[%s9 + $0x78] sm:$0xff]
        %v3717 = vpack.c.bf16 %v3670, %v3669
        %v3718 = vpack.c.bf16 %v3672, %v3671
        %v3719 = vpack.c.bf16 %v3674, %v3673
        %v3720 = vpack.c.bf16 %v3676, %v3675
        %v3721 = vpack.c.bf16 %v3678, %v3677
        %v3722 = vpack.c.bf16 %v3680, %v3679
        %v3723 = vpack.c.bf16 %v3682, %v3681
        %v3724 = vpack.c.bf16 %v3684, %v3683
        %v3725 = vpack.c.bf16 %v3686, %v3685
        %v3726 = vpack.c.bf16 %v3688, %v3687
        %v3727 = vpack.c.bf16 %v3690, %v3689
        %v3728 = vpack.c.bf16 %v3692, %v3691
        %v3729 = vpack.c.bf16 %v3694, %v3693
        %v3730 = vpack.c.bf16 %v3696, %v3695
        %v3731 = vpack.c.bf16 %v3698, %v3697
        %v3732 = vpack.c.bf16 %v3700, %v3699
        %v3733 = vld [vmem:[%s10] sm:$0xff]
        %v3734 = vld [vmem:[%s10 + $0x8] sm:$0xff]
        %v3735 = vld [vmem:[%s10 + $0x10] sm:$0xff]
        %v3736 = vld [vmem:[%s10 + $0x18] sm:$0xff]
        %v3737 = vld [vmem:[%s10 + $0x20] sm:$0xff]
        %v3738 = vld [vmem:[%s10 + $0x28] sm:$0xff]
        %v3739 = vld [vmem:[%s10 + $0x30] sm:$0xff]
        %v3740 = vld [vmem:[%s10 + $0x38] sm:$0xff]
        %v3741 = vld [vmem:[%s10 + $0x40] sm:$0xff]
        %v3742 = vld [vmem:[%s10 + $0x48] sm:$0xff]
        %v3743 = vld [vmem:[%s10 + $0x50] sm:$0xff]
        %v3744 = vld [vmem:[%s10 + $0x58] sm:$0xff]
        %v3745 = vld [vmem:[%s10 + $0x60] sm:$0xff]
        %v3746 = vld [vmem:[%s10 + $0x68] sm:$0xff]
        %v3747 = vld [vmem:[%s10 + $0x70] sm:$0xff]
        %v3748 = vld [vmem:[%s10 + $0x78] sm:$0xff]
        %v3765 = vunpack.c.l.b16 %v3701
        %v3766 = vunpack.c.h.b16 %v3701
        %v3767 = vunpack.c.l.b16 %v3702
        %v3768 = vunpack.c.h.b16 %v3702
        %v3769 = vunpack.c.l.b16 %v3703
        %v3770 = vunpack.c.h.b16 %v3703
        %v3771 = vunpack.c.l.b16 %v3704
        %v3772 = vunpack.c.h.b16 %v3704
        %v3773 = vunpack.c.l.b16 %v3705
        %v3774 = vunpack.c.h.b16 %v3705
        %v3775 = vunpack.c.l.b16 %v3706
        %v3776 = vunpack.c.h.b16 %v3706
        %v3777 = vunpack.c.l.b16 %v3707
        %v3778 = vunpack.c.h.b16 %v3707
        %v3779 = vunpack.c.l.b16 %v3708
        %v3780 = vunpack.c.h.b16 %v3708
        %v3781 = vunpack.c.l.b16 %v3709
        %v3782 = vunpack.c.h.b16 %v3709
        %v3783 = vunpack.c.l.b16 %v3710
        %v3784 = vunpack.c.h.b16 %v3710
        %v3785 = vunpack.c.l.b16 %v3711
        %v3786 = vunpack.c.h.b16 %v3711
        %v3787 = vunpack.c.l.b16 %v3712
        %v3788 = vunpack.c.h.b16 %v3712
        %v3789 = vunpack.c.l.b16 %v3713
        %v3790 = vunpack.c.h.b16 %v3713
        %v3791 = vunpack.c.l.b16 %v3714
        %v3792 = vunpack.c.h.b16 %v3714
        %v3793 = vunpack.c.l.b16 %v3715
        %v3794 = vunpack.c.h.b16 %v3715
        %v3795 = vunpack.c.l.b16 %v3716
        %v3796 = vunpack.c.h.b16 %v3716
        %v3797 = vpack.c.b16 %v3767, %v3765
        %v3798 = vpack.c.b16 %v3768, %v3766
        %v3799 = vpack.c.b16 %v3771, %v3769
        %v3800 = vpack.c.b16 %v3772, %v3770
        %v3801 = vpack.c.b16 %v3775, %v3773
        %v3802 = vpack.c.b16 %v3776, %v3774
        %v3803 = vpack.c.b16 %v3779, %v3777
        %v3804 = vpack.c.b16 %v3780, %v3778
        %v3805 = vpack.c.b16 %v3783, %v3781
        %v3806 = vpack.c.b16 %v3784, %v3782
        %v3807 = vpack.c.b16 %v3787, %v3785
        %v3808 = vpack.c.b16 %v3788, %v3786
        %v3809 = vpack.c.b16 %v3791, %v3789
        %v3810 = vpack.c.b16 %v3792, %v3790
        %v3811 = vpack.c.b16 %v3795, %v3793
        %v3812 = vpack.c.b16 %v3796, %v3794
        %3829 = vmatprep.subr.bf16.mxu0 0
        %3830 = vmatpush1.bf16.msra.mxu0 %v3724
        %3831 = vmatprep.subr.bf16.mxu0 0
        %3832 = vmatpush1.bf16.msra.mxu0 %v3723
        %3833 = vmatprep.subr.bf16.mxu0 0
        %3834 = vmatpush1.bf16.msra.mxu0 %v3722
        %3835 = vmatprep.subr.bf16.mxu0 0
        %3836 = vmatpush1.bf16.msra.mxu0 %v3721
        %3837 = vmatprep.subr.bf16.mxu0 0
        %3838 = vmatpush1.bf16.msra.mxu0 %v3720
        %3839 = vmatprep.subr.bf16.mxu0 0
        %3840 = vmatpush1.bf16.msra.mxu0 %v3719
        %3841 = vmatprep.subr.bf16.mxu0 0
        %3842 = vmatpush1.bf16.msra.mxu0 %v3718
        %3843 = vmatprep.subr.bf16.mxu0 0
        %3844 = vmatpush1.bf16.msra.mxu0 %v3717
        %3845 = vmatprep.subr.bf16.mxu0 0
        %3846 = vmatpush2.bf16.msra.mxu0 %v3732
        %3847 = vmatprep.subr.bf16.mxu0 0
        %3848 = vmatpush2.bf16.msra.mxu0 %v3731
        %3849 = vmatprep.subr.bf16.mxu0 0
        %3850 = vmatpush2.bf16.msra.mxu0 %v3730
        %3851 = vmatprep.subr.bf16.mxu0 0
        %3852 = vmatpush2.bf16.msra.mxu0 %v3729
        %3853 = vmatprep.subr.bf16.mxu0 0
        %3854 = vmatpush2.bf16.msra.mxu0 %v3728
        %3855 = vmatprep.subr.bf16.mxu0 0
        %3856 = vmatpush2.bf16.msra.mxu0 %v3727
        %3857 = vmatprep.subr.bf16.mxu0 0
        %3858 = vmatpush2.bf16.msra.mxu0 %v3726
        %3859 = vmatprep.subr.bf16.mxu0 0
        %3860 = vmatpush2.bf16.msra.mxu0 %v3725
        %3861 = vmatprep.mubr.bf16.mxu0 %v3798
        %3862 = vmatmul.mubr.bf16.gmra.mxu0 %v3797
        %v3863 = vpop.f32.mrf.mxu0
        %v3864 = vadd.f32 %v3733, %v3863
        %v3865 = vpop.f32.mrf.mxu0
        %v3866 = vpop.f32.mrf.mxu0
        %v3867 = vadd.f32 %v3734, %v3866
        %v3868 = vpop.f32.mrf.mxu0
        %3869 = vmatprep.mubr.bf16.mxu0 %v3800
        %3870 = vmatmul.mubr.bf16.gmra.mxu0 %v3799
        %v3871 = vpop.f32.mrf.mxu0
        %v3872 = vadd.f32 %v3735, %v3871
        %v3873 = vpop.f32.mrf.mxu0
        %v3874 = vpop.f32.mrf.mxu0
        %v3875 = vadd.f32 %v3736, %v3874
        %v3876 = vpop.f32.mrf.mxu0
        %3877 = vmatprep.mubr.bf16.mxu0 %v3802
        %3878 = vmatmul.mubr.bf16.gmra.mxu0 %v3801
        %v3879 = vpop.f32.mrf.mxu0
        %v3880 = vadd.f32 %v3737, %v3879
        %v3881 = vpop.f32.mrf.mxu0
        %v3882 = vpop.f32.mrf.mxu0
        %v3883 = vadd.f32 %v3738, %v3882
        %v3884 = vpop.f32.mrf.mxu0
        %3885 = vmatprep.mubr.bf16.mxu0 %v3804
        %3886 = vmatmul.mubr.bf16.gmra.mxu0 %v3803
        %v3887 = vpop.f32.mrf.mxu0
        %v3888 = vadd.f32 %v3739, %v3887
        %v3889 = vpop.f32.mrf.mxu0
        %v3890 = vpop.f32.mrf.mxu0
        %v3891 = vadd.f32 %v3740, %v3890
        %v3892 = vpop.f32.mrf.mxu0
        %3893 = vmatprep.mubr.bf16.mxu0 %v3806
        %3894 = vmatmul.mubr.bf16.gmra.mxu0 %v3805
        %v3895 = vpop.f32.mrf.mxu0
        %v3896 = vadd.f32 %v3741, %v3895
        %v3897 = vpop.f32.mrf.mxu0
        %v3898 = vpop.f32.mrf.mxu0
        %v3899 = vadd.f32 %v3742, %v3898
        %v3900 = vpop.f32.mrf.mxu0
        %3901 = vmatprep.mubr.bf16.mxu0 %v3808
        %3902 = vmatmul.mubr.bf16.gmra.mxu0 %v3807
        %v3903 = vpop.f32.mrf.mxu0
        %v3904 = vadd.f32 %v3743, %v3903
        %v3905 = vpop.f32.mrf.mxu0
        %v3906 = vpop.f32.mrf.mxu0
        %v3907 = vadd.f32 %v3744, %v3906
        %v3908 = vpop.f32.mrf.mxu0
        %3909 = vmatprep.mubr.bf16.mxu0 %v3810
        %3910 = vmatmul.mubr.bf16.gmra.mxu0 %v3809
        %v3911 = vpop.f32.mrf.mxu0
        %v3912 = vadd.f32 %v3745, %v3911
        %v3913 = vpop.f32.mrf.mxu0
        %v3914 = vpop.f32.mrf.mxu0
        %v3915 = vadd.f32 %v3746, %v3914
        %v3916 = vpop.f32.mrf.mxu0
        %3917 = vmatprep.mubr.bf16.mxu0 %v3812
        %3918 = vmatmul.mubr.bf16.gmra.mxu0 %v3811
        %v3919 = vpop.f32.mrf.mxu0
        %v3920 = vadd.f32 %v3747, %v3919
        %v3921 = vpop.f32.mrf.mxu0
        %v3922 = vpop.f32.mrf.mxu0
        %v3923 = vadd.f32 %v3748, %v3922
        %v3924 = vpop.f32.mrf.mxu0
        %3925 = vdwg.mxu0
        %v3926 = vmax.f32 %v3864, 0.0
        %v3927 = vmax.f32 %v3867, 0.0
        %v3928 = vmax.f32 %v3872, 0.0
        %v3929 = vmax.f32 %v3875, 0.0
        %v3930 = vmax.f32 %v3880, 0.0
        %v3931 = vmax.f32 %v3883, 0.0
        %v3932 = vmax.f32 %v3888, 0.0
        %v3933 = vmax.f32 %v3891, 0.0
        %v3934 = vmax.f32 %v3896, 0.0
        %v3935 = vmax.f32 %v3899, 0.0
        %v3936 = vmax.f32 %v3904, 0.0
        %v3937 = vmax.f32 %v3907, 0.0
        %v3938 = vmax.f32 %v3912, 0.0
        %v3939 = vmax.f32 %v3915, 0.0
        %v3940 = vmax.f32 %v3920, 0.0
        %v3941 = vmax.f32 %v3923, 0.0
        %v3942 = vld [vmem:[%s11] sm:$0xf]
        %v3943 = vld [vmem:[%s11 + $0x4] sm:$0x1]
        %v3944 = vpack.c.bf16 %v3927, %v3926
        %v3945 = vpack.c.bf16 %v3929, %v3928
        %v3946 = vpack.c.bf16 %v3931, %v3930
        %v3947 = vpack.c.bf16 %v3933, %v3932
        %v3948 = vpack.c.bf16 %v3935, %v3934
        %v3949 = vpack.c.bf16 %v3937, %v3936
        %v3950 = vpack.c.bf16 %v3939, %v3938
        %v3951 = vpack.c.bf16 %v3941, %v3940
        %v3952 = vld [vmem:[%s12] sm:$0xff]
        %v3953 = vld [vmem:[%s12 + $0x8] sm:$0x1]
        %v3956 = vunpack.c.l.b16 %v3942
        %v3957 = vunpack.c.l.b16 %v3943
        %v3958 = vpack.c.b16 %v3957, %v3956
        %3960 = vmatprep.subr.bf16.mxu0 0
        %3961 = vmatpush1.bf16.msra.mxu0 %v3951
        %3962 = vmatprep.subr.bf16.mxu0 0
        %3963 = vmatpush1.bf16.msra.mxu0 %v3950
        %3964 = vmatprep.subr.bf16.mxu0 0
        %3965 = vmatpush1.bf16.msra.mxu0 %v3949
        %3966 = vmatprep.subr.bf16.mxu0 0
        %3967 = vmatpush1.bf16.msra.mxu0 %v3948
        %3968 = vmatprep.subr.bf16.mxu0 0
        %3969 = vmatpush1.bf16.msra.mxu0 %v3947
        %3970 = vmatprep.subr.bf16.mxu0 0
        %3971 = vmatpush1.bf16.msra.mxu0 %v3946
        %3972 = vmatprep.subr.bf16.mxu0 0
        %3973 = vmatpush1.bf16.msra.mxu0 %v3945
        %3974 = vmatprep.subr.bf16.mxu0 0
        %3975 = vmatpush1.bf16.msra.mxu0 %v3944
        %3976 = vmatprep.subr.bf16.mxu0 0
        %3977 = vmatpush2.bf16.msra.mxu0 0
        %3978 = vmatprep.subr.bf16.mxu0 0
        %3979 = vmatpush2.bf16.msra.mxu0 0
        %3980 = vmatprep.subr.bf16.mxu0 0
        %3981 = vmatpush2.bf16.msra.mxu0 0
        %3982 = vmatprep.subr.bf16.mxu0 0
        %3983 = vmatpush2.bf16.msra.mxu0 0
        %3984 = vmatprep.subr.bf16.mxu0 0
        %3985 = vmatpush2.bf16.msra.mxu0 0
        %3986 = vmatprep.subr.bf16.mxu0 0
        %3987 = vmatpush2.bf16.msra.mxu0 0
        %3988 = vmatprep.subr.bf16.mxu0 0
        %3989 = vmatpush2.bf16.msra.mxu0 0
        %3990 = vmatprep.subr.bf16.mxu0 0
        %3991 = vmatpush2.bf16.msra.mxu0 0
        %3992 = vmatprep.mubr.bf16.mxu0 0
        %3993 = vmatmul.mubr.bf16.gmra.mxu0 %v3958
        %v3994 = vpop.f32.mrf.mxu0
        %v3995 = vadd.f32 %v3952, %v3994
        %v3996 = vpop.f32.mrf.mxu0
        %v3997 = vpop.f32.mrf.mxu0
        %v3998 = vadd.f32 %v3953, %v3997
        %v3999 = vpop.f32.mrf.mxu0
        %4000 = vdwg.mxu0
        %vm4001 = vcmask 7168
        %4002 = vst.msk [vmem:[%s468] sm:$0xff] %vm4001, %v3995
        %vm4003 = vcmask 0
        %4004 = vst.msk [vmem:[%s468 + $0x8] sm:$0x1] %vm4003, %v3998
      $region80: #{_transformation_net_impl.1} parent=71 // pred_fallthru
        _
      %p4005 = scmp.lt.s32.totalorder %s28, 1
      %s4006 = scalar_select %p4005, %s28, 1
      %s4007 = smul.addr %s4006, 2
      %s4008 = smul.addr %s4007, 8
      %s4009 = scalar_lea.vmem %s13, %s4008
      // Predicated region
      $region81: #{_transformation_net_impl.1} parent=71 // pred_check
        %p4010 = pneg %p334
      $region82: #{_transformation_net_impl.1} parent=71 // pred_check_branch
        %4012 = sbr.rel (%p4010) target = $region84
      $region83: #{_transformation_net_impl.1} parent=71 // pred_region
        _
      $region84: #{_transformation_net_impl.1} parent=71 // pred_fallthru
        _
    $region72: #{_transformation_net_impl.1} parent=5 // pred_fallthru
      _
    %p4013 = scmp.le.s32.totalorder 2, %s19
    // Predicated region
    $region85: #{_transformation_net_impl.1} parent=5 // pred_check
      %p4014 = pneg %p4013
    $region86: #{_transformation_net_impl.1} parent=5 // pred_check_branch
      %4016 = sbr.rel (%p4014) target = $region88
    $region87: #{_transformation_net_impl.1} parent=5 // pred_region
      %s4017 = ssub.s32 %s19, 2
      // Predicated region
      $region89: #{_transformation_net_impl.1} parent=87 // pred_check
        %p4018 = pneg %p340
      $region90: #{_transformation_net_impl.1} parent=87 // pred_check_branch
        %4020 = sbr.rel (%p4018) target = $region92
      $region91: #{_transformation_net_impl.1} parent=87 // pred_region
        %p4021 = scmp.lt.s32.totalorder %s30, 1
        %s4022 = scalar_select %p4021, %s30, 1
        %s4023 = smul.addr %s4022, 2
        %s4024 = smul.addr %s4023, 8
        %s4025 = scalar_lea.vmem %s13, %s4024
      $region92: #{_transformation_net_impl.1} parent=87 // pred_fallthru
        _
    $region88: #{_transformation_net_impl.1} parent=5 // pred_fallthru
      _
  $region6: #{_transformation_net_impl.1} parent=0 // loop_footer
    %s23 = sadd.s32 1, %s19
  $region7: #{_transformation_net_impl.1} parent=0 // loop_footer_branch
    %18 = sbr.rel target = $region3
  $region8: #{_transformation_net_impl.1} parent=0 // loop_exit
    _

</llo_original>
